<compile_context>
chip_gen: v5e
topology: v5e:2x2
jax: 0.10.0
libtpu: 0.0.40
codegen_flags: <defaults>
</compile_context>

<pallas_src>
import math
from functools import partial

import jax
import jax.numpy as jnp
from jax.experimental import pallas as pl
from jax.experimental.pallas import tpu as pltpu  # noqa: F401  (TPU backend)


# --------------------------------------------------------------------------
# Fused Pallas kernel: proj -> [encoder layer] * N -> decoder head
# --------------------------------------------------------------------------

def _ndt47_kernel(feat_ref, tok_ref, pos_ref, mbias_ref, gvec_ref,
                  pw_ref, wqk_ref, wv_ref, wo_ref, w1_ref, w2_ref,
                  lvec_ref, dw_ref, o_ref, *, B, Lp, nhead):
    f32, bf16 = jnp.float32, jnp.bfloat16
    E = pw_ref.shape[1]
    FF = w1_ref.shape[2]
    OP = dw_ref.shape[1]
    num_layers = wqk_ref.shape[0]
    Dh = E // nhead
    BL = B * Lp

    def mm(a, b):                       # bf16 MXU matmul, f32 accumulate
        return jnp.dot(a.astype(bf16), b, preferred_element_type=f32)

    def layer_norm(y, g, b):
        mu = jnp.mean(y, axis=-1, keepdims=True)
        var = jnp.mean((y - mu) ** 2, axis=-1, keepdims=True)
        return (y - mu) * jax.lax.rsqrt(var + 1e-5) * g + b

    gv = gvec_ref[...]                  # [3, GW] f32 packed globals
    out_tok = gv[0:1, :E]               # learnable out_token
    proj_b = gv[1:2, :E]                # input projection bias
    dec_b = gv[2:3, :OP]                # decoder bias (lane-padded)

    # ---- input projection; sequence position 0 of each batch block = out_token
    xp = mm(feat_ref[...], pw_ref[...]) + proj_b            # [BL, E] f32
    tok = tok_ref[...]                                      # [BL, 1] f32
    x = xp * (1.0 - tok) + out_tok * tok                    # [BL, E] f32

    pos = pos_ref[...]                                      # [BL, E] f32
    mbias = mbias_ref[...]                                  # [B, Lp, Lp] f32 (pre-broadcast)

    # ---- post-norm encoder layers (statically unrolled)
    for l in range(num_layers):
        lv = lvec_ref[l]                                    # [9, LW] f32 packed per-layer vectors
        bqk = lv[0:1, :2 * E]                               # q|k bias (q half pre-scaled)
        bv = lv[1:2, :E]
        bo = lv[2:3, :E]
        b1 = lv[3:4, :FF]
        b2 = lv[4:5, :E]
        g1, be1 = lv[5:6, :E], lv[6:7, :E]
        g2, be2 = lv[7:8, :E], lv[8:9, :E]

        # fused Q|K projection (input = src + pos); separate V projection (input = src)
        qk_in = x + pos
        qk = mm(qk_in, wqk_ref[l]) + bqk                    # [BL, 2E] f32
        v = mm(x, wv_ref[l]) + bv                           # [BL, E]  f32

        heads = []
        for h in range(nhead):                              # per-head score / softmax / PV
            q3 = qk[:, h * Dh:(h + 1) * Dh].reshape(B, Lp, Dh).astype(bf16)
            k3 = qk[:, E + h * Dh:E + (h + 1) * Dh].reshape(B, Lp, Dh).astype(bf16)
            v3 = v[:, h * Dh:(h + 1) * Dh].reshape(B, Lp, Dh).astype(bf16)
            s = jnp.einsum('bld,bmd->blm', q3, k3,
                           preferred_element_type=f32) + mbias      # [B, Lp, Lp]
            s = s - jnp.max(s, axis=-1, keepdims=True)
            p = jnp.exp(s)
            p = p * pl.reciprocal(jnp.sum(p, axis=-1, keepdims=True), approx=True)
            oh = jnp.einsum('blm,bmd->bld', p.astype(bf16), v3,
                            preferred_element_type=f32)             # [B, Lp, Dh]
            heads.append(oh.reshape(BL, Dh))

        # single out-projection on the heads-last concatenated attention output
        attn = mm(jnp.concatenate(heads, axis=-1), wo_ref[l]) + bo   # [BL, E]

        x = layer_norm(x + attn, g1, be1)                            # residual + norm1
        hdn = jnp.maximum(mm(x, w1_ref[l]) + b1, 0.0)                # linear1 + relu
        ffn = mm(hdn, w2_ref[l]) + b2                                # linear2
        x = layer_norm(x + ffn, g2, be2)                             # residual + norm2

    # ---- decoder head on sequence position 1 (== hs[1, ...] in PyTorch).
    # dw is zero-padded to 128 lanes so the output store is lane-dense.
    hs1 = x.reshape(B, Lp, E)[:, 1, :]                               # [B, E]
    o_ref[...] = mm(hs1, dw_ref[...]) + dec_b                        # [B, OP]


# --------------------------------------------------------------------------
# Glue (plain JAX): positional embedding, parameter setup, wrapper
# --------------------------------------------------------------------------

def sincos_embedding(n_pos, dim):
    pos = jnp.arange(n_pos, dtype=jnp.float32)
    omega = jnp.arange(dim // 2, dtype=jnp.float32) / (dim / 2.0)
    omega = 1.0 / (100.0 ** omega)
    out = pos[:, None] * omega[None, :]
    emb = jnp.zeros((n_pos, dim), jnp.float32)
    emb = emb.at[:, 0::2].set(jnp.sin(out))
    emb = emb.at[:, 1::2].set(jnp.cos(out))
    return emb


def init_params(key, input_dim, d_model, nhead, num_layers, dim_ff, d_out):
    """Generate PyTorch-layout weights, convert once to the kernel layout:
    pre-transposed [K, N] bf16 matrices, Q|K fused, q-scale folded, small
    vectors packed into lvec/gvec buffers, decoder weight lane-padded."""
    E, FF, Dh = d_model, dim_ff, d_model // nhead
    q_scale = 1.0 / math.sqrt(Dh)
    LW = max(2 * E, FF, E)                              # per-layer vector width
    OP = max(128, -(-d_out // 128) * 128)               # lane-padded output width
    GW = max(E, OP)
    bf16 = jnp.bfloat16
    keys = jax.random.split(key, 4 + num_layers)

    def w(k, shape, s=0.05):
        return (s * jax.random.normal(k, shape)).astype(jnp.float32)

    def padv(v, n):
        return jnp.pad(v, (0, n - v.shape[0]))

    wqk_l, wv_l, wo_l, w1_l, w2_l, lvec_l = [], [], [], [], [], []
    for i in range(num_layers):
        lk = jax.random.split(keys[4 + i], 4)
        in_proj_w = w(lk[0], (3 * E, E))                # MHA in_proj_weight
        in_proj_b = jnp.zeros((3 * E,), jnp.float32)    # MHA in_proj_bias
        out_proj_w = w(lk[1], (E, E))                   # out_proj.weight
        lin1_w = w(lk[2], (FF, E))                      # linear1.weight
        lin2_w = w(lk[3], (E, FF))                      # linear2.weight

        wq_t = in_proj_w[0:E].T * q_scale               # [E, E], 1/sqrt(Dh) folded
        wk_t = in_proj_w[E:2 * E].T
        wv_t = in_proj_w[2 * E:3 * E].T
        bq = in_proj_b[0:E] * q_scale
        bk = in_proj_b[E:2 * E]
        bv = in_proj_b[2 * E:3 * E]

        wqk_l.append(jnp.concatenate([wq_t, wk_t], axis=1))   # [E, 2E]
        wv_l.append(wv_t)                                      # [E, E]
        wo_l.append(out_proj_w.T)                              # [E, E]
        w1_l.append(lin1_w.T)                                  # [E, FF]
        w2_l.append(lin2_w.T)                                  # [FF, E]

        lvec_l.append(jnp.stack([
            padv(jnp.concatenate([bq, bk]), LW),               # 0: q|k bias
            padv(bv, LW),                                      # 1: v bias
            padv(jnp.zeros((E,), jnp.float32), LW),            # 2: out_proj bias
            padv(jnp.zeros((FF,), jnp.float32), LW),           # 3: linear1 bias
            padv(jnp.zeros((E,), jnp.float32), LW),            # 4: linear2 bias
            padv(jnp.ones((E,), jnp.float32), LW),             # 5: norm1 gamma
            padv(jnp.zeros((E,), jnp.float32), LW),            # 6: norm1 beta
            padv(jnp.ones((E,), jnp.float32), LW),             # 7: norm2 gamma
            padv(jnp.zeros((E,), jnp.float32), LW),            # 8: norm2 beta
        ]))

    gvec = jnp.stack([
        padv(w(keys[1], (E,)), GW),                            # 0: out_token
        padv(jnp.zeros((E,), jnp.float32), GW),                # 1: input proj bias
        padv(jnp.zeros((d_out,), jnp.float32), GW),            # 2: decoder bias
    ])

    return {
        'proj_w': w(keys[0], (E, input_dim)).T.astype(bf16),   # [Din, E]
        'wqk': jnp.stack(wqk_l).astype(bf16),                  # [L, E, 2E]
        'wv': jnp.stack(wv_l).astype(bf16),                    # [L, E, E]
        'wo': jnp.stack(wo_l).astype(bf16),                    # [L, E, E]
        'w1': jnp.stack(w1_l).astype(bf16),                    # [L, E, FF]
        'w2': jnp.stack(w2_l).astype(bf16),                    # [L, FF, E]
        'lvec': jnp.stack(lvec_l),                             # [L, 9, LW] f32
        'gvec': gvec,                                          # [3, GW] f32
        'dec_w': jnp.pad(w(keys[2], (d_out, E)).T,
                         ((0, 0), (0, OP - d_out))).astype(bf16),   # [E, OP]
    }


@partial(jax.jit, static_argnames=('d_model', 'nhead', 'd_out'))
def ndt47_forward(params, feat, mask, *, d_model, nhead, d_out):
    """feat: [B, S, input_dim] float32, mask: [B, S] bool (True = padded)."""
    B, S, Din = feat.shape
    E = d_model
    OP = params['dec_w'].shape[1]
    L = S + 1                                   # out_token + S feature tokens
    Lp = max(8, -(-L // 8) * 8)                 # pad sequence to multiple of 8
    BL = B * Lp

    # sequence layout: pos 0 = out_token, 1..S = feat, S+1..Lp-1 = padding
    feat_pad = jnp.zeros((B, Lp, Din), jnp.bfloat16).at[:, 1:L, :].set(
        feat.astype(jnp.bfloat16))
    feat_2d = feat_pad.reshape(BL, Din)

    tok_mask = (jnp.arange(BL) % Lp == 0).astype(jnp.float32)[:, None]   # [BL, 1]
    pos_bl = jnp.tile(sincos_embedding(Lp, E), (B, 1))                   # [BL, E]

    key_pad = jnp.concatenate(
        [jnp.zeros((B, 1), bool), mask, jnp.ones((B, Lp - L), bool)], axis=1)
    mbias = jnp.broadcast_to(
        jnp.where(key_pad, -1e30, 0.0).astype(jnp.float32)[:, None, :],
        (B, Lp, Lp))                                                     # [B, Lp, Lp]

    kern = partial(_ndt47_kernel, B=B, Lp=Lp, nhead=nhead)
    padded = pl.pallas_call(
        kern,
        out_shape=jax.ShapeDtypeStruct((B, OP), jnp.float32),
    )(feat_2d, tok_mask, pos_bl, mbias, params['gvec'], params['proj_w'],
      params['wqk'], params['wv'], params['wo'], params['w1'], params['w2'],
      params['lvec'], params['dec_w'])
    return padded[:, :d_out]


if __name__ == "__main__":
    input_dim, d_model, nhead = 32, 64, 4
    num_layers, dim_ff, d_out = 2, 128, 2
    B, S = 2, 8

    key = jax.random.PRNGKey(0)
    kf, kp = jax.random.split(key)
    feat = jax.random.normal(kf, (B, S, input_dim), dtype=jnp.float32)
    mask = jnp.zeros((B, S), dtype=bool).at[1, S - 2:].set(True)  # pad last 2 of batch 1

    params = init_params(kp, input_dim, d_model, nhead, num_layers, dim_ff, d_out)

    out = ndt47_forward(params, feat, mask, d_model=d_model, nhead=nhead, d_out=d_out)
    out = jax.block_until_ready(out)
    assert out.shape == (B, d_out) and out.dtype == jnp.float32
    assert bool(jnp.all(jnp.isfinite(out)))
    print("KERNEL_OK")
</pallas_src>

<mosaic_0001>
module attributes {stable_mosaic.version = 11 : i64} {
  func.func @_ndt47_kernel(%arg0: memref<32x32xbf16, #tpu.memory_space<vmem>>, %arg1: memref<32x1xf32, #tpu.memory_space<vmem>>, %arg2: memref<32x64xf32, #tpu.memory_space<vmem>>, %arg3: memref<2x16x16xf32, #tpu.memory_space<vmem>>, %arg4: memref<3x128xf32, #tpu.memory_space<vmem>>, %arg5: memref<32x64xbf16, #tpu.memory_space<vmem>>, %arg6: memref<2x64x128xbf16, #tpu.memory_space<vmem>>, %arg7: memref<2x64x64xbf16, #tpu.memory_space<vmem>>, %arg8: memref<2x64x64xbf16, #tpu.memory_space<vmem>>, %arg9: memref<2x64x128xbf16, #tpu.memory_space<vmem>>, %arg10: memref<2x128x64xbf16, #tpu.memory_space<vmem>>, %arg11: memref<2x9x128xf32, #tpu.memory_space<vmem>>, %arg12: memref<64x128xbf16, #tpu.memory_space<vmem>>, %arg13: memref<2x128xf32, #tpu.memory_space<vmem>>) attributes {dimension_semantics = [], scalar_prefetch = 0 : i64, scratch_operands = 0 : i64, tpu.core_type = #tpu.core_type<tc>} {
    %c0 = arith.constant 0 : index
    %c0_0 = arith.constant 0 : index
    %0 = vector.load %arg4[%c0, %c0_0] : memref<3x128xf32, #tpu.memory_space<vmem>>, vector<3x128xf32>
    %1 = vector.extract_strided_slice %0 {offsets = [0, 0], sizes = [1, 64], strides = [1, 1]} : vector<3x128xf32> to vector<1x64xf32>
    %2 = vector.extract_strided_slice %0 {offsets = [1, 0], sizes = [1, 64], strides = [1, 1]} : vector<3x128xf32> to vector<1x64xf32>
    %3 = vector.extract_strided_slice %0 {offsets = [2, 0], sizes = [1, 128], strides = [1, 1]} : vector<3x128xf32> to vector<1x128xf32>
    %c0_1 = arith.constant 0 : index
    %c0_2 = arith.constant 0 : index
    %4 = vector.load %arg0[%c0_1, %c0_2] : memref<32x32xbf16, #tpu.memory_space<vmem>>, vector<32x32xbf16>
    %c0_3 = arith.constant 0 : index
    %c0_4 = arith.constant 0 : index
    %5 = vector.load %arg5[%c0_3, %c0_4] : memref<32x64xbf16, #tpu.memory_space<vmem>>, vector<32x64xbf16>
    %cst = arith.constant dense<0.000000e+00> : vector<32x64xf32>
    %6 = tpu.matmul %4, %5, %cst {dimension_numbers = #tpu.dot_dimension_numbers<[1], [0], [0], [1], [0, 0, 1, 1], [], []>} : vector<32x32xbf16>, vector<32x64xbf16>, vector<32x64xf32> -> vector<32x64xf32>
    %7 = vector.broadcast %2 : vector<1x64xf32> to vector<32x64xf32>
    %8 = arith.addf %6, %7 : vector<32x64xf32>
    %c0_5 = arith.constant 0 : index
    %c0_6 = arith.constant 0 : index
    %9 = vector.load %arg1[%c0_5, %c0_6] : memref<32x1xf32, #tpu.memory_space<vmem>>, vector<32x1xf32>
    %cst_7 = arith.constant 1.000000e+00 : f32
    %10 = vector.broadcast %cst_7 : f32 to vector<32x1xf32>
    %11 = arith.subf %10, %9 : vector<32x1xf32>
    %12 = vector.broadcast %11 : vector<32x1xf32> to vector<32x64xf32>
    %13 = arith.mulf %8, %12 : vector<32x64xf32>
    %14 = vector.broadcast %1 : vector<1x64xf32> to vector<32x64xf32>
    %15 = vector.broadcast %9 : vector<32x1xf32> to vector<32x64xf32>
    %16 = arith.mulf %14, %15 : vector<32x64xf32>
    %17 = arith.addf %13, %16 : vector<32x64xf32>
    %c0_8 = arith.constant 0 : index
    %c0_9 = arith.constant 0 : index
    %18 = vector.load %arg2[%c0_8, %c0_9] : memref<32x64xf32, #tpu.memory_space<vmem>>, vector<32x64xf32>
    %c0_10 = arith.constant 0 : index
    %c0_11 = arith.constant 0 : index
    %c0_12 = arith.constant 0 : index
    %19 = vector.load %arg3[%c0_10, %c0_11, %c0_12] : memref<2x16x16xf32, #tpu.memory_space<vmem>>, vector<2x16x16xf32>
    %c0_13 = arith.constant 0 : index
    %c0_14 = arith.constant 0 : index
    %c0_15 = arith.constant 0 : index
    %20 = vector.load %arg11[%c0_13, %c0_14, %c0_15] : memref<2x9x128xf32, #tpu.memory_space<vmem>>, vector<1x9x128xf32>
    %21 = vector.shape_cast %20 : vector<1x9x128xf32> to vector<9x128xf32>
    %22 = vector.extract_strided_slice %21 {offsets = [0, 0], sizes = [1, 128], strides = [1, 1]} : vector<9x128xf32> to vector<1x128xf32>
    %23 = vector.extract_strided_slice %21 {offsets = [1, 0], sizes = [1, 64], strides = [1, 1]} : vector<9x128xf32> to vector<1x64xf32>
    %24 = vector.extract_strided_slice %21 {offsets = [2, 0], sizes = [1, 64], strides = [1, 1]} : vector<9x128xf32> to vector<1x64xf32>
    %25 = vector.extract_strided_slice %21 {offsets = [3, 0], sizes = [1, 128], strides = [1, 1]} : vector<9x128xf32> to vector<1x128xf32>
    %26 = vector.extract_strided_slice %21 {offsets = [4, 0], sizes = [1, 64], strides = [1, 1]} : vector<9x128xf32> to vector<1x64xf32>
    %27 = vector.extract_strided_slice %21 {offsets = [5, 0], sizes = [1, 64], strides = [1, 1]} : vector<9x128xf32> to vector<1x64xf32>
    %28 = vector.extract_strided_slice %21 {offsets = [6, 0], sizes = [1, 64], strides = [1, 1]} : vector<9x128xf32> to vector<1x64xf32>
    %29 = vector.extract_strided_slice %21 {offsets = [7, 0], sizes = [1, 64], strides = [1, 1]} : vector<9x128xf32> to vector<1x64xf32>
    %30 = vector.extract_strided_slice %21 {offsets = [8, 0], sizes = [1, 64], strides = [1, 1]} : vector<9x128xf32> to vector<1x64xf32>
    %31 = arith.addf %17, %18 : vector<32x64xf32>
    %c0_16 = arith.constant 0 : index
    %c0_17 = arith.constant 0 : index
    %c0_18 = arith.constant 0 : index
    %32 = vector.load %arg6[%c0_16, %c0_17, %c0_18] : memref<2x64x128xbf16, #tpu.memory_space<vmem>>, vector<1x64x128xbf16>
    %33 = vector.shape_cast %32 : vector<1x64x128xbf16> to vector<64x128xbf16>
    %34 = arith.truncf %31 : vector<32x64xf32> to vector<32x64xbf16>
    %cst_19 = arith.constant dense<0.000000e+00> : vector<32x128xf32>
    %35 = tpu.matmul %34, %33, %cst_19 {dimension_numbers = #tpu.dot_dimension_numbers<[1], [0], [0], [1], [0, 0, 1, 1], [], []>} : vector<32x64xbf16>, vector<64x128xbf16>, vector<32x128xf32> -> vector<32x128xf32>
    %36 = vector.broadcast %22 : vector<1x128xf32> to vector<32x128xf32>
    %37 = arith.addf %35, %36 : vector<32x128xf32>
    %c0_20 = arith.constant 0 : index
    %c0_21 = arith.constant 0 : index
    %c0_22 = arith.constant 0 : index
    %38 = vector.load %arg7[%c0_20, %c0_21, %c0_22] : memref<2x64x64xbf16, #tpu.memory_space<vmem>>, vector<1x64x64xbf16>
    %39 = vector.shape_cast %38 : vector<1x64x64xbf16> to vector<64x64xbf16>
    %40 = arith.truncf %17 : vector<32x64xf32> to vector<32x64xbf16>
    %cst_23 = arith.constant dense<0.000000e+00> : vector<32x64xf32>
    %41 = tpu.matmul %40, %39, %cst_23 {dimension_numbers = #tpu.dot_dimension_numbers<[1], [0], [0], [1], [0, 0, 1, 1], [], []>} : vector<32x64xbf16>, vector<64x64xbf16>, vector<32x64xf32> -> vector<32x64xf32>
    %42 = vector.broadcast %23 : vector<1x64xf32> to vector<32x64xf32>
    %43 = arith.addf %41, %42 : vector<32x64xf32>
    %44 = vector.extract_strided_slice %37 {offsets = [0, 0], sizes = [32, 16], strides = [1, 1]} : vector<32x128xf32> to vector<32x16xf32>
    %45 = vector.shape_cast %44 : vector<32x16xf32> to vector<2x16x16xf32>
    %46 = arith.truncf %45 : vector<2x16x16xf32> to vector<2x16x16xbf16>
    %47 = vector.extract_strided_slice %37 {offsets = [0, 64], sizes = [32, 16], strides = [1, 1]} : vector<32x128xf32> to vector<32x16xf32>
    %48 = vector.shape_cast %47 : vector<32x16xf32> to vector<2x16x16xf32>
    %49 = arith.truncf %48 : vector<2x16x16xf32> to vector<2x16x16xbf16>
    %50 = vector.extract_strided_slice %43 {offsets = [0, 0], sizes = [32, 16], strides = [1, 1]} : vector<32x64xf32> to vector<32x16xf32>
    %51 = vector.shape_cast %50 : vector<32x16xf32> to vector<2x16x16xf32>
    %52 = arith.truncf %51 : vector<2x16x16xf32> to vector<2x16x16xbf16>
    "tpu.trace_start"() <{level = 10 : i32, message = "bld,bmd->blm"}> : () -> ()
    %cst_24 = arith.constant dense<0.000000e+00> : vector<2x16x16xf32>
    %53 = tpu.matmul %46, %49, %cst_24 {dimension_numbers = #tpu.dot_dimension_numbers<[2], [2], [1], [1], [0, 0, 0, 1, 1, 1], [0], [0]>} : vector<2x16x16xbf16>, vector<2x16x16xbf16>, vector<2x16x16xf32> -> vector<2x16x16xf32>
    "tpu.trace_stop"() : () -> ()
    %54 = arith.addf %53, %19 : vector<2x16x16xf32>
    %cst_25 = arith.constant dense<0xFF800000> : vector<2x16xf32>
    %55 = vector.multi_reduction <maximumf>, %54, %cst_25 [2] : vector<2x16x16xf32> to vector<2x16xf32>
    %56 = vector.shape_cast %55 : vector<2x16xf32> to vector<2x16x1xf32>
    %57 = vector.broadcast %56 : vector<2x16x1xf32> to vector<2x16x16xf32>
    %58 = arith.subf %54, %57 : vector<2x16x16xf32>
    %59 = math.exp %58 : vector<2x16x16xf32>
    %cst_26 = arith.constant dense<0.000000e+00> : vector<2x16xf32>
    %60 = vector.multi_reduction <add>, %59, %cst_26 [2] : vector<2x16x16xf32> to vector<2x16xf32>
    %61 = vector.shape_cast %60 : vector<2x16xf32> to vector<2x16x1xf32>
    %62 = tpu.reciprocal %61 {approx = true} : vector<2x16x1xf32> -> vector<2x16x1xf32>
    %63 = vector.broadcast %62 : vector<2x16x1xf32> to vector<2x16x16xf32>
    %64 = arith.mulf %59, %63 : vector<2x16x16xf32>
    %65 = arith.truncf %64 : vector<2x16x16xf32> to vector<2x16x16xbf16>
    "tpu.trace_start"() <{level = 10 : i32, message = "blm,bmd->bld"}> : () -> ()
    %cst_27 = arith.constant dense<0.000000e+00> : vector<2x16x16xf32>
    %66 = tpu.matmul %65, %52, %cst_27 {dimension_numbers = #tpu.dot_dimension_numbers<[2], [1], [1], [2], [0, 0, 0, 1, 1, 2], [0], [0]>} : vector<2x16x16xbf16>, vector<2x16x16xbf16>, vector<2x16x16xf32> -> vector<2x16x16xf32>
    "tpu.trace_stop"() : () -> ()
    %67 = vector.shape_cast %66 : vector<2x16x16xf32> to vector<32x16xf32>
    %68 = vector.extract_strided_slice %37 {offsets = [0, 16], sizes = [32, 16], strides = [1, 1]} : vector<32x128xf32> to vector<32x16xf32>
    %69 = vector.shape_cast %68 : vector<32x16xf32> to vector<2x16x16xf32>
    %70 = arith.truncf %69 : vector<2x16x16xf32> to vector<2x16x16xbf16>
    %71 = vector.extract_strided_slice %37 {offsets = [0, 80], sizes = [32, 16], strides = [1, 1]} : vector<32x128xf32> to vector<32x16xf32>
    %72 = vector.shape_cast %71 : vector<32x16xf32> to vector<2x16x16xf32>
    %73 = arith.truncf %72 : vector<2x16x16xf32> to vector<2x16x16xbf16>
    %74 = vector.extract_strided_slice %43 {offsets = [0, 16], sizes = [32, 16], strides = [1, 1]} : vector<32x64xf32> to vector<32x16xf32>
    %75 = vector.shape_cast %74 : vector<32x16xf32> to vector<2x16x16xf32>
    %76 = arith.truncf %75 : vector<2x16x16xf32> to vector<2x16x16xbf16>
    "tpu.trace_start"() <{level = 10 : i32, message = "bld,bmd->blm"}> : () -> ()
    %cst_28 = arith.constant dense<0.000000e+00> : vector<2x16x16xf32>
    %77 = tpu.matmul %70, %73, %cst_28 {dimension_numbers = #tpu.dot_dimension_numbers<[2], [2], [1], [1], [0, 0, 0, 1, 1, 1], [0], [0]>} : vector<2x16x16xbf16>, vector<2x16x16xbf16>, vector<2x16x16xf32> -> vector<2x16x16xf32>
    "tpu.trace_stop"() : () -> ()
    %78 = arith.addf %77, %19 : vector<2x16x16xf32>
    %cst_29 = arith.constant dense<0xFF800000> : vector<2x16xf32>
    %79 = vector.multi_reduction <maximumf>, %78, %cst_29 [2] : vector<2x16x16xf32> to vector<2x16xf32>
    %80 = vector.shape_cast %79 : vector<2x16xf32> to vector<2x16x1xf32>
    %81 = vector.broadcast %80 : vector<2x16x1xf32> to vector<2x16x16xf32>
    %82 = arith.subf %78, %81 : vector<2x16x16xf32>
    %83 = math.exp %82 : vector<2x16x16xf32>
    %cst_30 = arith.constant dense<0.000000e+00> : vector<2x16xf32>
    %84 = vector.multi_reduction <add>, %83, %cst_30 [2] : vector<2x16x16xf32> to vector<2x16xf32>
    %85 = vector.shape_cast %84 : vector<2x16xf32> to vector<2x16x1xf32>
    %86 = tpu.reciprocal %85 {approx = true} : vector<2x16x1xf32> -> vector<2x16x1xf32>
    %87 = vector.broadcast %86 : vector<2x16x1xf32> to vector<2x16x16xf32>
    %88 = arith.mulf %83, %87 : vector<2x16x16xf32>
    %89 = arith.truncf %88 : vector<2x16x16xf32> to vector<2x16x16xbf16>
    "tpu.trace_start"() <{level = 10 : i32, message = "blm,bmd->bld"}> : () -> ()
    %cst_31 = arith.constant dense<0.000000e+00> : vector<2x16x16xf32>
    %90 = tpu.matmul %89, %76, %cst_31 {dimension_numbers = #tpu.dot_dimension_numbers<[2], [1], [1], [2], [0, 0, 0, 1, 1, 2], [0], [0]>} : vector<2x16x16xbf16>, vector<2x16x16xbf16>, vector<2x16x16xf32> -> vector<2x16x16xf32>
    "tpu.trace_stop"() : () -> ()
    %91 = vector.shape_cast %90 : vector<2x16x16xf32> to vector<32x16xf32>
    %92 = vector.extract_strided_slice %37 {offsets = [0, 32], sizes = [32, 16], strides = [1, 1]} : vector<32x128xf32> to vector<32x16xf32>
    %93 = vector.shape_cast %92 : vector<32x16xf32> to vector<2x16x16xf32>
    %94 = arith.truncf %93 : vector<2x16x16xf32> to vector<2x16x16xbf16>
    %95 = vector.extract_strided_slice %37 {offsets = [0, 96], sizes = [32, 16], strides = [1, 1]} : vector<32x128xf32> to vector<32x16xf32>
    %96 = vector.shape_cast %95 : vector<32x16xf32> to vector<2x16x16xf32>
    %97 = arith.truncf %96 : vector<2x16x16xf32> to vector<2x16x16xbf16>
    %98 = vector.extract_strided_slice %43 {offsets = [0, 32], sizes = [32, 16], strides = [1, 1]} : vector<32x64xf32> to vector<32x16xf32>
    %99 = vector.shape_cast %98 : vector<32x16xf32> to vector<2x16x16xf32>
    %100 = arith.truncf %99 : vector<2x16x16xf32> to vector<2x16x16xbf16>
    "tpu.trace_start"() <{level = 10 : i32, message = "bld,bmd->blm"}> : () -> ()
    %cst_32 = arith.constant dense<0.000000e+00> : vector<2x16x16xf32>
    %101 = tpu.matmul %94, %97, %cst_32 {dimension_numbers = #tpu.dot_dimension_numbers<[2], [2], [1], [1], [0, 0, 0, 1, 1, 1], [0], [0]>} : vector<2x16x16xbf16>, vector<2x16x16xbf16>, vector<2x16x16xf32> -> vector<2x16x16xf32>
    "tpu.trace_stop"() : () -> ()
    %102 = arith.addf %101, %19 : vector<2x16x16xf32>
    %cst_33 = arith.constant dense<0xFF800000> : vector<2x16xf32>
    %103 = vector.multi_reduction <maximumf>, %102, %cst_33 [2] : vector<2x16x16xf32> to vector<2x16xf32>
    %104 = vector.shape_cast %103 : vector<2x16xf32> to vector<2x16x1xf32>
    %105 = vector.broadcast %104 : vector<2x16x1xf32> to vector<2x16x16xf32>
    %106 = arith.subf %102, %105 : vector<2x16x16xf32>
    %107 = math.exp %106 : vector<2x16x16xf32>
    %cst_34 = arith.constant dense<0.000000e+00> : vector<2x16xf32>
    %108 = vector.multi_reduction <add>, %107, %cst_34 [2] : vector<2x16x16xf32> to vector<2x16xf32>
    %109 = vector.shape_cast %108 : vector<2x16xf32> to vector<2x16x1xf32>
    %110 = tpu.reciprocal %109 {approx = true} : vector<2x16x1xf32> -> vector<2x16x1xf32>
    %111 = vector.broadcast %110 : vector<2x16x1xf32> to vector<2x16x16xf32>
    %112 = arith.mulf %107, %111 : vector<2x16x16xf32>
    %113 = arith.truncf %112 : vector<2x16x16xf32> to vector<2x16x16xbf16>
    "tpu.trace_start"() <{level = 10 : i32, message = "blm,bmd->bld"}> : () -> ()
    %cst_35 = arith.constant dense<0.000000e+00> : vector<2x16x16xf32>
    %114 = tpu.matmul %113, %100, %cst_35 {dimension_numbers = #tpu.dot_dimension_numbers<[2], [1], [1], [2], [0, 0, 0, 1, 1, 2], [0], [0]>} : vector<2x16x16xbf16>, vector<2x16x16xbf16>, vector<2x16x16xf32> -> vector<2x16x16xf32>
    "tpu.trace_stop"() : () -> ()
    %115 = vector.shape_cast %114 : vector<2x16x16xf32> to vector<32x16xf32>
    %116 = vector.extract_strided_slice %37 {offsets = [0, 48], sizes = [32, 16], strides = [1, 1]} : vector<32x128xf32> to vector<32x16xf32>
    %117 = vector.shape_cast %116 : vector<32x16xf32> to vector<2x16x16xf32>
    %118 = arith.truncf %117 : vector<2x16x16xf32> to vector<2x16x16xbf16>
    %119 = vector.extract_strided_slice %37 {offsets = [0, 112], sizes = [32, 16], strides = [1, 1]} : vector<32x128xf32> to vector<32x16xf32>
    %120 = vector.shape_cast %119 : vector<32x16xf32> to vector<2x16x16xf32>
    %121 = arith.truncf %120 : vector<2x16x16xf32> to vector<2x16x16xbf16>
    %122 = vector.extract_strided_slice %43 {offsets = [0, 48], sizes = [32, 16], strides = [1, 1]} : vector<32x64xf32> to vector<32x16xf32>
    %123 = vector.shape_cast %122 : vector<32x16xf32> to vector<2x16x16xf32>
    %124 = arith.truncf %123 : vector<2x16x16xf32> to vector<2x16x16xbf16>
    "tpu.trace_start"() <{level = 10 : i32, message = "bld,bmd->blm"}> : () -> ()
    %cst_36 = arith.constant dense<0.000000e+00> : vector<2x16x16xf32>
    %125 = tpu.matmul %118, %121, %cst_36 {dimension_numbers = #tpu.dot_dimension_numbers<[2], [2], [1], [1], [0, 0, 0, 1, 1, 1], [0], [0]>} : vector<2x16x16xbf16>, vector<2x16x16xbf16>, vector<2x16x16xf32> -> vector<2x16x16xf32>
    "tpu.trace_stop"() : () -> ()
    %126 = arith.addf %125, %19 : vector<2x16x16xf32>
    %cst_37 = arith.constant dense<0xFF800000> : vector<2x16xf32>
    %127 = vector.multi_reduction <maximumf>, %126, %cst_37 [2] : vector<2x16x16xf32> to vector<2x16xf32>
    %128 = vector.shape_cast %127 : vector<2x16xf32> to vector<2x16x1xf32>
    %129 = vector.broadcast %128 : vector<2x16x1xf32> to vector<2x16x16xf32>
    %130 = arith.subf %126, %129 : vector<2x16x16xf32>
    %131 = math.exp %130 : vector<2x16x16xf32>
    %cst_38 = arith.constant dense<0.000000e+00> : vector<2x16xf32>
    %132 = vector.multi_reduction <add>, %131, %cst_38 [2] : vector<2x16x16xf32> to vector<2x16xf32>
    %133 = vector.shape_cast %132 : vector<2x16xf32> to vector<2x16x1xf32>
    %134 = tpu.reciprocal %133 {approx = true} : vector<2x16x1xf32> -> vector<2x16x1xf32>
    %135 = vector.broadcast %134 : vector<2x16x1xf32> to vector<2x16x16xf32>
    %136 = arith.mulf %131, %135 : vector<2x16x16xf32>
    %137 = arith.truncf %136 : vector<2x16x16xf32> to vector<2x16x16xbf16>
    "tpu.trace_start"() <{level = 10 : i32, message = "blm,bmd->bld"}> : () -> ()
    %cst_39 = arith.constant dense<0.000000e+00> : vector<2x16x16xf32>
    %138 = tpu.matmul %137, %124, %cst_39 {dimension_numbers = #tpu.dot_dimension_numbers<[2], [1], [1], [2], [0, 0, 0, 1, 1, 2], [0], [0]>} : vector<2x16x16xbf16>, vector<2x16x16xbf16>, vector<2x16x16xf32> -> vector<2x16x16xf32>
    "tpu.trace_stop"() : () -> ()
    %139 = vector.shape_cast %138 : vector<2x16x16xf32> to vector<32x16xf32>
    %140 = tpu.concatenate %67, %91, %115, %139 in 1 : vector<32x16xf32>, vector<32x16xf32>, vector<32x16xf32>, vector<32x16xf32> -> vector<32x64xf32>
    %c0_40 = arith.constant 0 : index
    %c0_41 = arith.constant 0 : index
    %c0_42 = arith.constant 0 : index
    %141 = vector.load %arg8[%c0_40, %c0_41, %c0_42] : memref<2x64x64xbf16, #tpu.memory_space<vmem>>, vector<1x64x64xbf16>
    %142 = vector.shape_cast %141 : vector<1x64x64xbf16> to vector<64x64xbf16>
    %143 = arith.truncf %140 : vector<32x64xf32> to vector<32x64xbf16>
    %cst_43 = arith.constant dense<0.000000e+00> : vector<32x64xf32>
    %144 = tpu.matmul %143, %142, %cst_43 {dimension_numbers = #tpu.dot_dimension_numbers<[1], [0], [0], [1], [0, 0, 1, 1], [], []>} : vector<32x64xbf16>, vector<64x64xbf16>, vector<32x64xf32> -> vector<32x64xf32>
    %145 = vector.broadcast %24 : vector<1x64xf32> to vector<32x64xf32>
    %146 = arith.addf %144, %145 : vector<32x64xf32>
    %147 = arith.addf %17, %146 : vector<32x64xf32>
    %cst_44 = arith.constant dense<0.000000e+00> : vector<32xf32>
    %148 = vector.multi_reduction <add>, %147, %cst_44 [1] : vector<32x64xf32> to vector<32xf32>
    %149 = vector.shape_cast %148 : vector<32xf32> to vector<32x1xf32>
    %cst_45 = arith.constant 6.400000e+01 : f32
    %150 = vector.broadcast %cst_45 : f32 to vector<32x1xf32>
    %151 = arith.divf %149, %150 : vector<32x1xf32>
    %152 = vector.broadcast %151 : vector<32x1xf32> to vector<32x64xf32>
    %153 = arith.subf %147, %152 : vector<32x64xf32>
    %154 = arith.mulf %153, %153 : vector<32x64xf32>
    %cst_46 = arith.constant dense<0.000000e+00> : vector<32xf32>
    %155 = vector.multi_reduction <add>, %154, %cst_46 [1] : vector<32x64xf32> to vector<32xf32>
    %156 = vector.shape_cast %155 : vector<32xf32> to vector<32x1xf32>
    %cst_47 = arith.constant 6.400000e+01 : f32
    %157 = vector.broadcast %cst_47 : f32 to vector<32x1xf32>
    %158 = arith.divf %156, %157 : vector<32x1xf32>
    %159 = vector.broadcast %151 : vector<32x1xf32> to vector<32x64xf32>
    %160 = arith.subf %147, %159 : vector<32x64xf32>
    %cst_48 = arith.constant 9.99999974E-6 : f32
    %161 = vector.broadcast %cst_48 : f32 to vector<32x1xf32>
    %162 = arith.addf %158, %161 : vector<32x1xf32>
    %163 = math.rsqrt %162 : vector<32x1xf32>
    %164 = vector.broadcast %163 : vector<32x1xf32> to vector<32x64xf32>
    %165 = arith.mulf %160, %164 : vector<32x64xf32>
    %166 = vector.broadcast %27 : vector<1x64xf32> to vector<32x64xf32>
    %167 = arith.mulf %165, %166 : vector<32x64xf32>
    %168 = vector.broadcast %28 : vector<1x64xf32> to vector<32x64xf32>
    %169 = arith.addf %167, %168 : vector<32x64xf32>
    %c0_49 = arith.constant 0 : index
    %c0_50 = arith.constant 0 : index
    %c0_51 = arith.constant 0 : index
    %170 = vector.load %arg9[%c0_49, %c0_50, %c0_51] : memref<2x64x128xbf16, #tpu.memory_space<vmem>>, vector<1x64x128xbf16>
    %171 = vector.shape_cast %170 : vector<1x64x128xbf16> to vector<64x128xbf16>
    %172 = arith.truncf %169 : vector<32x64xf32> to vector<32x64xbf16>
    %cst_52 = arith.constant dense<0.000000e+00> : vector<32x128xf32>
    %173 = tpu.matmul %172, %171, %cst_52 {dimension_numbers = #tpu.dot_dimension_numbers<[1], [0], [0], [1], [0, 0, 1, 1], [], []>} : vector<32x64xbf16>, vector<64x128xbf16>, vector<32x128xf32> -> vector<32x128xf32>
    %174 = vector.broadcast %25 : vector<1x128xf32> to vector<32x128xf32>
    %175 = arith.addf %173, %174 : vector<32x128xf32>
    %cst_53 = arith.constant 0.000000e+00 : f32
    %176 = vector.broadcast %cst_53 : f32 to vector<32x128xf32>
    %177 = arith.maximumf %175, %176 : vector<32x128xf32>
    %c0_54 = arith.constant 0 : index
    %c0_55 = arith.constant 0 : index
    %c0_56 = arith.constant 0 : index
    %178 = vector.load %arg10[%c0_54, %c0_55, %c0_56] : memref<2x128x64xbf16, #tpu.memory_space<vmem>>, vector<1x128x64xbf16>
    %179 = vector.shape_cast %178 : vector<1x128x64xbf16> to vector<128x64xbf16>
    %180 = arith.truncf %177 : vector<32x128xf32> to vector<32x128xbf16>
    %cst_57 = arith.constant dense<0.000000e+00> : vector<32x64xf32>
    %181 = tpu.matmul %180, %179, %cst_57 {dimension_numbers = #tpu.dot_dimension_numbers<[1], [0], [0], [1], [0, 0, 1, 1], [], []>} : vector<32x128xbf16>, vector<128x64xbf16>, vector<32x64xf32> -> vector<32x64xf32>
    %182 = vector.broadcast %26 : vector<1x64xf32> to vector<32x64xf32>
    %183 = arith.addf %181, %182 : vector<32x64xf32>
    %184 = arith.addf %169, %183 : vector<32x64xf32>
    %cst_58 = arith.constant dense<0.000000e+00> : vector<32xf32>
    %185 = vector.multi_reduction <add>, %184, %cst_58 [1] : vector<32x64xf32> to vector<32xf32>
    %186 = vector.shape_cast %185 : vector<32xf32> to vector<32x1xf32>
    %cst_59 = arith.constant 6.400000e+01 : f32
    %187 = vector.broadcast %cst_59 : f32 to vector<32x1xf32>
    %188 = arith.divf %186, %187 : vector<32x1xf32>
    %189 = vector.broadcast %188 : vector<32x1xf32> to vector<32x64xf32>
    %190 = arith.subf %184, %189 : vector<32x64xf32>
    %191 = arith.mulf %190, %190 : vector<32x64xf32>
    %cst_60 = arith.constant dense<0.000000e+00> : vector<32xf32>
    %192 = vector.multi_reduction <add>, %191, %cst_60 [1] : vector<32x64xf32> to vector<32xf32>
    %193 = vector.shape_cast %192 : vector<32xf32> to vector<32x1xf32>
    %cst_61 = arith.constant 6.400000e+01 : f32
    %194 = vector.broadcast %cst_61 : f32 to vector<32x1xf32>
    %195 = arith.divf %193, %194 : vector<32x1xf32>
    %196 = vector.broadcast %188 : vector<32x1xf32> to vector<32x64xf32>
    %197 = arith.subf %184, %196 : vector<32x64xf32>
    %cst_62 = arith.constant 9.99999974E-6 : f32
    %198 = vector.broadcast %cst_62 : f32 to vector<32x1xf32>
    %199 = arith.addf %195, %198 : vector<32x1xf32>
    %200 = math.rsqrt %199 : vector<32x1xf32>
    %201 = vector.broadcast %200 : vector<32x1xf32> to vector<32x64xf32>
    %202 = arith.mulf %197, %201 : vector<32x64xf32>
    %203 = vector.broadcast %29 : vector<1x64xf32> to vector<32x64xf32>
    %204 = arith.mulf %202, %203 : vector<32x64xf32>
    %205 = vector.broadcast %30 : vector<1x64xf32> to vector<32x64xf32>
    %206 = arith.addf %204, %205 : vector<32x64xf32>
    %c1 = arith.constant 1 : index
    %c0_63 = arith.constant 0 : index
    %c0_64 = arith.constant 0 : index
    %207 = vector.load %arg11[%c1, %c0_63, %c0_64] : memref<2x9x128xf32, #tpu.memory_space<vmem>>, vector<1x9x128xf32>
    %208 = vector.shape_cast %207 : vector<1x9x128xf32> to vector<9x128xf32>
    %209 = vector.extract_strided_slice %208 {offsets = [0, 0], sizes = [1, 128], strides = [1, 1]} : vector<9x128xf32> to vector<1x128xf32>
    %210 = vector.extract_strided_slice %208 {offsets = [1, 0], sizes = [1, 64], strides = [1, 1]} : vector<9x128xf32> to vector<1x64xf32>
    %211 = vector.extract_strided_slice %208 {offsets = [2, 0], sizes = [1, 64], strides = [1, 1]} : vector<9x128xf32> to vector<1x64xf32>
    %212 = vector.extract_strided_slice %208 {offsets = [3, 0], sizes = [1, 128], strides = [1, 1]} : vector<9x128xf32> to vector<1x128xf32>
    %213 = vector.extract_strided_slice %208 {offsets = [4, 0], sizes = [1, 64], strides = [1, 1]} : vector<9x128xf32> to vector<1x64xf32>
    %214 = vector.extract_strided_slice %208 {offsets = [5, 0], sizes = [1, 64], strides = [1, 1]} : vector<9x128xf32> to vector<1x64xf32>
    %215 = vector.extract_strided_slice %208 {offsets = [6, 0], sizes = [1, 64], strides = [1, 1]} : vector<9x128xf32> to vector<1x64xf32>
    %216 = vector.extract_strided_slice %208 {offsets = [7, 0], sizes = [1, 64], strides = [1, 1]} : vector<9x128xf32> to vector<1x64xf32>
    %217 = vector.extract_strided_slice %208 {offsets = [8, 0], sizes = [1, 64], strides = [1, 1]} : vector<9x128xf32> to vector<1x64xf32>
    %218 = arith.addf %206, %18 : vector<32x64xf32>
    %c1_65 = arith.constant 1 : index
    %c0_66 = arith.constant 0 : index
    %c0_67 = arith.constant 0 : index
    %219 = vector.load %arg6[%c1_65, %c0_66, %c0_67] : memref<2x64x128xbf16, #tpu.memory_space<vmem>>, vector<1x64x128xbf16>
    %220 = vector.shape_cast %219 : vector<1x64x128xbf16> to vector<64x128xbf16>
    %221 = arith.truncf %218 : vector<32x64xf32> to vector<32x64xbf16>
    %cst_68 = arith.constant dense<0.000000e+00> : vector<32x128xf32>
    %222 = tpu.matmul %221, %220, %cst_68 {dimension_numbers = #tpu.dot_dimension_numbers<[1], [0], [0], [1], [0, 0, 1, 1], [], []>} : vector<32x64xbf16>, vector<64x128xbf16>, vector<32x128xf32> -> vector<32x128xf32>
    %223 = vector.broadcast %209 : vector<1x128xf32> to vector<32x128xf32>
    %224 = arith.addf %222, %223 : vector<32x128xf32>
    %c1_69 = arith.constant 1 : index
    %c0_70 = arith.constant 0 : index
    %c0_71 = arith.constant 0 : index
    %225 = vector.load %arg7[%c1_69, %c0_70, %c0_71] : memref<2x64x64xbf16, #tpu.memory_space<vmem>>, vector<1x64x64xbf16>
    %226 = vector.shape_cast %225 : vector<1x64x64xbf16> to vector<64x64xbf16>
    %227 = arith.truncf %206 : vector<32x64xf32> to vector<32x64xbf16>
    %cst_72 = arith.constant dense<0.000000e+00> : vector<32x64xf32>
    %228 = tpu.matmul %227, %226, %cst_72 {dimension_numbers = #tpu.dot_dimension_numbers<[1], [0], [0], [1], [0, 0, 1, 1], [], []>} : vector<32x64xbf16>, vector<64x64xbf16>, vector<32x64xf32> -> vector<32x64xf32>
    %229 = vector.broadcast %210 : vector<1x64xf32> to vector<32x64xf32>
    %230 = arith.addf %228, %229 : vector<32x64xf32>
    %231 = vector.extract_strided_slice %224 {offsets = [0, 0], sizes = [32, 16], strides = [1, 1]} : vector<32x128xf32> to vector<32x16xf32>
    %232 = vector.shape_cast %231 : vector<32x16xf32> to vector<2x16x16xf32>
    %233 = arith.truncf %232 : vector<2x16x16xf32> to vector<2x16x16xbf16>
    %234 = vector.extract_strided_slice %224 {offsets = [0, 64], sizes = [32, 16], strides = [1, 1]} : vector<32x128xf32> to vector<32x16xf32>
    %235 = vector.shape_cast %234 : vector<32x16xf32> to vector<2x16x16xf32>
    %236 = arith.truncf %235 : vector<2x16x16xf32> to vector<2x16x16xbf16>
    %237 = vector.extract_strided_slice %230 {offsets = [0, 0], sizes = [32, 16], strides = [1, 1]} : vector<32x64xf32> to vector<32x16xf32>
    %238 = vector.shape_cast %237 : vector<32x16xf32> to vector<2x16x16xf32>
    %239 = arith.truncf %238 : vector<2x16x16xf32> to vector<2x16x16xbf16>
    "tpu.trace_start"() <{level = 10 : i32, message = "bld,bmd->blm"}> : () -> ()
    %cst_73 = arith.constant dense<0.000000e+00> : vector<2x16x16xf32>
    %240 = tpu.matmul %233, %236, %cst_73 {dimension_numbers = #tpu.dot_dimension_numbers<[2], [2], [1], [1], [0, 0, 0, 1, 1, 1], [0], [0]>} : vector<2x16x16xbf16>, vector<2x16x16xbf16>, vector<2x16x16xf32> -> vector<2x16x16xf32>
    "tpu.trace_stop"() : () -> ()
    %241 = arith.addf %240, %19 : vector<2x16x16xf32>
    %cst_74 = arith.constant dense<0xFF800000> : vector<2x16xf32>
    %242 = vector.multi_reduction <maximumf>, %241, %cst_74 [2] : vector<2x16x16xf32> to vector<2x16xf32>
    %243 = vector.shape_cast %242 : vector<2x16xf32> to vector<2x16x1xf32>
    %244 = vector.broadcast %243 : vector<2x16x1xf32> to vector<2x16x16xf32>
    %245 = arith.subf %241, %244 : vector<2x16x16xf32>
    %246 = math.exp %245 : vector<2x16x16xf32>
    %cst_75 = arith.constant dense<0.000000e+00> : vector<2x16xf32>
    %247 = vector.multi_reduction <add>, %246, %cst_75 [2] : vector<2x16x16xf32> to vector<2x16xf32>
    %248 = vector.shape_cast %247 : vector<2x16xf32> to vector<2x16x1xf32>
    %249 = tpu.reciprocal %248 {approx = true} : vector<2x16x1xf32> -> vector<2x16x1xf32>
    %250 = vector.broadcast %249 : vector<2x16x1xf32> to vector<2x16x16xf32>
    %251 = arith.mulf %246, %250 : vector<2x16x16xf32>
    %252 = arith.truncf %251 : vector<2x16x16xf32> to vector<2x16x16xbf16>
    "tpu.trace_start"() <{level = 10 : i32, message = "blm,bmd->bld"}> : () -> ()
    %cst_76 = arith.constant dense<0.000000e+00> : vector<2x16x16xf32>
    %253 = tpu.matmul %252, %239, %cst_76 {dimension_numbers = #tpu.dot_dimension_numbers<[2], [1], [1], [2], [0, 0, 0, 1, 1, 2], [0], [0]>} : vector<2x16x16xbf16>, vector<2x16x16xbf16>, vector<2x16x16xf32> -> vector<2x16x16xf32>
    "tpu.trace_stop"() : () -> ()
    %254 = vector.shape_cast %253 : vector<2x16x16xf32> to vector<32x16xf32>
    %255 = vector.extract_strided_slice %224 {offsets = [0, 16], sizes = [32, 16], strides = [1, 1]} : vector<32x128xf32> to vector<32x16xf32>
    %256 = vector.shape_cast %255 : vector<32x16xf32> to vector<2x16x16xf32>
    %257 = arith.truncf %256 : vector<2x16x16xf32> to vector<2x16x16xbf16>
    %258 = vector.extract_strided_slice %224 {offsets = [0, 80], sizes = [32, 16], strides = [1, 1]} : vector<32x128xf32> to vector<32x16xf32>
    %259 = vector.shape_cast %258 : vector<32x16xf32> to vector<2x16x16xf32>
    %260 = arith.truncf %259 : vector<2x16x16xf32> to vector<2x16x16xbf16>
    %261 = vector.extract_strided_slice %230 {offsets = [0, 16], sizes = [32, 16], strides = [1, 1]} : vector<32x64xf32> to vector<32x16xf32>
    %262 = vector.shape_cast %261 : vector<32x16xf32> to vector<2x16x16xf32>
    %263 = arith.truncf %262 : vector<2x16x16xf32> to vector<2x16x16xbf16>
    "tpu.trace_start"() <{level = 10 : i32, message = "bld,bmd->blm"}> : () -> ()
    %cst_77 = arith.constant dense<0.000000e+00> : vector<2x16x16xf32>
    %264 = tpu.matmul %257, %260, %cst_77 {dimension_numbers = #tpu.dot_dimension_numbers<[2], [2], [1], [1], [0, 0, 0, 1, 1, 1], [0], [0]>} : vector<2x16x16xbf16>, vector<2x16x16xbf16>, vector<2x16x16xf32> -> vector<2x16x16xf32>
    "tpu.trace_stop"() : () -> ()
    %265 = arith.addf %264, %19 : vector<2x16x16xf32>
    %cst_78 = arith.constant dense<0xFF800000> : vector<2x16xf32>
    %266 = vector.multi_reduction <maximumf>, %265, %cst_78 [2] : vector<2x16x16xf32> to vector<2x16xf32>
    %267 = vector.shape_cast %266 : vector<2x16xf32> to vector<2x16x1xf32>
    %268 = vector.broadcast %267 : vector<2x16x1xf32> to vector<2x16x16xf32>
    %269 = arith.subf %265, %268 : vector<2x16x16xf32>
    %270 = math.exp %269 : vector<2x16x16xf32>
    %cst_79 = arith.constant dense<0.000000e+00> : vector<2x16xf32>
    %271 = vector.multi_reduction <add>, %270, %cst_79 [2] : vector<2x16x16xf32> to vector<2x16xf32>
    %272 = vector.shape_cast %271 : vector<2x16xf32> to vector<2x16x1xf32>
    %273 = tpu.reciprocal %272 {approx = true} : vector<2x16x1xf32> -> vector<2x16x1xf32>
    %274 = vector.broadcast %273 : vector<2x16x1xf32> to vector<2x16x16xf32>
    %275 = arith.mulf %270, %274 : vector<2x16x16xf32>
    %276 = arith.truncf %275 : vector<2x16x16xf32> to vector<2x16x16xbf16>
    "tpu.trace_start"() <{level = 10 : i32, message = "blm,bmd->bld"}> : () -> ()
    %cst_80 = arith.constant dense<0.000000e+00> : vector<2x16x16xf32>
    %277 = tpu.matmul %276, %263, %cst_80 {dimension_numbers = #tpu.dot_dimension_numbers<[2], [1], [1], [2], [0, 0, 0, 1, 1, 2], [0], [0]>} : vector<2x16x16xbf16>, vector<2x16x16xbf16>, vector<2x16x16xf32> -> vector<2x16x16xf32>
    "tpu.trace_stop"() : () -> ()
    %278 = vector.shape_cast %277 : vector<2x16x16xf32> to vector<32x16xf32>
    %279 = vector.extract_strided_slice %224 {offsets = [0, 32], sizes = [32, 16], strides = [1, 1]} : vector<32x128xf32> to vector<32x16xf32>
    %280 = vector.shape_cast %279 : vector<32x16xf32> to vector<2x16x16xf32>
    %281 = arith.truncf %280 : vector<2x16x16xf32> to vector<2x16x16xbf16>
    %282 = vector.extract_strided_slice %224 {offsets = [0, 96], sizes = [32, 16], strides = [1, 1]} : vector<32x128xf32> to vector<32x16xf32>
    %283 = vector.shape_cast %282 : vector<32x16xf32> to vector<2x16x16xf32>
    %284 = arith.truncf %283 : vector<2x16x16xf32> to vector<2x16x16xbf16>
    %285 = vector.extract_strided_slice %230 {offsets = [0, 32], sizes = [32, 16], strides = [1, 1]} : vector<32x64xf32> to vector<32x16xf32>
    %286 = vector.shape_cast %285 : vector<32x16xf32> to vector<2x16x16xf32>
    %287 = arith.truncf %286 : vector<2x16x16xf32> to vector<2x16x16xbf16>
    "tpu.trace_start"() <{level = 10 : i32, message = "bld,bmd->blm"}> : () -> ()
    %cst_81 = arith.constant dense<0.000000e+00> : vector<2x16x16xf32>
    %288 = tpu.matmul %281, %284, %cst_81 {dimension_numbers = #tpu.dot_dimension_numbers<[2], [2], [1], [1], [0, 0, 0, 1, 1, 1], [0], [0]>} : vector<2x16x16xbf16>, vector<2x16x16xbf16>, vector<2x16x16xf32> -> vector<2x16x16xf32>
    "tpu.trace_stop"() : () -> ()
    %289 = arith.addf %288, %19 : vector<2x16x16xf32>
    %cst_82 = arith.constant dense<0xFF800000> : vector<2x16xf32>
    %290 = vector.multi_reduction <maximumf>, %289, %cst_82 [2] : vector<2x16x16xf32> to vector<2x16xf32>
    %291 = vector.shape_cast %290 : vector<2x16xf32> to vector<2x16x1xf32>
    %292 = vector.broadcast %291 : vector<2x16x1xf32> to vector<2x16x16xf32>
    %293 = arith.subf %289, %292 : vector<2x16x16xf32>
    %294 = math.exp %293 : vector<2x16x16xf32>
    %cst_83 = arith.constant dense<0.000000e+00> : vector<2x16xf32>
    %295 = vector.multi_reduction <add>, %294, %cst_83 [2] : vector<2x16x16xf32> to vector<2x16xf32>
    %296 = vector.shape_cast %295 : vector<2x16xf32> to vector<2x16x1xf32>
    %297 = tpu.reciprocal %296 {approx = true} : vector<2x16x1xf32> -> vector<2x16x1xf32>
    %298 = vector.broadcast %297 : vector<2x16x1xf32> to vector<2x16x16xf32>
    %299 = arith.mulf %294, %298 : vector<2x16x16xf32>
    %300 = arith.truncf %299 : vector<2x16x16xf32> to vector<2x16x16xbf16>
    "tpu.trace_start"() <{level = 10 : i32, message = "blm,bmd->bld"}> : () -> ()
    %cst_84 = arith.constant dense<0.000000e+00> : vector<2x16x16xf32>
    %301 = tpu.matmul %300, %287, %cst_84 {dimension_numbers = #tpu.dot_dimension_numbers<[2], [1], [1], [2], [0, 0, 0, 1, 1, 2], [0], [0]>} : vector<2x16x16xbf16>, vector<2x16x16xbf16>, vector<2x16x16xf32> -> vector<2x16x16xf32>
    "tpu.trace_stop"() : () -> ()
    %302 = vector.shape_cast %301 : vector<2x16x16xf32> to vector<32x16xf32>
    %303 = vector.extract_strided_slice %224 {offsets = [0, 48], sizes = [32, 16], strides = [1, 1]} : vector<32x128xf32> to vector<32x16xf32>
    %304 = vector.shape_cast %303 : vector<32x16xf32> to vector<2x16x16xf32>
    %305 = arith.truncf %304 : vector<2x16x16xf32> to vector<2x16x16xbf16>
    %306 = vector.extract_strided_slice %224 {offsets = [0, 112], sizes = [32, 16], strides = [1, 1]} : vector<32x128xf32> to vector<32x16xf32>
    %307 = vector.shape_cast %306 : vector<32x16xf32> to vector<2x16x16xf32>
    %308 = arith.truncf %307 : vector<2x16x16xf32> to vector<2x16x16xbf16>
    %309 = vector.extract_strided_slice %230 {offsets = [0, 48], sizes = [32, 16], strides = [1, 1]} : vector<32x64xf32> to vector<32x16xf32>
    %310 = vector.shape_cast %309 : vector<32x16xf32> to vector<2x16x16xf32>
    %311 = arith.truncf %310 : vector<2x16x16xf32> to vector<2x16x16xbf16>
    "tpu.trace_start"() <{level = 10 : i32, message = "bld,bmd->blm"}> : () -> ()
    %cst_85 = arith.constant dense<0.000000e+00> : vector<2x16x16xf32>
    %312 = tpu.matmul %305, %308, %cst_85 {dimension_numbers = #tpu.dot_dimension_numbers<[2], [2], [1], [1], [0, 0, 0, 1, 1, 1], [0], [0]>} : vector<2x16x16xbf16>, vector<2x16x16xbf16>, vector<2x16x16xf32> -> vector<2x16x16xf32>
    "tpu.trace_stop"() : () -> ()
    %313 = arith.addf %312, %19 : vector<2x16x16xf32>
    %cst_86 = arith.constant dense<0xFF800000> : vector<2x16xf32>
    %314 = vector.multi_reduction <maximumf>, %313, %cst_86 [2] : vector<2x16x16xf32> to vector<2x16xf32>
    %315 = vector.shape_cast %314 : vector<2x16xf32> to vector<2x16x1xf32>
    %316 = vector.broadcast %315 : vector<2x16x1xf32> to vector<2x16x16xf32>
    %317 = arith.subf %313, %316 : vector<2x16x16xf32>
    %318 = math.exp %317 : vector<2x16x16xf32>
    %cst_87 = arith.constant dense<0.000000e+00> : vector<2x16xf32>
    %319 = vector.multi_reduction <add>, %318, %cst_87 [2] : vector<2x16x16xf32> to vector<2x16xf32>
    %320 = vector.shape_cast %319 : vector<2x16xf32> to vector<2x16x1xf32>
    %321 = tpu.reciprocal %320 {approx = true} : vector<2x16x1xf32> -> vector<2x16x1xf32>
    %322 = vector.broadcast %321 : vector<2x16x1xf32> to vector<2x16x16xf32>
    %323 = arith.mulf %318, %322 : vector<2x16x16xf32>
    %324 = arith.truncf %323 : vector<2x16x16xf32> to vector<2x16x16xbf16>
    "tpu.trace_start"() <{level = 10 : i32, message = "blm,bmd->bld"}> : () -> ()
    %cst_88 = arith.constant dense<0.000000e+00> : vector<2x16x16xf32>
    %325 = tpu.matmul %324, %311, %cst_88 {dimension_numbers = #tpu.dot_dimension_numbers<[2], [1], [1], [2], [0, 0, 0, 1, 1, 2], [0], [0]>} : vector<2x16x16xbf16>, vector<2x16x16xbf16>, vector<2x16x16xf32> -> vector<2x16x16xf32>
    "tpu.trace_stop"() : () -> ()
    %326 = vector.shape_cast %325 : vector<2x16x16xf32> to vector<32x16xf32>
    %327 = tpu.concatenate %254, %278, %302, %326 in 1 : vector<32x16xf32>, vector<32x16xf32>, vector<32x16xf32>, vector<32x16xf32> -> vector<32x64xf32>
    %c1_89 = arith.constant 1 : index
    %c0_90 = arith.constant 0 : index
    %c0_91 = arith.constant 0 : index
    %328 = vector.load %arg8[%c1_89, %c0_90, %c0_91] : memref<2x64x64xbf16, #tpu.memory_space<vmem>>, vector<1x64x64xbf16>
    %329 = vector.shape_cast %328 : vector<1x64x64xbf16> to vector<64x64xbf16>
    %330 = arith.truncf %327 : vector<32x64xf32> to vector<32x64xbf16>
    %cst_92 = arith.constant dense<0.000000e+00> : vector<32x64xf32>
    %331 = tpu.matmul %330, %329, %cst_92 {dimension_numbers = #tpu.dot_dimension_numbers<[1], [0], [0], [1], [0, 0, 1, 1], [], []>} : vector<32x64xbf16>, vector<64x64xbf16>, vector<32x64xf32> -> vector<32x64xf32>
    %332 = vector.broadcast %211 : vector<1x64xf32> to vector<32x64xf32>
    %333 = arith.addf %331, %332 : vector<32x64xf32>
    %334 = arith.addf %206, %333 : vector<32x64xf32>
    %cst_93 = arith.constant dense<0.000000e+00> : vector<32xf32>
    %335 = vector.multi_reduction <add>, %334, %cst_93 [1] : vector<32x64xf32> to vector<32xf32>
    %336 = vector.shape_cast %335 : vector<32xf32> to vector<32x1xf32>
    %cst_94 = arith.constant 6.400000e+01 : f32
    %337 = vector.broadcast %cst_94 : f32 to vector<32x1xf32>
    %338 = arith.divf %336, %337 : vector<32x1xf32>
    %339 = vector.broadcast %338 : vector<32x1xf32> to vector<32x64xf32>
    %340 = arith.subf %334, %339 : vector<32x64xf32>
    %341 = arith.mulf %340, %340 : vector<32x64xf32>
    %cst_95 = arith.constant dense<0.000000e+00> : vector<32xf32>
    %342 = vector.multi_reduction <add>, %341, %cst_95 [1] : vector<32x64xf32> to vector<32xf32>
    %343 = vector.shape_cast %342 : vector<32xf32> to vector<32x1xf32>
    %cst_96 = arith.constant 6.400000e+01 : f32
    %344 = vector.broadcast %cst_96 : f32 to vector<32x1xf32>
    %345 = arith.divf %343, %344 : vector<32x1xf32>
    %346 = vector.broadcast %338 : vector<32x1xf32> to vector<32x64xf32>
    %347 = arith.subf %334, %346 : vector<32x64xf32>
    %cst_97 = arith.constant 9.99999974E-6 : f32
    %348 = vector.broadcast %cst_97 : f32 to vector<32x1xf32>
    %349 = arith.addf %345, %348 : vector<32x1xf32>
    %350 = math.rsqrt %349 : vector<32x1xf32>
    %351 = vector.broadcast %350 : vector<32x1xf32> to vector<32x64xf32>
    %352 = arith.mulf %347, %351 : vector<32x64xf32>
    %353 = vector.broadcast %214 : vector<1x64xf32> to vector<32x64xf32>
    %354 = arith.mulf %352, %353 : vector<32x64xf32>
    %355 = vector.broadcast %215 : vector<1x64xf32> to vector<32x64xf32>
    %356 = arith.addf %354, %355 : vector<32x64xf32>
    %c1_98 = arith.constant 1 : index
    %c0_99 = arith.constant 0 : index
    %c0_100 = arith.constant 0 : index
    %357 = vector.load %arg9[%c1_98, %c0_99, %c0_100] : memref<2x64x128xbf16, #tpu.memory_space<vmem>>, vector<1x64x128xbf16>
    %358 = vector.shape_cast %357 : vector<1x64x128xbf16> to vector<64x128xbf16>
    %359 = arith.truncf %356 : vector<32x64xf32> to vector<32x64xbf16>
    %cst_101 = arith.constant dense<0.000000e+00> : vector<32x128xf32>
    %360 = tpu.matmul %359, %358, %cst_101 {dimension_numbers = #tpu.dot_dimension_numbers<[1], [0], [0], [1], [0, 0, 1, 1], [], []>} : vector<32x64xbf16>, vector<64x128xbf16>, vector<32x128xf32> -> vector<32x128xf32>
    %361 = vector.broadcast %212 : vector<1x128xf32> to vector<32x128xf32>
    %362 = arith.addf %360, %361 : vector<32x128xf32>
    %cst_102 = arith.constant 0.000000e+00 : f32
    %363 = vector.broadcast %cst_102 : f32 to vector<32x128xf32>
    %364 = arith.maximumf %362, %363 : vector<32x128xf32>
    %c1_103 = arith.constant 1 : index
    %c0_104 = arith.constant 0 : index
    %c0_105 = arith.constant 0 : index
    %365 = vector.load %arg10[%c1_103, %c0_104, %c0_105] : memref<2x128x64xbf16, #tpu.memory_space<vmem>>, vector<1x128x64xbf16>
    %366 = vector.shape_cast %365 : vector<1x128x64xbf16> to vector<128x64xbf16>
    %367 = arith.truncf %364 : vector<32x128xf32> to vector<32x128xbf16>
    %cst_106 = arith.constant dense<0.000000e+00> : vector<32x64xf32>
    %368 = tpu.matmul %367, %366, %cst_106 {dimension_numbers = #tpu.dot_dimension_numbers<[1], [0], [0], [1], [0, 0, 1, 1], [], []>} : vector<32x128xbf16>, vector<128x64xbf16>, vector<32x64xf32> -> vector<32x64xf32>
    %369 = vector.broadcast %213 : vector<1x64xf32> to vector<32x64xf32>
    %370 = arith.addf %368, %369 : vector<32x64xf32>
    %371 = arith.addf %356, %370 : vector<32x64xf32>
    %cst_107 = arith.constant dense<0.000000e+00> : vector<32xf32>
    %372 = vector.multi_reduction <add>, %371, %cst_107 [1] : vector<32x64xf32> to vector<32xf32>
    %373 = vector.shape_cast %372 : vector<32xf32> to vector<32x1xf32>
    %cst_108 = arith.constant 6.400000e+01 : f32
    %374 = vector.broadcast %cst_108 : f32 to vector<32x1xf32>
    %375 = arith.divf %373, %374 : vector<32x1xf32>
    %376 = vector.broadcast %375 : vector<32x1xf32> to vector<32x64xf32>
    %377 = arith.subf %371, %376 : vector<32x64xf32>
    %378 = arith.mulf %377, %377 : vector<32x64xf32>
    %cst_109 = arith.constant dense<0.000000e+00> : vector<32xf32>
    %379 = vector.multi_reduction <add>, %378, %cst_109 [1] : vector<32x64xf32> to vector<32xf32>
    %380 = vector.shape_cast %379 : vector<32xf32> to vector<32x1xf32>
    %cst_110 = arith.constant 6.400000e+01 : f32
    %381 = vector.broadcast %cst_110 : f32 to vector<32x1xf32>
    %382 = arith.divf %380, %381 : vector<32x1xf32>
    %383 = vector.broadcast %375 : vector<32x1xf32> to vector<32x64xf32>
    %384 = arith.subf %371, %383 : vector<32x64xf32>
    %cst_111 = arith.constant 9.99999974E-6 : f32
    %385 = vector.broadcast %cst_111 : f32 to vector<32x1xf32>
    %386 = arith.addf %382, %385 : vector<32x1xf32>
    %387 = math.rsqrt %386 : vector<32x1xf32>
    %388 = vector.broadcast %387 : vector<32x1xf32> to vector<32x64xf32>
    %389 = arith.mulf %384, %388 : vector<32x64xf32>
    %390 = vector.broadcast %216 : vector<1x64xf32> to vector<32x64xf32>
    %391 = arith.mulf %389, %390 : vector<32x64xf32>
    %392 = vector.broadcast %217 : vector<1x64xf32> to vector<32x64xf32>
    %393 = arith.addf %391, %392 : vector<32x64xf32>
    %394 = vector.shape_cast %393 : vector<32x64xf32> to vector<2x16x64xf32>
    %395 = vector.extract_strided_slice %394 {offsets = [0, 1, 0], sizes = [2, 1, 64], strides = [1, 1, 1]} : vector<2x16x64xf32> to vector<2x1x64xf32>
    %396 = vector.shape_cast %395 : vector<2x1x64xf32> to vector<2x64xf32>
    %c0_112 = arith.constant 0 : index
    %c0_113 = arith.constant 0 : index
    %397 = vector.load %arg12[%c0_112, %c0_113] : memref<64x128xbf16, #tpu.memory_space<vmem>>, vector<64x128xbf16>
    %398 = arith.truncf %396 : vector<2x64xf32> to vector<2x64xbf16>
    %cst_114 = arith.constant dense<0.000000e+00> : vector<2x128xf32>
    %399 = tpu.matmul %398, %397, %cst_114 {dimension_numbers = #tpu.dot_dimension_numbers<[1], [0], [0], [1], [0, 0, 1, 1], [], []>} : vector<2x64xbf16>, vector<64x128xbf16>, vector<2x128xf32> -> vector<2x128xf32>
    %400 = vector.broadcast %3 : vector<1x128xf32> to vector<2x128xf32>
    %401 = arith.addf %399, %400 : vector<2x128xf32>
    %c0_115 = arith.constant 0 : index
    %c0_116 = arith.constant 0 : index
    %402 = vector.load %arg13[%c0_115, %c0_116] : memref<2x128xf32, #tpu.memory_space<vmem>>, vector<2x128xf32>
    tpu.vector_store %arg13[%c0_115, %c0_116], %401 {strides = array<i32>} : memref<2x128xf32, #tpu.memory_space<vmem>>, vector<2x128xf32>,
    return
  }
}

</mosaic_0001>

<llo_original>
// kernel: ndt47_forward.1
$region0: #{ndt47_forward.1}
  #allocation0 [shape = 'u32[]', space=smem, size = 0x4, offset = 0x4, fixed_abs, tag = 'smem constant byte address 0x4 - core index']
  #allocation1 [shape = 'u32[72,128]{1,0:T(1,128)}', space=vmem, size = 0x9000, scoped, tag = 'internal scratch']
  %s0 = inlined_call_operand.vmem [shape: bf16[32,32], index: 0, kind: input, shape index: {}]
  %s1 = inlined_call_operand.vmem [shape: f32[32,1], index: 1, kind: input, shape index: {}]
  %s2 = inlined_call_operand.vmem [shape: f32[32,64], index: 2, kind: input, shape index: {}]
  %s3 = inlined_call_operand.vmem [shape: f32[2,16,16], index: 3, kind: input, shape index: {}]
  %s4 = inlined_call_operand.vmem [shape: f32[3,128], index: 4, kind: input, shape index: {}]
  %s5 = inlined_call_operand.vmem [shape: bf16[32,64], index: 5, kind: input, shape index: {}]
  %s6 = inlined_call_operand.vmem [shape: bf16[2,64,128], index: 6, kind: input, shape index: {}]
  %s7 = inlined_call_operand.vmem [shape: bf16[2,64,64], index: 7, kind: input, shape index: {}]
  %s8 = inlined_call_operand.vmem [shape: bf16[2,64,64], index: 8, kind: input, shape index: {}]
  %s9 = inlined_call_operand.vmem [shape: bf16[2,64,128], index: 9, kind: input, shape index: {}]
  %s10 = inlined_call_operand.vmem [shape: bf16[2,128,64], index: 10, kind: input, shape index: {}]
  %s11 = inlined_call_operand.vmem [shape: f32[2,9,128], index: 11, kind: input, shape index: {}]
  %s12 = inlined_call_operand.vmem [shape: bf16[64,128], index: 12, kind: input, shape index: {}]
  %s13 = inlined_call_operand.hbm [shape: f32[2,128], index: 13, kind: output, shape index: {}]
  %s14 = sld [smem:[#allocation0]]
  $region62: #{ndt47_forward.1} parent=0
    _
  %s16 = ssub.s32 1, %s14
  %s17 = scalar_select 0, %s16, %s14
  $region1: #{ndt47_forward.1} parent=0
    #allocation2 [shape = 'u8[1024]{0}', space=vmem, size = 0x400, scoped, tag = 'output window, operand 0, single buffered']
    #allocation3 [shape = 's32[1]{0}', space=sflag, size = 0x4, scoped, tag = 'scoped memory for ndt47_forward.1']
    %18 = vsyncpa [#allocation3], 0
    // Predicated region
    $region2: #{ndt47_forward.1} parent=1 // pred_check
      _
    $region3: #{ndt47_forward.1} parent=1 // pred_check_branch
      %20 = sbr.rel (0) target = $region5
    $region4: #{ndt47_forward.1} parent=1 // pred_region
      _
    $region5: #{ndt47_forward.1} parent=1 // pred_fallthru
      _
    // Predicated region
    $region6: #{ndt47_forward.1} parent=1 // pred_check
      _
    $region7: #{ndt47_forward.1} parent=1 // pred_check_branch
      %22 = sbr.rel (0) target = $region9
    $region8: #{ndt47_forward.1} parent=1 // pred_region
      _
    $region9: #{ndt47_forward.1} parent=1 // pred_fallthru
      _
    // Predicated region
    $region10: #{ndt47_forward.1} parent=1 // pred_check
      _
    $region11: #{ndt47_forward.1} parent=1 // pred_check_branch
      %24 = sbr.rel (0) target = $region13
    $region12: #{ndt47_forward.1} parent=1 // pred_region
      _
    $region13: #{ndt47_forward.1} parent=1 // pred_fallthru
      _
    // Predicated region
    $region14: #{ndt47_forward.1} parent=1 // pred_check
      _
    $region15: #{ndt47_forward.1} parent=1 // pred_check_branch
      %26 = sbr.rel (0) target = $region17
    $region16: #{ndt47_forward.1} parent=1 // pred_region
      _
    $region17: #{ndt47_forward.1} parent=1 // pred_fallthru
      _
    // Predicated region
    $region18: #{ndt47_forward.1} parent=1 // pred_check
      _
    $region19: #{ndt47_forward.1} parent=1 // pred_check_branch
      %28 = sbr.rel (0) target = $region21
    $region20: #{ndt47_forward.1} parent=1 // pred_region
      _
    $region21: #{ndt47_forward.1} parent=1 // pred_fallthru
      _
    // Predicated region
    $region22: #{ndt47_forward.1} parent=1 // pred_check
      _
    $region23: #{ndt47_forward.1} parent=1 // pred_check_branch
      %30 = sbr.rel (0) target = $region25
    $region24: #{ndt47_forward.1} parent=1 // pred_region
      _
    $region25: #{ndt47_forward.1} parent=1 // pred_fallthru
      _
    // Predicated region
    $region26: #{ndt47_forward.1} parent=1 // pred_check
      _
    $region27: #{ndt47_forward.1} parent=1 // pred_check_branch
      %32 = sbr.rel (0) target = $region29
    $region28: #{ndt47_forward.1} parent=1 // pred_region
      _
    $region29: #{ndt47_forward.1} parent=1 // pred_fallthru
      _
    // Predicated region
    $region30: #{ndt47_forward.1} parent=1 // pred_check
      _
    $region31: #{ndt47_forward.1} parent=1 // pred_check_branch
      %34 = sbr.rel (0) target = $region33
    $region32: #{ndt47_forward.1} parent=1 // pred_region
      _
    $region33: #{ndt47_forward.1} parent=1 // pred_fallthru
      _
    // Predicated region
    $region34: #{ndt47_forward.1} parent=1 // pred_check
      _
    $region35: #{ndt47_forward.1} parent=1 // pred_check_branch
      %36 = sbr.rel (0) target = $region37
    $region36: #{ndt47_forward.1} parent=1 // pred_region
      _
    $region37: #{ndt47_forward.1} parent=1 // pred_fallthru
      _
    // Predicated region
    $region38: #{ndt47_forward.1} parent=1 // pred_check
      _
    $region39: #{ndt47_forward.1} parent=1 // pred_check_branch
      %38 = sbr.rel (0) target = $region41
    $region40: #{ndt47_forward.1} parent=1 // pred_region
      _
    $region41: #{ndt47_forward.1} parent=1 // pred_fallthru
      _
    // Predicated region
    $region42: #{ndt47_forward.1} parent=1 // pred_check
      _
    $region43: #{ndt47_forward.1} parent=1 // pred_check_branch
      %40 = sbr.rel (0) target = $region45
    $region44: #{ndt47_forward.1} parent=1 // pred_region
      _
    $region45: #{ndt47_forward.1} parent=1 // pred_fallthru
      _
    // Predicated region
    $region46: #{ndt47_forward.1} parent=1 // pred_check
      _
    $region47: #{ndt47_forward.1} parent=1 // pred_check_branch
      %42 = sbr.rel (0) target = $region49
    $region48: #{ndt47_forward.1} parent=1 // pred_region
      _
    $region49: #{ndt47_forward.1} parent=1 // pred_fallthru
      _
    // Predicated region
    $region50: #{ndt47_forward.1} parent=1 // pred_check
      _
    $region51: #{ndt47_forward.1} parent=1 // pred_check_branch
      %44 = sbr.rel (0) target = $region53
    $region52: #{ndt47_forward.1} parent=1 // pred_region
      _
    $region53: #{ndt47_forward.1} parent=1 // pred_fallthru
      _
    %v46 = vld [vmem:[%s4] sm:$0x7]
    %v47 = vld [vmem:[%s0] sm:$0xf]
    %v48 = vld [vmem:[%s0 + $0x4] sm:$0xf]
    %v49 = vld [vmem:[%s0 + $0x8] sm:$0xf]
    %v50 = vld [vmem:[%s0 + $0xc] sm:$0xf]
    %v51 = vld [vmem:[%s5] sm:$0xf]
    %v52 = vld [vmem:[%s5 + $0x4] sm:$0xf]
    %v53 = vld [vmem:[%s5 + $0x8] sm:$0xf]
    %v54 = vld [vmem:[%s5 + $0xc] sm:$0xf]
    %v55 = vperm.slane %v46, 1
    %v60 = vunpack.c.l.b16 %v47
    %v61 = vunpack.c.l.b16 %v48
    %v62 = vunpack.c.l.b16 %v49
    %v63 = vunpack.c.l.b16 %v50
    %v64 = vpack.c.b16 %v61, %v60
    %v65 = vpack.c.b16 %v63, %v62
    %v70 = vunpack.c.l.b16 %v51
    %v71 = vunpack.c.l.b16 %v52
    %v72 = vunpack.c.l.b16 %v53
    %v73 = vunpack.c.l.b16 %v54
    %v74 = vpack.c.b16 %v71, %v70
    %v75 = vpack.c.b16 %v73, %v72
    %vm78 = vcmask 261120
    %v80 = vsel %vm78, %v64, 0
    %v83 = vsel %vm78, %v65, 0
    %85 = vmatpush.bf16.msra.mxu0 0
    %86 = vmatpush.bf16.msra.mxu0 0
    %87 = vmatpush.bf16.msra.mxu0 0
    %88 = vmatpush.bf16.msra.mxu0 0
    %89 = vmatpush.bf16.msra.mxu0 0
    %90 = vmatpush.bf16.msra.mxu0 0
    %91 = vmatpush.bf16.msra.mxu0 %v75
    %92 = vmatpush.bf16.msra.mxu0 %v74
    %93 = vmatmul.bf16.gmra.mxu0 %v80
    %v94 = vpop.f32.mrf.mxu0
    %v95 = vadd.f32 %v55, %v94
    %v96 = vpop.f32.mrf.mxu0
    %v97 = vadd.f32 %v55, %v96
    %98 = vmatmul.bf16.gmra.mxu0 %v83
    %v99 = vpop.f32.mrf.mxu0
    %v100 = vadd.f32 %v55, %v99
    %v101 = vpop.f32.mrf.mxu0
    %v102 = vadd.f32 %v55, %v101
    %103 = vdwg.mxu0
    %v104 = vld [vmem:[%s1] sm:$0xff]
    %v105 = vld [vmem:[%s1 + $0x8] sm:$0xff]
    %v106 = vld [vmem:[%s1 + $0x10] sm:$0xff]
    %v107 = vld [vmem:[%s1 + $0x18] sm:$0xff]
    %v108 = vsub.f32 1.0, %v104
    %v109 = vsub.f32 1.0, %v105
    %v110 = vsub.f32 1.0, %v106
    %v111 = vsub.f32 1.0, %v107
    %113 = vset.pattern.permute.xlu0 0
    %114 = vperm.xlu0 %113, %v108
    %v115 = vpop.permute.xlu0 %114
    %118 = vset.pattern.permute.xlu0 0
    %119 = vperm.xlu0 %118, %v109
    %v120 = vpop.permute.xlu0 %119
    %123 = vset.pattern.permute.xlu0 0
    %124 = vperm.xlu0 %123, %v110
    %v125 = vpop.permute.xlu0 %124
    %128 = vset.pattern.permute.xlu0 0
    %129 = vperm.xlu0 %128, %v111
    %v130 = vpop.permute.xlu0 %129
    %v132 = vmul.f32 %v95, %v115
    %v133 = vmul.f32 %v97, %v120
    %v134 = vmul.f32 %v100, %v125
    %v135 = vmul.f32 %v102, %v130
    %v136 = vperm.slane %v46, 0
    %138 = vset.pattern.permute.xlu0 0
    %139 = vperm.xlu0 %138, %v104
    %v140 = vpop.permute.xlu0 %139
    %143 = vset.pattern.permute.xlu0 0
    %144 = vperm.xlu0 %143, %v105
    %v145 = vpop.permute.xlu0 %144
    %148 = vset.pattern.permute.xlu0 0
    %149 = vperm.xlu0 %148, %v106
    %v150 = vpop.permute.xlu0 %149
    %153 = vset.pattern.permute.xlu0 0
    %154 = vperm.xlu0 %153, %v107
    %v155 = vpop.permute.xlu0 %154
    %v157 = vmul.f32 %v136, %v140
    %v158 = vmul.f32 %v136, %v145
    %v159 = vmul.f32 %v136, %v150
    %v160 = vmul.f32 %v136, %v155
    %v161 = vadd.f32 %v132, %v157
    %v162 = vadd.f32 %v133, %v158
    %v163 = vadd.f32 %v134, %v159
    %v164 = vadd.f32 %v135, %v160
    %v165 = vld [vmem:[%s2] sm:$0xff]
    %v166 = vld [vmem:[%s2 + $0x8] sm:$0xff]
    %v167 = vld [vmem:[%s2 + $0x10] sm:$0xff]
    %v168 = vld [vmem:[%s2 + $0x18] sm:$0xff]
    %v169 = vld [vmem:[%s3] sm:$0xff]
    %v170 = vld [vmem:[%s3 + $0x8] sm:$0xff]
    %v171 = vld [vmem:[%s3 + $0x10] sm:$0xff]
    %v172 = vld [vmem:[%s3 + $0x18] sm:$0xff]
    %v173 = vld [vmem:[%s11] sm:$0xff]
    %v174 = vld [vmem:[%s11 + $0x8] sm:$0x1]
    %v175 = vadd.f32 %v161, %v165
    %v176 = vadd.f32 %v162, %v166
    %v177 = vadd.f32 %v163, %v167
    %v178 = vadd.f32 %v164, %v168
    %v179 = vld [vmem:[%s6] sm:$0xf]
    %v180 = vld [vmem:[%s6 + $0x4] sm:$0xf]
    %v181 = vld [vmem:[%s6 + $0x8] sm:$0xf]
    %v182 = vld [vmem:[%s6 + $0xc] sm:$0xf]
    %v183 = vld [vmem:[%s6 + $0x10] sm:$0xf]
    %v184 = vld [vmem:[%s6 + $0x14] sm:$0xf]
    %v185 = vld [vmem:[%s6 + $0x18] sm:$0xf]
    %v186 = vld [vmem:[%s6 + $0x1c] sm:$0xf]
    %v187 = vpack.c.bf16 %v176, %v175
    %v188 = vpack.c.bf16 %v178, %v177
    %v189 = vperm.slane %v173, 0
    %v198 = vunpack.c.l.b16 %v179
    %v199 = vunpack.c.l.b16 %v180
    %v200 = vunpack.c.l.b16 %v181
    %v201 = vunpack.c.l.b16 %v182
    %v202 = vunpack.c.l.b16 %v183
    %v203 = vunpack.c.l.b16 %v184
    %v204 = vunpack.c.l.b16 %v185
    %v205 = vunpack.c.l.b16 %v186
    %v206 = vpack.c.b16 %v199, %v198
    %v207 = vpack.c.b16 %v201, %v200
    %v208 = vpack.c.b16 %v203, %v202
    %v209 = vpack.c.b16 %v205, %v204
    %vm214 = vcmask 523264
    %v216 = vsel %vm214, %v187, 0
    %v219 = vsel %vm214, %v188, 0
    %221 = vmatpush.bf16.msra.mxu0 0
    %222 = vmatpush.bf16.msra.mxu0 0
    %223 = vmatpush.bf16.msra.mxu0 0
    %224 = vmatpush.bf16.msra.mxu0 0
    %225 = vmatpush.bf16.msra.mxu0 %v209
    %226 = vmatpush.bf16.msra.mxu0 %v208
    %227 = vmatpush.bf16.msra.mxu0 %v207
    %228 = vmatpush.bf16.msra.mxu0 %v206
    %229 = vmatmul.bf16.gmra.mxu0 %v216
    %v230 = vpop.f32.mrf.mxu0
    %v231 = vadd.f32 %v189, %v230
    %v232 = vpop.f32.mrf.mxu0
    %v233 = vadd.f32 %v189, %v232
    %234 = vmatmul.bf16.gmra.mxu0 %v219
    %v235 = vpop.f32.mrf.mxu0
    %v236 = vadd.f32 %v189, %v235
    %v237 = vpop.f32.mrf.mxu0
    %v238 = vadd.f32 %v189, %v237
    %239 = vdwg.mxu0
    %v240 = vld [vmem:[%s7] sm:$0xf]
    %v241 = vld [vmem:[%s7 + $0x4] sm:$0xf]
    %v242 = vld [vmem:[%s7 + $0x8] sm:$0xf]
    %v243 = vld [vmem:[%s7 + $0xc] sm:$0xf]
    %v244 = vld [vmem:[%s7 + $0x10] sm:$0xf]
    %v245 = vld [vmem:[%s7 + $0x14] sm:$0xf]
    %v246 = vld [vmem:[%s7 + $0x18] sm:$0xf]
    %v247 = vld [vmem:[%s7 + $0x1c] sm:$0xf]
    %v248 = vpack.c.bf16 %v162, %v161
    %v249 = vpack.c.bf16 %v164, %v163
    %v250 = vperm.slane %v173, 1
    %v259 = vunpack.c.l.b16 %v240
    %v260 = vunpack.c.l.b16 %v241
    %v261 = vunpack.c.l.b16 %v242
    %v262 = vunpack.c.l.b16 %v243
    %v263 = vunpack.c.l.b16 %v244
    %v264 = vunpack.c.l.b16 %v245
    %v265 = vunpack.c.l.b16 %v246
    %v266 = vunpack.c.l.b16 %v247
    %v267 = vpack.c.b16 %v260, %v259
    %v268 = vpack.c.b16 %v262, %v261
    %v269 = vpack.c.b16 %v264, %v263
    %v270 = vpack.c.b16 %v266, %v265
    %v276 = vsel %vm214, %v248, 0
    %v279 = vsel %vm214, %v249, 0
    %281 = vmatpush.bf16.msra.mxu0 0
    %282 = vmatpush.bf16.msra.mxu0 0
    %283 = vmatpush.bf16.msra.mxu0 0
    %284 = vmatpush.bf16.msra.mxu0 0
    %285 = vmatpush.bf16.msra.mxu0 %v270
    %286 = vmatpush.bf16.msra.mxu0 %v269
    %287 = vmatpush.bf16.msra.mxu0 %v268
    %288 = vmatpush.bf16.msra.mxu0 %v267
    %289 = vmatmul.bf16.gmra.mxu0 %v276
    %v290 = vpop.f32.mrf.mxu0
    %v291 = vadd.f32 %v250, %v290
    %v292 = vpop.f32.mrf.mxu0
    %v293 = vadd.f32 %v250, %v292
    %294 = vmatmul.bf16.gmra.mxu0 %v279
    %v295 = vpop.f32.mrf.mxu0
    %v296 = vadd.f32 %v250, %v295
    %v297 = vpop.f32.mrf.mxu0
    %v298 = vadd.f32 %v250, %v297
    %299 = vdwg.mxu0
    %v300 = vpack.c.bf16 %v231, %v231
    %v301 = vpack.c.bf16 %v233, %v233
    %v302 = vpack.c.bf16 %v236, %v236
    %v303 = vpack.c.bf16 %v238, %v238
    %v304 = vpack.c.bf16 %v291, %v291
    %v305 = vpack.c.bf16 %v293, %v293
    %v306 = vpack.c.bf16 %v296, %v296
    %v307 = vpack.c.bf16 %v298, %v298
    %v310 = vunpack.c.l.b16 %v300
    %v311 = vunpack.c.l.b16 %v301
    %v312 = vpack.c.b16 %v311, %v310
    %313 = vrot.lane.b32.xlu0 %v312, 64
    %v314 = vpop.permute.xlu0 %313
    %vm315 = vcmask 130048
    %v317 = vsel %vm315, %v312, 0
    %v320 = vsel %vm315, %v314, 0
    %322 = vmatpush.bf16.xpose.msra.mxu0 0
    %323 = vmatpush.bf16.xpose.msra.mxu0 0
    %324 = vmatpush.bf16.xpose.msra.mxu0 0
    %325 = vmatpush.bf16.xpose.msra.mxu0 0
    %326 = vmatpush.bf16.xpose.msra.mxu0 0
    %327 = vmatpush.bf16.xpose.msra.mxu0 0
    %328 = vmatpush.bf16.xpose.msra.mxu0 0
    %329 = vmatpush.bf16.xpose.msra.mxu0 %v320
    %330 = vmatmul.bf16.gmra.mxu0 %v317
    %v331 = vpop.f32.mrf.mxu0
    %v332 = vadd.f32 %v169, %v331
    %v333 = vpop.f32.mrf.mxu0
    %v334 = vadd.f32 %v170, %v333
    %335 = vdwg.mxu0
    %v338 = vunpack.c.l.b16 %v302
    %v339 = vunpack.c.l.b16 %v303
    %v340 = vpack.c.b16 %v339, %v338
    %341 = vrot.lane.b32.xlu0 %v340, 64
    %v342 = vpop.permute.xlu0 %341
    %v344 = vsel %vm315, %v340, 0
    %v347 = vsel %vm315, %v342, 0
    %349 = vmatpush.bf16.xpose.msra.mxu0 0
    %350 = vmatpush.bf16.xpose.msra.mxu0 0
    %351 = vmatpush.bf16.xpose.msra.mxu0 0
    %352 = vmatpush.bf16.xpose.msra.mxu0 0
    %353 = vmatpush.bf16.xpose.msra.mxu0 0
    %354 = vmatpush.bf16.xpose.msra.mxu0 0
    %355 = vmatpush.bf16.xpose.msra.mxu0 0
    %356 = vmatpush.bf16.xpose.msra.mxu0 %v347
    %357 = vmatmul.bf16.gmra.mxu0 %v344
    %v358 = vpop.f32.mrf.mxu0
    %v359 = vadd.f32 %v171, %v358
    %v360 = vpop.f32.mrf.mxu0
    %v361 = vadd.f32 %v172, %v360
    %362 = vdwg.mxu0
    %v363 = vsel %vm315, %v332, -inf
    %364 = vmax.xlane.f32.xlu0 %v363
    %v365 = vpop.xlane.xlu0 %364
    %v366 = vsel %vm315, %v334, -inf
    %367 = vmax.xlane.f32.xlu0 %v366
    %v368 = vpop.xlane.xlu0 %367
    %v369 = vsel %vm315, %v359, -inf
    %370 = vmax.xlane.f32.xlu0 %v369
    %v371 = vpop.xlane.xlu0 %370
    %v372 = vsel %vm315, %v361, -inf
    %373 = vmax.xlane.f32.xlu0 %v372
    %v374 = vpop.xlane.xlu0 %373
    %v375 = vsub.f32 %v332, %v365
    %v376 = vsub.f32 %v334, %v368
    %v377 = vsub.f32 %v359, %v371
    %v378 = vsub.f32 %v361, %v374
    %v379 = vmul.f32 %v375, 1.442695
    %v380 = vpow.pop %v379
    %v381 = vmul.f32 %v376, 1.442695
    %v382 = vpow.pop %v381
    %v383 = vmul.f32 %v377, 1.442695
    %v384 = vpow.pop %v383
    %v385 = vmul.f32 %v378, 1.442695
    %v386 = vpow.pop %v385
    %v387 = vsel %vm315, %v380, 0.0
    %388 = vadd.xlane.f32.xlu0 %v387
    %v389 = vpop.xlane.xlu0 %388
    %v390 = vsel %vm315, %v382, 0.0
    %391 = vadd.xlane.f32.xlu0 %v390
    %v392 = vpop.xlane.xlu0 %391
    %v393 = vsel %vm315, %v384, 0.0
    %394 = vadd.xlane.f32.xlu0 %v393
    %v395 = vpop.xlane.xlu0 %394
    %v396 = vsel %vm315, %v386, 0.0
    %397 = vadd.xlane.f32.xlu0 %v396
    %v398 = vpop.xlane.xlu0 %397
    %v399 = vrcp.pop %v389
    %v400 = vrcp.pop %v392
    %v401 = vrcp.pop %v395
    %v402 = vrcp.pop %v398
    %v403 = vmul.f32 %v380, %v399
    %v404 = vmul.f32 %v382, %v400
    %v405 = vmul.f32 %v384, %v401
    %v406 = vmul.f32 %v386, %v402
    %v407 = vpack.c.bf16 %v403, %v403
    %v408 = vpack.c.bf16 %v404, %v404
    %v409 = vpack.c.bf16 %v405, %v405
    %v410 = vpack.c.bf16 %v406, %v406
    %v413 = vunpack.c.l.b16 %v407
    %v414 = vunpack.c.l.b16 %v408
    %v415 = vpack.c.b16 %v414, %v413
    %v418 = vunpack.c.l.b16 %v304
    %v419 = vunpack.c.l.b16 %v305
    %v420 = vpack.c.b16 %v419, %v418
    %v423 = vsel %vm315, %v415, 0
    %425 = vmatpush.bf16.msra.mxu0 0
    %426 = vmatpush.bf16.msra.mxu0 0
    %427 = vmatpush.bf16.msra.mxu0 0
    %428 = vmatpush.bf16.msra.mxu0 0
    %429 = vmatpush.bf16.msra.mxu0 0
    %430 = vmatpush.bf16.msra.mxu0 0
    %431 = vmatpush.bf16.msra.mxu0 0
    %432 = vmatpush.bf16.msra.mxu0 %v420
    %433 = vmatmul.bf16.gmra.mxu0 %v423
    %v434 = vpop.f32.mrf.mxu0
    %v435 = vadd.f32 0.0, %v434
    %v436 = vpop.f32.mrf.mxu0
    %v437 = vadd.f32 0.0, %v436
    %438 = vdwg.mxu0
    %v441 = vunpack.c.l.b16 %v409
    %v442 = vunpack.c.l.b16 %v410
    %v443 = vpack.c.b16 %v442, %v441
    %v446 = vunpack.c.l.b16 %v306
    %v447 = vunpack.c.l.b16 %v307
    %v448 = vpack.c.b16 %v447, %v446
    %v451 = vsel %vm315, %v443, 0
    %453 = vmatpush.bf16.msra.mxu0 0
    %454 = vmatpush.bf16.msra.mxu0 0
    %455 = vmatpush.bf16.msra.mxu0 0
    %456 = vmatpush.bf16.msra.mxu0 0
    %457 = vmatpush.bf16.msra.mxu0 0
    %458 = vmatpush.bf16.msra.mxu0 0
    %459 = vmatpush.bf16.msra.mxu0 0
    %460 = vmatpush.bf16.msra.mxu0 %v448
    %461 = vmatmul.bf16.gmra.mxu0 %v451
    %v462 = vpop.f32.mrf.mxu0
    %v463 = vadd.f32 0.0, %v462
    %v464 = vpop.f32.mrf.mxu0
    %v465 = vadd.f32 0.0, %v464
    %466 = vdwg.mxu0
    %467 = vrot.lane.b32.xlu0 %v312, 112
    %v468 = vpop.permute.xlu0 %467
    %469 = vrot.lane.b32.xlu0 %v312, 48
    %v470 = vpop.permute.xlu0 %469
    %v472 = vsel %vm315, %v468, 0
    %v475 = vsel %vm315, %v470, 0
    %477 = vmatpush.bf16.xpose.msra.mxu0 0
    %478 = vmatpush.bf16.xpose.msra.mxu0 0
    %479 = vmatpush.bf16.xpose.msra.mxu0 0
    %480 = vmatpush.bf16.xpose.msra.mxu0 0
    %481 = vmatpush.bf16.xpose.msra.mxu0 0
    %482 = vmatpush.bf16.xpose.msra.mxu0 0
    %483 = vmatpush.bf16.xpose.msra.mxu0 0
    %484 = vmatpush.bf16.xpose.msra.mxu0 %v475
    %485 = vmatmul.bf16.gmra.mxu0 %v472
    %v486 = vpop.f32.mrf.mxu0
    %v487 = vadd.f32 %v169, %v486
    %v488 = vpop.f32.mrf.mxu0
    %v489 = vadd.f32 %v170, %v488
    %490 = vdwg.mxu0
    %491 = vrot.lane.b32.xlu0 %v340, 112
    %v492 = vpop.permute.xlu0 %491
    %493 = vrot.lane.b32.xlu0 %v340, 48
    %v494 = vpop.permute.xlu0 %493
    %v496 = vsel %vm315, %v492, 0
    %v499 = vsel %vm315, %v494, 0
    %501 = vmatpush.bf16.xpose.msra.mxu0 0
    %502 = vmatpush.bf16.xpose.msra.mxu0 0
    %503 = vmatpush.bf16.xpose.msra.mxu0 0
    %504 = vmatpush.bf16.xpose.msra.mxu0 0
    %505 = vmatpush.bf16.xpose.msra.mxu0 0
    %506 = vmatpush.bf16.xpose.msra.mxu0 0
    %507 = vmatpush.bf16.xpose.msra.mxu0 0
    %508 = vmatpush.bf16.xpose.msra.mxu0 %v499
    %509 = vmatmul.bf16.gmra.mxu0 %v496
    %v510 = vpop.f32.mrf.mxu0
    %v511 = vadd.f32 %v171, %v510
    %v512 = vpop.f32.mrf.mxu0
    %v513 = vadd.f32 %v172, %v512
    %514 = vdwg.mxu0
    %v515 = vsel %vm315, %v487, -inf
    %516 = vmax.xlane.f32.xlu0 %v515
    %v517 = vpop.xlane.xlu0 %516
    %v518 = vsel %vm315, %v489, -inf
    %519 = vmax.xlane.f32.xlu0 %v518
    %v520 = vpop.xlane.xlu0 %519
    %v521 = vsel %vm315, %v511, -inf
    %522 = vmax.xlane.f32.xlu0 %v521
    %v523 = vpop.xlane.xlu0 %522
    %v524 = vsel %vm315, %v513, -inf
    %525 = vmax.xlane.f32.xlu0 %v524
    %v526 = vpop.xlane.xlu0 %525
    %v527 = vsub.f32 %v487, %v517
    %v528 = vsub.f32 %v489, %v520
    %v529 = vsub.f32 %v511, %v523
    %v530 = vsub.f32 %v513, %v526
    %v531 = vmul.f32 %v527, 1.442695
    %v532 = vpow.pop %v531
    %v533 = vmul.f32 %v528, 1.442695
    %v534 = vpow.pop %v533
    %v535 = vmul.f32 %v529, 1.442695
    %v536 = vpow.pop %v535
    %v537 = vmul.f32 %v530, 1.442695
    %v538 = vpow.pop %v537
    %v539 = vsel %vm315, %v532, 0.0
    %540 = vadd.xlane.f32.xlu0 %v539
    %v541 = vpop.xlane.xlu0 %540
    %v542 = vsel %vm315, %v534, 0.0
    %543 = vadd.xlane.f32.xlu0 %v542
    %v544 = vpop.xlane.xlu0 %543
    %v545 = vsel %vm315, %v536, 0.0
    %546 = vadd.xlane.f32.xlu0 %v545
    %v547 = vpop.xlane.xlu0 %546
    %v548 = vsel %vm315, %v538, 0.0
    %549 = vadd.xlane.f32.xlu0 %v548
    %v550 = vpop.xlane.xlu0 %549
    %v551 = vrcp.pop %v541
    %v552 = vrcp.pop %v544
    %v553 = vrcp.pop %v547
    %v554 = vrcp.pop %v550
    %v555 = vmul.f32 %v532, %v551
    %v556 = vmul.f32 %v534, %v552
    %v557 = vmul.f32 %v536, %v553
    %v558 = vmul.f32 %v538, %v554
    %v559 = vpack.c.bf16 %v555, %v555
    %v560 = vpack.c.bf16 %v556, %v556
    %v561 = vpack.c.bf16 %v557, %v557
    %v562 = vpack.c.bf16 %v558, %v558
    %v565 = vunpack.c.l.b16 %v559
    %v566 = vunpack.c.l.b16 %v560
    %v567 = vpack.c.b16 %v566, %v565
    %568 = vrot.lane.b32.xlu0 %v420, 112
    %v569 = vpop.permute.xlu0 %568
    %v572 = vsel %vm315, %v567, 0
    %574 = vmatpush.bf16.msra.mxu0 0
    %575 = vmatpush.bf16.msra.mxu0 0
    %576 = vmatpush.bf16.msra.mxu0 0
    %577 = vmatpush.bf16.msra.mxu0 0
    %578 = vmatpush.bf16.msra.mxu0 0
    %579 = vmatpush.bf16.msra.mxu0 0
    %580 = vmatpush.bf16.msra.mxu0 0
    %581 = vmatpush.bf16.msra.mxu0 %v569
    %582 = vmatmul.bf16.gmra.mxu0 %v572
    %v583 = vpop.f32.mrf.mxu0
    %v584 = vadd.f32 0.0, %v583
    %v585 = vpop.f32.mrf.mxu0
    %v586 = vadd.f32 0.0, %v585
    %587 = vdwg.mxu0
    %v590 = vunpack.c.l.b16 %v561
    %v591 = vunpack.c.l.b16 %v562
    %v592 = vpack.c.b16 %v591, %v590
    %593 = vrot.lane.b32.xlu0 %v448, 112
    %v594 = vpop.permute.xlu0 %593
    %v597 = vsel %vm315, %v592, 0
    %599 = vmatpush.bf16.msra.mxu0 0
    %600 = vmatpush.bf16.msra.mxu0 0
    %601 = vmatpush.bf16.msra.mxu0 0
    %602 = vmatpush.bf16.msra.mxu0 0
    %603 = vmatpush.bf16.msra.mxu0 0
    %604 = vmatpush.bf16.msra.mxu0 0
    %605 = vmatpush.bf16.msra.mxu0 0
    %606 = vmatpush.bf16.msra.mxu0 %v594
    %607 = vmatmul.bf16.gmra.mxu0 %v597
    %v608 = vpop.f32.mrf.mxu0
    %v609 = vadd.f32 0.0, %v608
    %v610 = vpop.f32.mrf.mxu0
    %v611 = vadd.f32 0.0, %v610
    %612 = vdwg.mxu0
    %613 = vrot.lane.b32.xlu0 %v312, 96
    %v614 = vpop.permute.xlu0 %613
    %615 = vrot.lane.b32.xlu0 %v312, 32
    %v616 = vpop.permute.xlu0 %615
    %v618 = vsel %vm315, %v614, 0
    %v621 = vsel %vm315, %v616, 0
    %623 = vmatpush.bf16.xpose.msra.mxu0 0
    %624 = vmatpush.bf16.xpose.msra.mxu0 0
    %625 = vmatpush.bf16.xpose.msra.mxu0 0
    %626 = vmatpush.bf16.xpose.msra.mxu0 0
    %627 = vmatpush.bf16.xpose.msra.mxu0 0
    %628 = vmatpush.bf16.xpose.msra.mxu0 0
    %629 = vmatpush.bf16.xpose.msra.mxu0 0
    %630 = vmatpush.bf16.xpose.msra.mxu0 %v621
    %631 = vmatmul.bf16.gmra.mxu0 %v618
    %v632 = vpop.f32.mrf.mxu0
    %v633 = vadd.f32 %v169, %v632
    %v634 = vpop.f32.mrf.mxu0
    %v635 = vadd.f32 %v170, %v634
    %636 = vdwg.mxu0
    %637 = vrot.lane.b32.xlu0 %v340, 96
    %v638 = vpop.permute.xlu0 %637
    %639 = vrot.lane.b32.xlu0 %v340, 32
    %v640 = vpop.permute.xlu0 %639
    %v642 = vsel %vm315, %v638, 0
    %v645 = vsel %vm315, %v640, 0
    %647 = vmatpush.bf16.xpose.msra.mxu0 0
    %648 = vmatpush.bf16.xpose.msra.mxu0 0
    %649 = vmatpush.bf16.xpose.msra.mxu0 0
    %650 = vmatpush.bf16.xpose.msra.mxu0 0
    %651 = vmatpush.bf16.xpose.msra.mxu0 0
    %652 = vmatpush.bf16.xpose.msra.mxu0 0
    %653 = vmatpush.bf16.xpose.msra.mxu0 0
    %654 = vmatpush.bf16.xpose.msra.mxu0 %v645
    %655 = vmatmul.bf16.gmra.mxu0 %v642
    %v656 = vpop.f32.mrf.mxu0
    %v657 = vadd.f32 %v171, %v656
    %v658 = vpop.f32.mrf.mxu0
    %v659 = vadd.f32 %v172, %v658
    %660 = vdwg.mxu0
    %v661 = vsel %vm315, %v633, -inf
    %662 = vmax.xlane.f32.xlu0 %v661
    %v663 = vpop.xlane.xlu0 %662
    %v664 = vsel %vm315, %v635, -inf
    %665 = vmax.xlane.f32.xlu0 %v664
    %v666 = vpop.xlane.xlu0 %665
    %v667 = vsel %vm315, %v657, -inf
    %668 = vmax.xlane.f32.xlu0 %v667
    %v669 = vpop.xlane.xlu0 %668
    %v670 = vsel %vm315, %v659, -inf
    %671 = vmax.xlane.f32.xlu0 %v670
    %v672 = vpop.xlane.xlu0 %671
    %v673 = vsub.f32 %v633, %v663
    %v674 = vsub.f32 %v635, %v666
    %v675 = vsub.f32 %v657, %v669
    %v676 = vsub.f32 %v659, %v672
    %v677 = vmul.f32 %v673, 1.442695
    %v678 = vpow.pop %v677
    %v679 = vmul.f32 %v674, 1.442695
    %v680 = vpow.pop %v679
    %v681 = vmul.f32 %v675, 1.442695
    %v682 = vpow.pop %v681
    %v683 = vmul.f32 %v676, 1.442695
    %v684 = vpow.pop %v683
    %v685 = vsel %vm315, %v678, 0.0
    %686 = vadd.xlane.f32.xlu0 %v685
    %v687 = vpop.xlane.xlu0 %686
    %v688 = vsel %vm315, %v680, 0.0
    %689 = vadd.xlane.f32.xlu0 %v688
    %v690 = vpop.xlane.xlu0 %689
    %v691 = vsel %vm315, %v682, 0.0
    %692 = vadd.xlane.f32.xlu0 %v691
    %v693 = vpop.xlane.xlu0 %692
    %v694 = vsel %vm315, %v684, 0.0
    %695 = vadd.xlane.f32.xlu0 %v694
    %v696 = vpop.xlane.xlu0 %695
    %v697 = vrcp.pop %v687
    %v698 = vrcp.pop %v690
    %v699 = vrcp.pop %v693
    %v700 = vrcp.pop %v696
    %v701 = vmul.f32 %v678, %v697
    %v702 = vmul.f32 %v680, %v698
    %v703 = vmul.f32 %v682, %v699
    %v704 = vmul.f32 %v684, %v700
    %v705 = vpack.c.bf16 %v701, %v701
    %v706 = vpack.c.bf16 %v702, %v702
    %v707 = vpack.c.bf16 %v703, %v703
    %v708 = vpack.c.bf16 %v704, %v704
    %v711 = vunpack.c.l.b16 %v705
    %v712 = vunpack.c.l.b16 %v706
    %v713 = vpack.c.b16 %v712, %v711
    %714 = vrot.lane.b32.xlu0 %v420, 96
    %v715 = vpop.permute.xlu0 %714
    %v718 = vsel %vm315, %v713, 0
    %720 = vmatpush.bf16.msra.mxu0 0
    %721 = vmatpush.bf16.msra.mxu0 0
    %722 = vmatpush.bf16.msra.mxu0 0
    %723 = vmatpush.bf16.msra.mxu0 0
    %724 = vmatpush.bf16.msra.mxu0 0
    %725 = vmatpush.bf16.msra.mxu0 0
    %726 = vmatpush.bf16.msra.mxu0 0
    %727 = vmatpush.bf16.msra.mxu0 %v715
    %728 = vmatmul.bf16.gmra.mxu0 %v718
    %v729 = vpop.f32.mrf.mxu0
    %v730 = vadd.f32 0.0, %v729
    %v731 = vpop.f32.mrf.mxu0
    %v732 = vadd.f32 0.0, %v731
    %733 = vdwg.mxu0
    %v736 = vunpack.c.l.b16 %v707
    %v737 = vunpack.c.l.b16 %v708
    %v738 = vpack.c.b16 %v737, %v736
    %739 = vrot.lane.b32.xlu0 %v448, 96
    %v740 = vpop.permute.xlu0 %739
    %v743 = vsel %vm315, %v738, 0
    %745 = vmatpush.bf16.msra.mxu0 0
    %746 = vmatpush.bf16.msra.mxu0 0
    %747 = vmatpush.bf16.msra.mxu0 0
    %748 = vmatpush.bf16.msra.mxu0 0
    %749 = vmatpush.bf16.msra.mxu0 0
    %750 = vmatpush.bf16.msra.mxu0 0
    %751 = vmatpush.bf16.msra.mxu0 0
    %752 = vmatpush.bf16.msra.mxu0 %v740
    %753 = vmatmul.bf16.gmra.mxu0 %v743
    %v754 = vpop.f32.mrf.mxu0
    %v755 = vadd.f32 0.0, %v754
    %v756 = vpop.f32.mrf.mxu0
    %v757 = vadd.f32 0.0, %v756
    %758 = vdwg.mxu0
    %759 = vrot.lane.b32.xlu0 %v312, 80
    %v760 = vpop.permute.xlu0 %759
    %761 = vrot.lane.b32.xlu0 %v312, 16
    %v762 = vpop.permute.xlu0 %761
    %v764 = vsel %vm315, %v760, 0
    %v767 = vsel %vm315, %v762, 0
    %769 = vmatpush.bf16.xpose.msra.mxu0 0
    %770 = vmatpush.bf16.xpose.msra.mxu0 0
    %771 = vmatpush.bf16.xpose.msra.mxu0 0
    %772 = vmatpush.bf16.xpose.msra.mxu0 0
    %773 = vmatpush.bf16.xpose.msra.mxu0 0
    %774 = vmatpush.bf16.xpose.msra.mxu0 0
    %775 = vmatpush.bf16.xpose.msra.mxu0 0
    %776 = vmatpush.bf16.xpose.msra.mxu0 %v767
    %777 = vmatmul.bf16.gmra.mxu0 %v764
    %v778 = vpop.f32.mrf.mxu0
    %v779 = vadd.f32 %v169, %v778
    %v780 = vpop.f32.mrf.mxu0
    %v781 = vadd.f32 %v170, %v780
    %782 = vdwg.mxu0
    %783 = vrot.lane.b32.xlu0 %v340, 80
    %v784 = vpop.permute.xlu0 %783
    %785 = vrot.lane.b32.xlu0 %v340, 16
    %v786 = vpop.permute.xlu0 %785
    %v788 = vsel %vm315, %v784, 0
    %v791 = vsel %vm315, %v786, 0
    %793 = vmatpush.bf16.xpose.msra.mxu0 0
    %794 = vmatpush.bf16.xpose.msra.mxu0 0
    %795 = vmatpush.bf16.xpose.msra.mxu0 0
    %796 = vmatpush.bf16.xpose.msra.mxu0 0
    %797 = vmatpush.bf16.xpose.msra.mxu0 0
    %798 = vmatpush.bf16.xpose.msra.mxu0 0
    %799 = vmatpush.bf16.xpose.msra.mxu0 0
    %800 = vmatpush.bf16.xpose.msra.mxu0 %v791
    %801 = vmatmul.bf16.gmra.mxu0 %v788
    %v802 = vpop.f32.mrf.mxu0
    %v803 = vadd.f32 %v171, %v802
    %v804 = vpop.f32.mrf.mxu0
    %v805 = vadd.f32 %v172, %v804
    %806 = vdwg.mxu0
    %v807 = vsel %vm315, %v779, -inf
    %808 = vmax.xlane.f32.xlu0 %v807
    %v809 = vpop.xlane.xlu0 %808
    %v810 = vsel %vm315, %v781, -inf
    %811 = vmax.xlane.f32.xlu0 %v810
    %v812 = vpop.xlane.xlu0 %811
    %v813 = vsel %vm315, %v803, -inf
    %814 = vmax.xlane.f32.xlu0 %v813
    %v815 = vpop.xlane.xlu0 %814
    %v816 = vsel %vm315, %v805, -inf
    %817 = vmax.xlane.f32.xlu0 %v816
    %v818 = vpop.xlane.xlu0 %817
    %v819 = vsub.f32 %v779, %v809
    %v820 = vsub.f32 %v781, %v812
    %v821 = vsub.f32 %v803, %v815
    %v822 = vsub.f32 %v805, %v818
    %v823 = vmul.f32 %v819, 1.442695
    %v824 = vpow.pop %v823
    %v825 = vmul.f32 %v820, 1.442695
    %v826 = vpow.pop %v825
    %v827 = vmul.f32 %v821, 1.442695
    %v828 = vpow.pop %v827
    %v829 = vmul.f32 %v822, 1.442695
    %v830 = vpow.pop %v829
    %v831 = vsel %vm315, %v824, 0.0
    %832 = vadd.xlane.f32.xlu0 %v831
    %v833 = vpop.xlane.xlu0 %832
    %v834 = vsel %vm315, %v826, 0.0
    %835 = vadd.xlane.f32.xlu0 %v834
    %v836 = vpop.xlane.xlu0 %835
    %v837 = vsel %vm315, %v828, 0.0
    %838 = vadd.xlane.f32.xlu0 %v837
    %v839 = vpop.xlane.xlu0 %838
    %v840 = vsel %vm315, %v830, 0.0
    %841 = vadd.xlane.f32.xlu0 %v840
    %v842 = vpop.xlane.xlu0 %841
    %v843 = vrcp.pop %v833
    %v844 = vrcp.pop %v836
    %v845 = vrcp.pop %v839
    %v846 = vrcp.pop %v842
    %v847 = vmul.f32 %v824, %v843
    %v848 = vmul.f32 %v826, %v844
    %v849 = vmul.f32 %v828, %v845
    %v850 = vmul.f32 %v830, %v846
    %v851 = vpack.c.bf16 %v847, %v847
    %v852 = vpack.c.bf16 %v848, %v848
    %v853 = vpack.c.bf16 %v849, %v849
    %v854 = vpack.c.bf16 %v850, %v850
    %v857 = vunpack.c.l.b16 %v851
    %v858 = vunpack.c.l.b16 %v852
    %v859 = vpack.c.b16 %v858, %v857
    %860 = vrot.lane.b32.xlu0 %v420, 80
    %v861 = vpop.permute.xlu0 %860
    %v864 = vsel %vm315, %v859, 0
    %866 = vmatpush.bf16.msra.mxu0 0
    %867 = vmatpush.bf16.msra.mxu0 0
    %868 = vmatpush.bf16.msra.mxu0 0
    %869 = vmatpush.bf16.msra.mxu0 0
    %870 = vmatpush.bf16.msra.mxu0 0
    %871 = vmatpush.bf16.msra.mxu0 0
    %872 = vmatpush.bf16.msra.mxu0 0
    %873 = vmatpush.bf16.msra.mxu0 %v861
    %874 = vmatmul.bf16.gmra.mxu0 %v864
    %v875 = vpop.f32.mrf.mxu0
    %v876 = vadd.f32 0.0, %v875
    %v877 = vpop.f32.mrf.mxu0
    %v878 = vadd.f32 0.0, %v877
    %879 = vdwg.mxu0
    %v882 = vunpack.c.l.b16 %v853
    %v883 = vunpack.c.l.b16 %v854
    %v884 = vpack.c.b16 %v883, %v882
    %885 = vrot.lane.b32.xlu0 %v448, 80
    %v886 = vpop.permute.xlu0 %885
    %v889 = vsel %vm315, %v884, 0
    %891 = vmatpush.bf16.msra.mxu0 0
    %892 = vmatpush.bf16.msra.mxu0 0
    %893 = vmatpush.bf16.msra.mxu0 0
    %894 = vmatpush.bf16.msra.mxu0 0
    %895 = vmatpush.bf16.msra.mxu0 0
    %896 = vmatpush.bf16.msra.mxu0 0
    %897 = vmatpush.bf16.msra.mxu0 0
    %898 = vmatpush.bf16.msra.mxu0 %v886
    %899 = vmatmul.bf16.gmra.mxu0 %v889
    %v900 = vpop.f32.mrf.mxu0
    %v901 = vadd.f32 0.0, %v900
    %v902 = vpop.f32.mrf.mxu0
    %v903 = vadd.f32 0.0, %v902
    %904 = vdwg.mxu0
    %909 = vrot.lane.b32.xlu0 %v584, 16
    %v910 = vpop.permute.xlu0 %909
    %911 = vrot.lane.b32.xlu0 %v586, 16
    %v912 = vpop.permute.xlu0 %911
    %913 = vrot.lane.b32.xlu0 %v609, 16
    %v914 = vpop.permute.xlu0 %913
    %915 = vrot.lane.b32.xlu0 %v611, 16
    %v916 = vpop.permute.xlu0 %915
    %925 = vrot.lane.b32.xlu0 %v730, 32
    %v926 = vpop.permute.xlu0 %925
    %927 = vrot.lane.b32.xlu0 %v732, 32
    %v928 = vpop.permute.xlu0 %927
    %929 = vrot.lane.b32.xlu0 %v755, 32
    %v930 = vpop.permute.xlu0 %929
    %931 = vrot.lane.b32.xlu0 %v757, 32
    %v932 = vpop.permute.xlu0 %931
    %941 = vrot.lane.b32.xlu0 %v876, 48
    %v942 = vpop.permute.xlu0 %941
    %943 = vrot.lane.b32.xlu0 %v878, 48
    %v944 = vpop.permute.xlu0 %943
    %945 = vrot.lane.b32.xlu0 %v901, 48
    %v946 = vpop.permute.xlu0 %945
    %947 = vrot.lane.b32.xlu0 %v903, 48
    %v948 = vpop.permute.xlu0 %947
    %v953 = vsel %vm315, %v435, %v910
    %v954 = vsel %vm315, %v437, %v912
    %v955 = vsel %vm315, %v463, %v914
    %v956 = vsel %vm315, %v465, %v916
    %v957 = vsel %vm78, %v953, %v926
    %v958 = vsel %vm78, %v954, %v928
    %v959 = vsel %vm78, %v955, %v930
    %v960 = vsel %vm78, %v956, %v932
    %vm961 = vcmask 392192
    %v962 = vsel %vm961, %v957, %v942
    %v963 = vsel %vm961, %v958, %v944
    %v964 = vsel %vm961, %v959, %v946
    %v965 = vsel %vm961, %v960, %v948
    %v966 = vld [vmem:[%s8] sm:$0xf]
    %v967 = vld [vmem:[%s8 + $0x4] sm:$0xf]
    %v968 = vld [vmem:[%s8 + $0x8] sm:$0xf]
    %v969 = vld [vmem:[%s8 + $0xc] sm:$0xf]
    %v970 = vld [vmem:[%s8 + $0x10] sm:$0xf]
    %v971 = vld [vmem:[%s8 + $0x14] sm:$0xf]
    %v972 = vld [vmem:[%s8 + $0x18] sm:$0xf]
    %v973 = vld [vmem:[%s8 + $0x1c] sm:$0xf]
    %v974 = vpack.c.bf16 %v963, %v962
    %v975 = vpack.c.bf16 %v965, %v964
    %v976 = vperm.slane %v173, 2
    %v985 = vunpack.c.l.b16 %v966
    %v986 = vunpack.c.l.b16 %v967
    %v987 = vunpack.c.l.b16 %v968
    %v988 = vunpack.c.l.b16 %v969
    %v989 = vunpack.c.l.b16 %v970
    %v990 = vunpack.c.l.b16 %v971
    %v991 = vunpack.c.l.b16 %v972
    %v992 = vunpack.c.l.b16 %v973
    %v993 = vpack.c.b16 %v986, %v985
    %v994 = vpack.c.b16 %v988, %v987
    %v995 = vpack.c.b16 %v990, %v989
    %v996 = vpack.c.b16 %v992, %v991
    %v1002 = vsel %vm214, %v974, 0
    %v1005 = vsel %vm214, %v975, 0
    %1007 = vmatpush.bf16.msra.mxu0 0
    %1008 = vmatpush.bf16.msra.mxu0 0
    %1009 = vmatpush.bf16.msra.mxu0 0
    %1010 = vmatpush.bf16.msra.mxu0 0
    %1011 = vmatpush.bf16.msra.mxu0 %v996
    %1012 = vmatpush.bf16.msra.mxu0 %v995
    %1013 = vmatpush.bf16.msra.mxu0 %v994
    %1014 = vmatpush.bf16.msra.mxu0 %v993
    %1015 = vmatmul.bf16.gmra.mxu0 %v1002
    %v1016 = vpop.f32.mrf.mxu0
    %v1017 = vadd.f32 %v976, %v1016
    %v1018 = vpop.f32.mrf.mxu0
    %v1019 = vadd.f32 %v976, %v1018
    %1020 = vmatmul.bf16.gmra.mxu0 %v1005
    %v1021 = vpop.f32.mrf.mxu0
    %v1022 = vadd.f32 %v976, %v1021
    %v1023 = vpop.f32.mrf.mxu0
    %v1024 = vadd.f32 %v976, %v1023
    %1025 = vdwg.mxu0
    %v1026 = vadd.f32 %v161, %v1017
    %v1027 = vadd.f32 %v162, %v1019
    %v1028 = vadd.f32 %v163, %v1022
    %v1029 = vadd.f32 %v164, %v1024
    %v1030 = vsel %vm214, %v1026, 0.0
    %1031 = vadd.xlane.f32.xlu0 %v1030
    %v1032 = vpop.xlane.xlu0 %1031
    %v1033 = vsel %vm214, %v1027, 0.0
    %1034 = vadd.xlane.f32.xlu0 %v1033
    %v1035 = vpop.xlane.xlu0 %1034
    %v1036 = vsel %vm214, %v1028, 0.0
    %1037 = vadd.xlane.f32.xlu0 %v1036
    %v1038 = vpop.xlane.xlu0 %1037
    %v1039 = vsel %vm214, %v1029, 0.0
    %1040 = vadd.xlane.f32.xlu0 %v1039
    %v1041 = vpop.xlane.xlu0 %1040
    %v1042 = vrcp.pop 64.0
    %v1043 = vmul.f32 64.0, %v1042
    %v1044 = vsub.f32 1.0, %v1043
    %v1045 = vmul.f32 %v1042, %v1044
    %v1046 = vadd.f32 %v1042, %v1045
    %vm1047 = vweird.f32 %v1042
    %v1048 = vsel %vm1047, %v1042, %v1046
    %v1049 = vmul.f32 %v1032, %v1048
    %v1050 = vmul.f32 %v1035, %v1048
    %v1051 = vmul.f32 %v1038, %v1048
    %v1052 = vmul.f32 %v1041, %v1048
    %v1053 = vsub.f32 %v1026, %v1049
    %v1054 = vsub.f32 %v1027, %v1050
    %v1055 = vsub.f32 %v1028, %v1051
    %v1056 = vsub.f32 %v1029, %v1052
    %v1057 = vmul.f32 %v1053, %v1053
    %v1058 = vmul.f32 %v1054, %v1054
    %v1059 = vmul.f32 %v1055, %v1055
    %v1060 = vmul.f32 %v1056, %v1056
    %v1061 = vsel %vm214, %v1057, 0.0
    %1062 = vadd.xlane.f32.xlu0 %v1061
    %v1063 = vpop.xlane.xlu0 %1062
    %v1064 = vsel %vm214, %v1058, 0.0
    %1065 = vadd.xlane.f32.xlu0 %v1064
    %v1066 = vpop.xlane.xlu0 %1065
    %v1067 = vsel %vm214, %v1059, 0.0
    %1068 = vadd.xlane.f32.xlu0 %v1067
    %v1069 = vpop.xlane.xlu0 %1068
    %v1070 = vsel %vm214, %v1060, 0.0
    %1071 = vadd.xlane.f32.xlu0 %v1070
    %v1072 = vpop.xlane.xlu0 %1071
    %v1073 = vmul.f32 %v1063, %v1048
    %v1074 = vmul.f32 %v1066, %v1048
    %v1075 = vmul.f32 %v1069, %v1048
    %v1076 = vmul.f32 %v1072, %v1048
    %v1077 = vadd.f32 %v1073, 1e-05
    %v1078 = vadd.f32 %v1074, 1e-05
    %v1079 = vadd.f32 %v1075, 1e-05
    %v1080 = vadd.f32 %v1076, 1e-05
    %v1081 = vrsqrt.pop %v1077
    %v1082 = vmul.f32 %v1081, %v1077
    %v1083 = vmul.f32 %v1082, %v1081
    %v1084 = vmul.f32 0.5, %v1083
    %v1085 = vsub.f32 1.5, %v1084
    %v1086 = vmul.f32 %v1081, %v1085
    %vm1087 = vweird.f32 %v1077
    %vm1088 = vweird.f32 %v1081
    %vm1089 = vmor %vm1087, %vm1088
    %v1090 = vsel %vm1089, %v1081, %v1086
    %v1091 = vrsqrt.pop %v1078
    %v1092 = vmul.f32 %v1091, %v1078
    %v1093 = vmul.f32 %v1092, %v1091
    %v1094 = vmul.f32 0.5, %v1093
    %v1095 = vsub.f32 1.5, %v1094
    %v1096 = vmul.f32 %v1091, %v1095
    %vm1097 = vweird.f32 %v1078
    %vm1098 = vweird.f32 %v1091
    %vm1099 = vmor %vm1097, %vm1098
    %v1100 = vsel %vm1099, %v1091, %v1096
    %v1101 = vrsqrt.pop %v1079
    %v1102 = vmul.f32 %v1101, %v1079
    %v1103 = vmul.f32 %v1102, %v1101
    %v1104 = vmul.f32 0.5, %v1103
    %v1105 = vsub.f32 1.5, %v1104
    %v1106 = vmul.f32 %v1101, %v1105
    %vm1107 = vweird.f32 %v1079
    %vm1108 = vweird.f32 %v1101
    %vm1109 = vmor %vm1107, %vm1108
    %v1110 = vsel %vm1109, %v1101, %v1106
    %v1111 = vrsqrt.pop %v1080
    %v1112 = vmul.f32 %v1111, %v1080
    %v1113 = vmul.f32 %v1112, %v1111
    %v1114 = vmul.f32 0.5, %v1113
    %v1115 = vsub.f32 1.5, %v1114
    %v1116 = vmul.f32 %v1111, %v1115
    %vm1117 = vweird.f32 %v1080
    %vm1118 = vweird.f32 %v1111
    %vm1119 = vmor %vm1117, %vm1118
    %v1120 = vsel %vm1119, %v1111, %v1116
    %v1121 = vmul.f32 %v1053, %v1090
    %v1122 = vmul.f32 %v1054, %v1100
    %v1123 = vmul.f32 %v1055, %v1110
    %v1124 = vmul.f32 %v1056, %v1120
    %v1125 = vperm.slane %v173, 5
    %v1126 = vmul.f32 %v1121, %v1125
    %v1127 = vmul.f32 %v1122, %v1125
    %v1128 = vmul.f32 %v1123, %v1125
    %v1129 = vmul.f32 %v1124, %v1125
    %v1130 = vperm.slane %v173, 6
    %v1131 = vadd.f32 %v1126, %v1130
    %v1132 = vadd.f32 %v1127, %v1130
    %v1133 = vadd.f32 %v1128, %v1130
    %v1134 = vadd.f32 %v1129, %v1130
    %v1135 = vld [vmem:[%s9] sm:$0xf]
    %v1136 = vld [vmem:[%s9 + $0x4] sm:$0xf]
    %v1137 = vld [vmem:[%s9 + $0x8] sm:$0xf]
    %v1138 = vld [vmem:[%s9 + $0xc] sm:$0xf]
    %v1139 = vld [vmem:[%s9 + $0x10] sm:$0xf]
    %v1140 = vld [vmem:[%s9 + $0x14] sm:$0xf]
    %v1141 = vld [vmem:[%s9 + $0x18] sm:$0xf]
    %v1142 = vld [vmem:[%s9 + $0x1c] sm:$0xf]
    %v1143 = vpack.c.bf16 %v1132, %v1131
    %v1144 = vpack.c.bf16 %v1134, %v1133
    %v1145 = vperm.slane %v173, 3
    %v1154 = vunpack.c.l.b16 %v1135
    %v1155 = vunpack.c.l.b16 %v1136
    %v1156 = vunpack.c.l.b16 %v1137
    %v1157 = vunpack.c.l.b16 %v1138
    %v1158 = vunpack.c.l.b16 %v1139
    %v1159 = vunpack.c.l.b16 %v1140
    %v1160 = vunpack.c.l.b16 %v1141
    %v1161 = vunpack.c.l.b16 %v1142
    %v1162 = vpack.c.b16 %v1155, %v1154
    %v1163 = vpack.c.b16 %v1157, %v1156
    %v1164 = vpack.c.b16 %v1159, %v1158
    %v1165 = vpack.c.b16 %v1161, %v1160
    %v1171 = vsel %vm214, %v1143, 0
    %v1174 = vsel %vm214, %v1144, 0
    %1176 = vmatpush.bf16.msra.mxu0 0
    %1177 = vmatpush.bf16.msra.mxu0 0
    %1178 = vmatpush.bf16.msra.mxu0 0
    %1179 = vmatpush.bf16.msra.mxu0 0
    %1180 = vmatpush.bf16.msra.mxu0 %v1165
    %1181 = vmatpush.bf16.msra.mxu0 %v1164
    %1182 = vmatpush.bf16.msra.mxu0 %v1163
    %1183 = vmatpush.bf16.msra.mxu0 %v1162
    %1184 = vmatmul.bf16.gmra.mxu0 %v1171
    %v1185 = vpop.f32.mrf.mxu0
    %v1186 = vadd.f32 %v1145, %v1185
    %v1187 = vpop.f32.mrf.mxu0
    %v1188 = vadd.f32 %v1145, %v1187
    %1189 = vmatmul.bf16.gmra.mxu0 %v1174
    %v1190 = vpop.f32.mrf.mxu0
    %v1191 = vadd.f32 %v1145, %v1190
    %v1192 = vpop.f32.mrf.mxu0
    %v1193 = vadd.f32 %v1145, %v1192
    %1194 = vdwg.mxu0
    %v1195 = vmax.f32 %v1186, 0.0
    %v1196 = vmax.f32 %v1188, 0.0
    %v1197 = vmax.f32 %v1191, 0.0
    %v1198 = vmax.f32 %v1193, 0.0
    %v1199 = vld [vmem:[%s10] sm:$0xf]
    %v1200 = vld [vmem:[%s10 + $0x4] sm:$0xf]
    %v1201 = vld [vmem:[%s10 + $0x8] sm:$0xf]
    %v1202 = vld [vmem:[%s10 + $0xc] sm:$0xf]
    %v1203 = vld [vmem:[%s10 + $0x10] sm:$0xf]
    %v1204 = vld [vmem:[%s10 + $0x14] sm:$0xf]
    %v1205 = vld [vmem:[%s10 + $0x18] sm:$0xf]
    %v1206 = vld [vmem:[%s10 + $0x1c] sm:$0xf]
    %v1207 = vld [vmem:[%s10 + $0x20] sm:$0xf]
    %v1208 = vld [vmem:[%s10 + $0x24] sm:$0xf]
    %v1209 = vld [vmem:[%s10 + $0x28] sm:$0xf]
    %v1210 = vld [vmem:[%s10 + $0x2c] sm:$0xf]
    %v1211 = vld [vmem:[%s10 + $0x30] sm:$0xf]
    %v1212 = vld [vmem:[%s10 + $0x34] sm:$0xf]
    %v1213 = vld [vmem:[%s10 + $0x38] sm:$0xf]
    %v1214 = vld [vmem:[%s10 + $0x3c] sm:$0xf]
    %v1215 = vpack.c.bf16 %v1196, %v1195
    %v1216 = vpack.c.bf16 %v1198, %v1197
    %v1217 = vperm.slane %v173, 4
    %v1234 = vunpack.c.l.b16 %v1199
    %v1235 = vunpack.c.l.b16 %v1200
    %v1236 = vunpack.c.l.b16 %v1201
    %v1237 = vunpack.c.l.b16 %v1202
    %v1238 = vunpack.c.l.b16 %v1203
    %v1239 = vunpack.c.l.b16 %v1204
    %v1240 = vunpack.c.l.b16 %v1205
    %v1241 = vunpack.c.l.b16 %v1206
    %v1242 = vunpack.c.l.b16 %v1207
    %v1243 = vunpack.c.l.b16 %v1208
    %v1244 = vunpack.c.l.b16 %v1209
    %v1245 = vunpack.c.l.b16 %v1210
    %v1246 = vunpack.c.l.b16 %v1211
    %v1247 = vunpack.c.l.b16 %v1212
    %v1248 = vunpack.c.l.b16 %v1213
    %v1249 = vunpack.c.l.b16 %v1214
    %v1250 = vpack.c.b16 %v1235, %v1234
    %v1251 = vpack.c.b16 %v1237, %v1236
    %v1252 = vpack.c.b16 %v1239, %v1238
    %v1253 = vpack.c.b16 %v1241, %v1240
    %v1254 = vpack.c.b16 %v1243, %v1242
    %v1255 = vpack.c.b16 %v1245, %v1244
    %v1256 = vpack.c.b16 %v1247, %v1246
    %v1257 = vpack.c.b16 %v1249, %v1248
    %1266 = vmatpush.bf16.msra.mxu0 %v1257
    %1267 = vmatpush.bf16.msra.mxu0 %v1256
    %1268 = vmatpush.bf16.msra.mxu0 %v1255
    %1269 = vmatpush.bf16.msra.mxu0 %v1254
    %1270 = vmatpush.bf16.msra.mxu0 %v1253
    %1271 = vmatpush.bf16.msra.mxu0 %v1252
    %1272 = vmatpush.bf16.msra.mxu0 %v1251
    %1273 = vmatpush.bf16.msra.mxu0 %v1250
    %1274 = vmatmul.bf16.gmra.mxu0 %v1215
    %v1275 = vpop.f32.mrf.mxu0
    %v1276 = vadd.f32 %v1217, %v1275
    %v1277 = vpop.f32.mrf.mxu0
    %v1278 = vadd.f32 %v1217, %v1277
    %1279 = vmatmul.bf16.gmra.mxu0 %v1216
    %v1280 = vpop.f32.mrf.mxu0
    %v1281 = vadd.f32 %v1217, %v1280
    %v1282 = vpop.f32.mrf.mxu0
    %v1283 = vadd.f32 %v1217, %v1282
    %1284 = vdwg.mxu0
    %v1285 = vadd.f32 %v1131, %v1276
    %v1286 = vadd.f32 %v1132, %v1278
    %v1287 = vadd.f32 %v1133, %v1281
    %v1288 = vadd.f32 %v1134, %v1283
    %v1289 = vsel %vm214, %v1285, 0.0
    %1290 = vadd.xlane.f32.xlu0 %v1289
    %v1291 = vpop.xlane.xlu0 %1290
    %v1292 = vsel %vm214, %v1286, 0.0
    %1293 = vadd.xlane.f32.xlu0 %v1292
    %v1294 = vpop.xlane.xlu0 %1293
    %v1295 = vsel %vm214, %v1287, 0.0
    %1296 = vadd.xlane.f32.xlu0 %v1295
    %v1297 = vpop.xlane.xlu0 %1296
    %v1298 = vsel %vm214, %v1288, 0.0
    %1299 = vadd.xlane.f32.xlu0 %v1298
    %v1300 = vpop.xlane.xlu0 %1299
    %v1301 = vmul.f32 %v1291, %v1048
    %v1302 = vmul.f32 %v1294, %v1048
    %v1303 = vmul.f32 %v1297, %v1048
    %v1304 = vmul.f32 %v1300, %v1048
    %v1305 = vsub.f32 %v1285, %v1301
    %v1306 = vsub.f32 %v1286, %v1302
    %v1307 = vsub.f32 %v1287, %v1303
    %v1308 = vsub.f32 %v1288, %v1304
    %v1309 = vmul.f32 %v1305, %v1305
    %v1310 = vmul.f32 %v1306, %v1306
    %v1311 = vmul.f32 %v1307, %v1307
    %v1312 = vmul.f32 %v1308, %v1308
    %v1313 = vsel %vm214, %v1309, 0.0
    %1314 = vadd.xlane.f32.xlu0 %v1313
    %v1315 = vpop.xlane.xlu0 %1314
    %v1316 = vsel %vm214, %v1310, 0.0
    %1317 = vadd.xlane.f32.xlu0 %v1316
    %v1318 = vpop.xlane.xlu0 %1317
    %v1319 = vsel %vm214, %v1311, 0.0
    %1320 = vadd.xlane.f32.xlu0 %v1319
    %v1321 = vpop.xlane.xlu0 %1320
    %v1322 = vsel %vm214, %v1312, 0.0
    %1323 = vadd.xlane.f32.xlu0 %v1322
    %v1324 = vpop.xlane.xlu0 %1323
    %v1325 = vmul.f32 %v1315, %v1048
    %v1326 = vmul.f32 %v1318, %v1048
    %v1327 = vmul.f32 %v1321, %v1048
    %v1328 = vmul.f32 %v1324, %v1048
    %v1329 = vadd.f32 %v1325, 1e-05
    %v1330 = vadd.f32 %v1326, 1e-05
    %v1331 = vadd.f32 %v1327, 1e-05
    %v1332 = vadd.f32 %v1328, 1e-05
    %v1333 = vrsqrt.pop %v1329
    %v1334 = vmul.f32 %v1333, %v1329
    %v1335 = vmul.f32 %v1334, %v1333
    %v1336 = vmul.f32 0.5, %v1335
    %v1337 = vsub.f32 1.5, %v1336
    %v1338 = vmul.f32 %v1333, %v1337
    %vm1339 = vweird.f32 %v1329
    %vm1340 = vweird.f32 %v1333
    %vm1341 = vmor %vm1339, %vm1340
    %v1342 = vsel %vm1341, %v1333, %v1338
    %v1343 = vrsqrt.pop %v1330
    %v1344 = vmul.f32 %v1343, %v1330
    %v1345 = vmul.f32 %v1344, %v1343
    %v1346 = vmul.f32 0.5, %v1345
    %v1347 = vsub.f32 1.5, %v1346
    %v1348 = vmul.f32 %v1343, %v1347
    %vm1349 = vweird.f32 %v1330
    %vm1350 = vweird.f32 %v1343
    %vm1351 = vmor %vm1349, %vm1350
    %v1352 = vsel %vm1351, %v1343, %v1348
    %v1353 = vrsqrt.pop %v1331
    %v1354 = vmul.f32 %v1353, %v1331
    %v1355 = vmul.f32 %v1354, %v1353
    %v1356 = vmul.f32 0.5, %v1355
    %v1357 = vsub.f32 1.5, %v1356
    %v1358 = vmul.f32 %v1353, %v1357
    %vm1359 = vweird.f32 %v1331
    %vm1360 = vweird.f32 %v1353
    %vm1361 = vmor %vm1359, %vm1360
    %v1362 = vsel %vm1361, %v1353, %v1358
    %v1363 = vrsqrt.pop %v1332
    %v1364 = vmul.f32 %v1363, %v1332
    %v1365 = vmul.f32 %v1364, %v1363
    %v1366 = vmul.f32 0.5, %v1365
    %v1367 = vsub.f32 1.5, %v1366
    %v1368 = vmul.f32 %v1363, %v1367
    %vm1369 = vweird.f32 %v1332
    %vm1370 = vweird.f32 %v1363
    %vm1371 = vmor %vm1369, %vm1370
    %v1372 = vsel %vm1371, %v1363, %v1368
    %v1373 = vmul.f32 %v1305, %v1342
    %v1374 = vmul.f32 %v1306, %v1352
    %v1375 = vmul.f32 %v1307, %v1362
    %v1376 = vmul.f32 %v1308, %v1372
    %v1377 = vperm.slane %v173, 7
    %v1378 = vmul.f32 %v1373, %v1377
    %v1379 = vmul.f32 %v1374, %v1377
    %v1380 = vmul.f32 %v1375, %v1377
    %v1381 = vmul.f32 %v1376, %v1377
    %v1382 = vperm.slane %v174, 0
    %v1383 = vadd.f32 %v1378, %v1382
    %v1384 = vadd.f32 %v1379, %v1382
    %v1385 = vadd.f32 %v1380, %v1382
    %v1386 = vadd.f32 %v1381, %v1382
    %s1387 = scalar_lea.vmem %s11, 16
    %v1388 = vld [vmem:[%s1387] sm:$0xff]
    %v1389 = vld [vmem:[%s1387 + $0x8] sm:$0x1]
    %v1390 = vadd.f32 %v1383, %v165
    %v1391 = vadd.f32 %v1384, %v166
    %v1392 = vadd.f32 %v1385, %v167
    %v1393 = vadd.f32 %v1386, %v168
    %s1394 = scalar_lea.vmem %s6, 32
    %v1395 = vld [vmem:[%s1394] sm:$0xf]
    %v1396 = vld [vmem:[%s1394 + $0x4] sm:$0xf]
    %v1397 = vld [vmem:[%s1394 + $0x8] sm:$0xf]
    %v1398 = vld [vmem:[%s1394 + $0xc] sm:$0xf]
    %v1399 = vld [vmem:[%s1394 + $0x10] sm:$0xf]
    %v1400 = vld [vmem:[%s1394 + $0x14] sm:$0xf]
    %v1401 = vld [vmem:[%s1394 + $0x18] sm:$0xf]
    %v1402 = vld [vmem:[%s1394 + $0x1c] sm:$0xf]
    %v1403 = vpack.c.bf16 %v1391, %v1390
    %v1404 = vpack.c.bf16 %v1393, %v1392
    %v1405 = vperm.slane %v1388, 0
    %v1414 = vunpack.c.l.b16 %v1395
    %v1415 = vunpack.c.l.b16 %v1396
    %v1416 = vunpack.c.l.b16 %v1397
    %v1417 = vunpack.c.l.b16 %v1398
    %v1418 = vunpack.c.l.b16 %v1399
    %v1419 = vunpack.c.l.b16 %v1400
    %v1420 = vunpack.c.l.b16 %v1401
    %v1421 = vunpack.c.l.b16 %v1402
    %v1422 = vpack.c.b16 %v1415, %v1414
    %v1423 = vpack.c.b16 %v1417, %v1416
    %v1424 = vpack.c.b16 %v1419, %v1418
    %v1425 = vpack.c.b16 %v1421, %v1420
    %v1431 = vsel %vm214, %v1403, 0
    %v1434 = vsel %vm214, %v1404, 0
    %1436 = vmatpush.bf16.msra.mxu0 0
    %1437 = vmatpush.bf16.msra.mxu0 0
    %1438 = vmatpush.bf16.msra.mxu0 0
    %1439 = vmatpush.bf16.msra.mxu0 0
    %1440 = vmatpush.bf16.msra.mxu0 %v1425
    %1441 = vmatpush.bf16.msra.mxu0 %v1424
    %1442 = vmatpush.bf16.msra.mxu0 %v1423
    %1443 = vmatpush.bf16.msra.mxu0 %v1422
    %1444 = vmatmul.bf16.gmra.mxu0 %v1431
    %v1445 = vpop.f32.mrf.mxu0
    %v1446 = vadd.f32 %v1405, %v1445
    %v1447 = vpop.f32.mrf.mxu0
    %v1448 = vadd.f32 %v1405, %v1447
    %1449 = vmatmul.bf16.gmra.mxu0 %v1434
    %v1450 = vpop.f32.mrf.mxu0
    %v1451 = vadd.f32 %v1405, %v1450
    %v1452 = vpop.f32.mrf.mxu0
    %v1453 = vadd.f32 %v1405, %v1452
    %1454 = vdwg.mxu0
    %s1455 = scalar_lea.vmem %s7, 32
    %v1456 = vld [vmem:[%s1455] sm:$0xf]
    %v1457 = vld [vmem:[%s1455 + $0x4] sm:$0xf]
    %v1458 = vld [vmem:[%s1455 + $0x8] sm:$0xf]
    %v1459 = vld [vmem:[%s1455 + $0xc] sm:$0xf]
    %v1460 = vld [vmem:[%s1455 + $0x10] sm:$0xf]
    %v1461 = vld [vmem:[%s1455 + $0x14] sm:$0xf]
    %v1462 = vld [vmem:[%s1455 + $0x18] sm:$0xf]
    %v1463 = vld [vmem:[%s1455 + $0x1c] sm:$0xf]
    %v1464 = vpack.c.bf16 %v1384, %v1383
    %v1465 = vpack.c.bf16 %v1386, %v1385
    %v1466 = vperm.slane %v1388, 1
    %v1475 = vunpack.c.l.b16 %v1456
    %v1476 = vunpack.c.l.b16 %v1457
    %v1477 = vunpack.c.l.b16 %v1458
    %v1478 = vunpack.c.l.b16 %v1459
    %v1479 = vunpack.c.l.b16 %v1460
    %v1480 = vunpack.c.l.b16 %v1461
    %v1481 = vunpack.c.l.b16 %v1462
    %v1482 = vunpack.c.l.b16 %v1463
    %v1483 = vpack.c.b16 %v1476, %v1475
    %v1484 = vpack.c.b16 %v1478, %v1477
    %v1485 = vpack.c.b16 %v1480, %v1479
    %v1486 = vpack.c.b16 %v1482, %v1481
    %v1492 = vsel %vm214, %v1464, 0
    %v1495 = vsel %vm214, %v1465, 0
    %1497 = vmatpush.bf16.msra.mxu0 0
    %1498 = vmatpush.bf16.msra.mxu0 0
    %1499 = vmatpush.bf16.msra.mxu0 0
    %1500 = vmatpush.bf16.msra.mxu0 0
    %1501 = vmatpush.bf16.msra.mxu0 %v1486
    %1502 = vmatpush.bf16.msra.mxu0 %v1485
    %1503 = vmatpush.bf16.msra.mxu0 %v1484
    %1504 = vmatpush.bf16.msra.mxu0 %v1483
    %1505 = vmatmul.bf16.gmra.mxu0 %v1492
    %v1506 = vpop.f32.mrf.mxu0
    %v1507 = vadd.f32 %v1466, %v1506
    %v1508 = vpop.f32.mrf.mxu0
    %v1509 = vadd.f32 %v1466, %v1508
    %1510 = vmatmul.bf16.gmra.mxu0 %v1495
    %v1511 = vpop.f32.mrf.mxu0
    %v1512 = vadd.f32 %v1466, %v1511
    %v1513 = vpop.f32.mrf.mxu0
    %v1514 = vadd.f32 %v1466, %v1513
    %1515 = vdwg.mxu0
    %v1516 = vpack.c.bf16 %v1446, %v1446
    %v1517 = vpack.c.bf16 %v1448, %v1448
    %v1518 = vpack.c.bf16 %v1451, %v1451
    %v1519 = vpack.c.bf16 %v1453, %v1453
    %v1520 = vpack.c.bf16 %v1507, %v1507
    %v1521 = vpack.c.bf16 %v1509, %v1509
    %v1522 = vpack.c.bf16 %v1512, %v1512
    %v1523 = vpack.c.bf16 %v1514, %v1514
    %v1526 = vunpack.c.l.b16 %v1516
    %v1527 = vunpack.c.l.b16 %v1517
    %v1528 = vpack.c.b16 %v1527, %v1526
    %1529 = vrot.lane.b32.xlu0 %v1528, 64
    %v1530 = vpop.permute.xlu0 %1529
    %v1532 = vsel %vm315, %v1528, 0
    %v1535 = vsel %vm315, %v1530, 0
    %1537 = vmatpush.bf16.xpose.msra.mxu0 0
    %1538 = vmatpush.bf16.xpose.msra.mxu0 0
    %1539 = vmatpush.bf16.xpose.msra.mxu0 0
    %1540 = vmatpush.bf16.xpose.msra.mxu0 0
    %1541 = vmatpush.bf16.xpose.msra.mxu0 0
    %1542 = vmatpush.bf16.xpose.msra.mxu0 0
    %1543 = vmatpush.bf16.xpose.msra.mxu0 0
    %1544 = vmatpush.bf16.xpose.msra.mxu0 %v1535
    %1545 = vmatmul.bf16.gmra.mxu0 %v1532
    %v1546 = vpop.f32.mrf.mxu0
    %v1547 = vadd.f32 %v169, %v1546
    %v1548 = vpop.f32.mrf.mxu0
    %v1549 = vadd.f32 %v170, %v1548
    %1550 = vdwg.mxu0
    %v1553 = vunpack.c.l.b16 %v1518
    %v1554 = vunpack.c.l.b16 %v1519
    %v1555 = vpack.c.b16 %v1554, %v1553
    %1556 = vrot.lane.b32.xlu0 %v1555, 64
    %v1557 = vpop.permute.xlu0 %1556
    %v1559 = vsel %vm315, %v1555, 0
    %v1562 = vsel %vm315, %v1557, 0
    %1564 = vmatpush.bf16.xpose.msra.mxu0 0
    %1565 = vmatpush.bf16.xpose.msra.mxu0 0
    %1566 = vmatpush.bf16.xpose.msra.mxu0 0
    %1567 = vmatpush.bf16.xpose.msra.mxu0 0
    %1568 = vmatpush.bf16.xpose.msra.mxu0 0
    %1569 = vmatpush.bf16.xpose.msra.mxu0 0
    %1570 = vmatpush.bf16.xpose.msra.mxu0 0
    %1571 = vmatpush.bf16.xpose.msra.mxu0 %v1562
    %1572 = vmatmul.bf16.gmra.mxu0 %v1559
    %v1573 = vpop.f32.mrf.mxu0
    %v1574 = vadd.f32 %v171, %v1573
    %v1575 = vpop.f32.mrf.mxu0
    %v1576 = vadd.f32 %v172, %v1575
    %1577 = vdwg.mxu0
    %v1578 = vsel %vm315, %v1547, -inf
    %1579 = vmax.xlane.f32.xlu0 %v1578
    %v1580 = vpop.xlane.xlu0 %1579
    %v1581 = vsel %vm315, %v1549, -inf
    %1582 = vmax.xlane.f32.xlu0 %v1581
    %v1583 = vpop.xlane.xlu0 %1582
    %v1584 = vsel %vm315, %v1574, -inf
    %1585 = vmax.xlane.f32.xlu0 %v1584
    %v1586 = vpop.xlane.xlu0 %1585
    %v1587 = vsel %vm315, %v1576, -inf
    %1588 = vmax.xlane.f32.xlu0 %v1587
    %v1589 = vpop.xlane.xlu0 %1588
    %v1590 = vsub.f32 %v1547, %v1580
    %v1591 = vsub.f32 %v1549, %v1583
    %v1592 = vsub.f32 %v1574, %v1586
    %v1593 = vsub.f32 %v1576, %v1589
    %v1594 = vmul.f32 %v1590, 1.442695
    %v1595 = vpow.pop %v1594
    %v1596 = vmul.f32 %v1591, 1.442695
    %v1597 = vpow.pop %v1596
    %v1598 = vmul.f32 %v1592, 1.442695
    %v1599 = vpow.pop %v1598
    %v1600 = vmul.f32 %v1593, 1.442695
    %v1601 = vpow.pop %v1600
    %v1602 = vsel %vm315, %v1595, 0.0
    %1603 = vadd.xlane.f32.xlu0 %v1602
    %v1604 = vpop.xlane.xlu0 %1603
    %v1605 = vsel %vm315, %v1597, 0.0
    %1606 = vadd.xlane.f32.xlu0 %v1605
    %v1607 = vpop.xlane.xlu0 %1606
    %v1608 = vsel %vm315, %v1599, 0.0
    %1609 = vadd.xlane.f32.xlu0 %v1608
    %v1610 = vpop.xlane.xlu0 %1609
    %v1611 = vsel %vm315, %v1601, 0.0
    %1612 = vadd.xlane.f32.xlu0 %v1611
    %v1613 = vpop.xlane.xlu0 %1612
    %v1614 = vrcp.pop %v1604
    %v1615 = vrcp.pop %v1607
    %v1616 = vrcp.pop %v1610
    %v1617 = vrcp.pop %v1613
    %v1618 = vmul.f32 %v1595, %v1614
    %v1619 = vmul.f32 %v1597, %v1615
    %v1620 = vmul.f32 %v1599, %v1616
    %v1621 = vmul.f32 %v1601, %v1617
    %v1622 = vpack.c.bf16 %v1618, %v1618
    %v1623 = vpack.c.bf16 %v1619, %v1619
    %v1624 = vpack.c.bf16 %v1620, %v1620
    %v1625 = vpack.c.bf16 %v1621, %v1621
    %v1628 = vunpack.c.l.b16 %v1622
    %v1629 = vunpack.c.l.b16 %v1623
    %v1630 = vpack.c.b16 %v1629, %v1628
    %v1633 = vunpack.c.l.b16 %v1520
    %v1634 = vunpack.c.l.b16 %v1521
    %v1635 = vpack.c.b16 %v1634, %v1633
    %v1638 = vsel %vm315, %v1630, 0
    %1640 = vmatpush.bf16.msra.mxu0 0
    %1641 = vmatpush.bf16.msra.mxu0 0
    %1642 = vmatpush.bf16.msra.mxu0 0
    %1643 = vmatpush.bf16.msra.mxu0 0
    %1644 = vmatpush.bf16.msra.mxu0 0
    %1645 = vmatpush.bf16.msra.mxu0 0
    %1646 = vmatpush.bf16.msra.mxu0 0
    %1647 = vmatpush.bf16.msra.mxu0 %v1635
    %1648 = vmatmul.bf16.gmra.mxu0 %v1638
    %v1649 = vpop.f32.mrf.mxu0
    %v1650 = vadd.f32 0.0, %v1649
    %v1651 = vpop.f32.mrf.mxu0
    %v1652 = vadd.f32 0.0, %v1651
    %1653 = vdwg.mxu0
    %v1656 = vunpack.c.l.b16 %v1624
    %v1657 = vunpack.c.l.b16 %v1625
    %v1658 = vpack.c.b16 %v1657, %v1656
    %v1661 = vunpack.c.l.b16 %v1522
    %v1662 = vunpack.c.l.b16 %v1523
    %v1663 = vpack.c.b16 %v1662, %v1661
    %v1666 = vsel %vm315, %v1658, 0
    %1668 = vmatpush.bf16.msra.mxu0 0
    %1669 = vmatpush.bf16.msra.mxu0 0
    %1670 = vmatpush.bf16.msra.mxu0 0
    %1671 = vmatpush.bf16.msra.mxu0 0
    %1672 = vmatpush.bf16.msra.mxu0 0
    %1673 = vmatpush.bf16.msra.mxu0 0
    %1674 = vmatpush.bf16.msra.mxu0 0
    %1675 = vmatpush.bf16.msra.mxu0 %v1663
    %1676 = vmatmul.bf16.gmra.mxu0 %v1666
    %v1677 = vpop.f32.mrf.mxu0
    %v1678 = vadd.f32 0.0, %v1677
    %v1679 = vpop.f32.mrf.mxu0
    %v1680 = vadd.f32 0.0, %v1679
    %1681 = vdwg.mxu0
    %1682 = vrot.lane.b32.xlu0 %v1528, 112
    %v1683 = vpop.permute.xlu0 %1682
    %1684 = vrot.lane.b32.xlu0 %v1528, 48
    %v1685 = vpop.permute.xlu0 %1684
    %v1687 = vsel %vm315, %v1683, 0
    %v1690 = vsel %vm315, %v1685, 0
    %1692 = vmatpush.bf16.xpose.msra.mxu0 0
    %1693 = vmatpush.bf16.xpose.msra.mxu0 0
    %1694 = vmatpush.bf16.xpose.msra.mxu0 0
    %1695 = vmatpush.bf16.xpose.msra.mxu0 0
    %1696 = vmatpush.bf16.xpose.msra.mxu0 0
    %1697 = vmatpush.bf16.xpose.msra.mxu0 0
    %1698 = vmatpush.bf16.xpose.msra.mxu0 0
    %1699 = vmatpush.bf16.xpose.msra.mxu0 %v1690
    %1700 = vmatmul.bf16.gmra.mxu0 %v1687
    %v1701 = vpop.f32.mrf.mxu0
    %v1702 = vadd.f32 %v169, %v1701
    %v1703 = vpop.f32.mrf.mxu0
    %v1704 = vadd.f32 %v170, %v1703
    %1705 = vdwg.mxu0
    %1706 = vrot.lane.b32.xlu0 %v1555, 112
    %v1707 = vpop.permute.xlu0 %1706
    %1708 = vrot.lane.b32.xlu0 %v1555, 48
    %v1709 = vpop.permute.xlu0 %1708
    %v1711 = vsel %vm315, %v1707, 0
    %v1714 = vsel %vm315, %v1709, 0
    %1716 = vmatpush.bf16.xpose.msra.mxu0 0
    %1717 = vmatpush.bf16.xpose.msra.mxu0 0
    %1718 = vmatpush.bf16.xpose.msra.mxu0 0
    %1719 = vmatpush.bf16.xpose.msra.mxu0 0
    %1720 = vmatpush.bf16.xpose.msra.mxu0 0
    %1721 = vmatpush.bf16.xpose.msra.mxu0 0
    %1722 = vmatpush.bf16.xpose.msra.mxu0 0
    %1723 = vmatpush.bf16.xpose.msra.mxu0 %v1714
    %1724 = vmatmul.bf16.gmra.mxu0 %v1711
    %v1725 = vpop.f32.mrf.mxu0
    %v1726 = vadd.f32 %v171, %v1725
    %v1727 = vpop.f32.mrf.mxu0
    %v1728 = vadd.f32 %v172, %v1727
    %1729 = vdwg.mxu0
    %v1730 = vsel %vm315, %v1702, -inf
    %1731 = vmax.xlane.f32.xlu0 %v1730
    %v1732 = vpop.xlane.xlu0 %1731
    %v1733 = vsel %vm315, %v1704, -inf
    %1734 = vmax.xlane.f32.xlu0 %v1733
    %v1735 = vpop.xlane.xlu0 %1734
    %v1736 = vsel %vm315, %v1726, -inf
    %1737 = vmax.xlane.f32.xlu0 %v1736
    %v1738 = vpop.xlane.xlu0 %1737
    %v1739 = vsel %vm315, %v1728, -inf
    %1740 = vmax.xlane.f32.xlu0 %v1739
    %v1741 = vpop.xlane.xlu0 %1740
    %v1742 = vsub.f32 %v1702, %v1732
    %v1743 = vsub.f32 %v1704, %v1735
    %v1744 = vsub.f32 %v1726, %v1738
    %v1745 = vsub.f32 %v1728, %v1741
    %v1746 = vmul.f32 %v1742, 1.442695
    %v1747 = vpow.pop %v1746
    %v1748 = vmul.f32 %v1743, 1.442695
    %v1749 = vpow.pop %v1748
    %v1750 = vmul.f32 %v1744, 1.442695
    %v1751 = vpow.pop %v1750
    %v1752 = vmul.f32 %v1745, 1.442695
    %v1753 = vpow.pop %v1752
    %v1754 = vsel %vm315, %v1747, 0.0
    %1755 = vadd.xlane.f32.xlu0 %v1754
    %v1756 = vpop.xlane.xlu0 %1755
    %v1757 = vsel %vm315, %v1749, 0.0
    %1758 = vadd.xlane.f32.xlu0 %v1757
    %v1759 = vpop.xlane.xlu0 %1758
    %v1760 = vsel %vm315, %v1751, 0.0
    %1761 = vadd.xlane.f32.xlu0 %v1760
    %v1762 = vpop.xlane.xlu0 %1761
    %v1763 = vsel %vm315, %v1753, 0.0
    %1764 = vadd.xlane.f32.xlu0 %v1763
    %v1765 = vpop.xlane.xlu0 %1764
    %v1766 = vrcp.pop %v1756
    %v1767 = vrcp.pop %v1759
    %v1768 = vrcp.pop %v1762
    %v1769 = vrcp.pop %v1765
    %v1770 = vmul.f32 %v1747, %v1766
    %v1771 = vmul.f32 %v1749, %v1767
    %v1772 = vmul.f32 %v1751, %v1768
    %v1773 = vmul.f32 %v1753, %v1769
    %v1774 = vpack.c.bf16 %v1770, %v1770
    %v1775 = vpack.c.bf16 %v1771, %v1771
    %v1776 = vpack.c.bf16 %v1772, %v1772
    %v1777 = vpack.c.bf16 %v1773, %v1773
    %v1780 = vunpack.c.l.b16 %v1774
    %v1781 = vunpack.c.l.b16 %v1775
    %v1782 = vpack.c.b16 %v1781, %v1780
    %1783 = vrot.lane.b32.xlu0 %v1635, 112
    %v1784 = vpop.permute.xlu0 %1783
    %v1787 = vsel %vm315, %v1782, 0
    %1789 = vmatpush.bf16.msra.mxu0 0
    %1790 = vmatpush.bf16.msra.mxu0 0
    %1791 = vmatpush.bf16.msra.mxu0 0
    %1792 = vmatpush.bf16.msra.mxu0 0
    %1793 = vmatpush.bf16.msra.mxu0 0
    %1794 = vmatpush.bf16.msra.mxu0 0
    %1795 = vmatpush.bf16.msra.mxu0 0
    %1796 = vmatpush.bf16.msra.mxu0 %v1784
    %1797 = vmatmul.bf16.gmra.mxu0 %v1787
    %v1798 = vpop.f32.mrf.mxu0
    %v1799 = vadd.f32 0.0, %v1798
    %v1800 = vpop.f32.mrf.mxu0
    %v1801 = vadd.f32 0.0, %v1800
    %1802 = vdwg.mxu0
    %v1805 = vunpack.c.l.b16 %v1776
    %v1806 = vunpack.c.l.b16 %v1777
    %v1807 = vpack.c.b16 %v1806, %v1805
    %1808 = vrot.lane.b32.xlu0 %v1663, 112
    %v1809 = vpop.permute.xlu0 %1808
    %v1812 = vsel %vm315, %v1807, 0
    %1814 = vmatpush.bf16.msra.mxu0 0
    %1815 = vmatpush.bf16.msra.mxu0 0
    %1816 = vmatpush.bf16.msra.mxu0 0
    %1817 = vmatpush.bf16.msra.mxu0 0
    %1818 = vmatpush.bf16.msra.mxu0 0
    %1819 = vmatpush.bf16.msra.mxu0 0
    %1820 = vmatpush.bf16.msra.mxu0 0
    %1821 = vmatpush.bf16.msra.mxu0 %v1809
    %1822 = vmatmul.bf16.gmra.mxu0 %v1812
    %v1823 = vpop.f32.mrf.mxu0
    %v1824 = vadd.f32 0.0, %v1823
    %v1825 = vpop.f32.mrf.mxu0
    %v1826 = vadd.f32 0.0, %v1825
    %1827 = vdwg.mxu0
    %1828 = vrot.lane.b32.xlu0 %v1528, 96
    %v1829 = vpop.permute.xlu0 %1828
    %1830 = vrot.lane.b32.xlu0 %v1528, 32
    %v1831 = vpop.permute.xlu0 %1830
    %v1833 = vsel %vm315, %v1829, 0
    %v1836 = vsel %vm315, %v1831, 0
    %1838 = vmatpush.bf16.xpose.msra.mxu0 0
    %1839 = vmatpush.bf16.xpose.msra.mxu0 0
    %1840 = vmatpush.bf16.xpose.msra.mxu0 0
    %1841 = vmatpush.bf16.xpose.msra.mxu0 0
    %1842 = vmatpush.bf16.xpose.msra.mxu0 0
    %1843 = vmatpush.bf16.xpose.msra.mxu0 0
    %1844 = vmatpush.bf16.xpose.msra.mxu0 0
    %1845 = vmatpush.bf16.xpose.msra.mxu0 %v1836
    %1846 = vmatmul.bf16.gmra.mxu0 %v1833
    %v1847 = vpop.f32.mrf.mxu0
    %v1848 = vadd.f32 %v169, %v1847
    %v1849 = vpop.f32.mrf.mxu0
    %v1850 = vadd.f32 %v170, %v1849
    %1851 = vdwg.mxu0
    %1852 = vrot.lane.b32.xlu0 %v1555, 96
    %v1853 = vpop.permute.xlu0 %1852
    %1854 = vrot.lane.b32.xlu0 %v1555, 32
    %v1855 = vpop.permute.xlu0 %1854
    %v1857 = vsel %vm315, %v1853, 0
    %v1860 = vsel %vm315, %v1855, 0
    %1862 = vmatpush.bf16.xpose.msra.mxu0 0
    %1863 = vmatpush.bf16.xpose.msra.mxu0 0
    %1864 = vmatpush.bf16.xpose.msra.mxu0 0
    %1865 = vmatpush.bf16.xpose.msra.mxu0 0
    %1866 = vmatpush.bf16.xpose.msra.mxu0 0
    %1867 = vmatpush.bf16.xpose.msra.mxu0 0
    %1868 = vmatpush.bf16.xpose.msra.mxu0 0
    %1869 = vmatpush.bf16.xpose.msra.mxu0 %v1860
    %1870 = vmatmul.bf16.gmra.mxu0 %v1857
    %v1871 = vpop.f32.mrf.mxu0
    %v1872 = vadd.f32 %v171, %v1871
    %v1873 = vpop.f32.mrf.mxu0
    %v1874 = vadd.f32 %v172, %v1873
    %1875 = vdwg.mxu0
    %v1876 = vsel %vm315, %v1848, -inf
    %1877 = vmax.xlane.f32.xlu0 %v1876
    %v1878 = vpop.xlane.xlu0 %1877
    %v1879 = vsel %vm315, %v1850, -inf
    %1880 = vmax.xlane.f32.xlu0 %v1879
    %v1881 = vpop.xlane.xlu0 %1880
    %v1882 = vsel %vm315, %v1872, -inf
    %1883 = vmax.xlane.f32.xlu0 %v1882
    %v1884 = vpop.xlane.xlu0 %1883
    %v1885 = vsel %vm315, %v1874, -inf
    %1886 = vmax.xlane.f32.xlu0 %v1885
    %v1887 = vpop.xlane.xlu0 %1886
    %v1888 = vsub.f32 %v1848, %v1878
    %v1889 = vsub.f32 %v1850, %v1881
    %v1890 = vsub.f32 %v1872, %v1884
    %v1891 = vsub.f32 %v1874, %v1887
    %v1892 = vmul.f32 %v1888, 1.442695
    %v1893 = vpow.pop %v1892
    %v1894 = vmul.f32 %v1889, 1.442695
    %v1895 = vpow.pop %v1894
    %v1896 = vmul.f32 %v1890, 1.442695
    %v1897 = vpow.pop %v1896
    %v1898 = vmul.f32 %v1891, 1.442695
    %v1899 = vpow.pop %v1898
    %v1900 = vsel %vm315, %v1893, 0.0
    %1901 = vadd.xlane.f32.xlu0 %v1900
    %v1902 = vpop.xlane.xlu0 %1901
    %v1903 = vsel %vm315, %v1895, 0.0
    %1904 = vadd.xlane.f32.xlu0 %v1903
    %v1905 = vpop.xlane.xlu0 %1904
    %v1906 = vsel %vm315, %v1897, 0.0
    %1907 = vadd.xlane.f32.xlu0 %v1906
    %v1908 = vpop.xlane.xlu0 %1907
    %v1909 = vsel %vm315, %v1899, 0.0
    %1910 = vadd.xlane.f32.xlu0 %v1909
    %v1911 = vpop.xlane.xlu0 %1910
    %v1912 = vrcp.pop %v1902
    %v1913 = vrcp.pop %v1905
    %v1914 = vrcp.pop %v1908
    %v1915 = vrcp.pop %v1911
    %v1916 = vmul.f32 %v1893, %v1912
    %v1917 = vmul.f32 %v1895, %v1913
    %v1918 = vmul.f32 %v1897, %v1914
    %v1919 = vmul.f32 %v1899, %v1915
    %v1920 = vpack.c.bf16 %v1916, %v1916
    %v1921 = vpack.c.bf16 %v1917, %v1917
    %v1922 = vpack.c.bf16 %v1918, %v1918
    %v1923 = vpack.c.bf16 %v1919, %v1919
    %v1926 = vunpack.c.l.b16 %v1920
    %v1927 = vunpack.c.l.b16 %v1921
    %v1928 = vpack.c.b16 %v1927, %v1926
    %1929 = vrot.lane.b32.xlu0 %v1635, 96
    %v1930 = vpop.permute.xlu0 %1929
    %v1933 = vsel %vm315, %v1928, 0
    %1935 = vmatpush.bf16.msra.mxu0 0
    %1936 = vmatpush.bf16.msra.mxu0 0
    %1937 = vmatpush.bf16.msra.mxu0 0
    %1938 = vmatpush.bf16.msra.mxu0 0
    %1939 = vmatpush.bf16.msra.mxu0 0
    %1940 = vmatpush.bf16.msra.mxu0 0
    %1941 = vmatpush.bf16.msra.mxu0 0
    %1942 = vmatpush.bf16.msra.mxu0 %v1930
    %1943 = vmatmul.bf16.gmra.mxu0 %v1933
    %v1944 = vpop.f32.mrf.mxu0
    %v1945 = vadd.f32 0.0, %v1944
    %v1946 = vpop.f32.mrf.mxu0
    %v1947 = vadd.f32 0.0, %v1946
    %1948 = vdwg.mxu0
    %v1951 = vunpack.c.l.b16 %v1922
    %v1952 = vunpack.c.l.b16 %v1923
    %v1953 = vpack.c.b16 %v1952, %v1951
    %1954 = vrot.lane.b32.xlu0 %v1663, 96
    %v1955 = vpop.permute.xlu0 %1954
    %v1958 = vsel %vm315, %v1953, 0
    %1960 = vmatpush.bf16.msra.mxu0 0
    %1961 = vmatpush.bf16.msra.mxu0 0
    %1962 = vmatpush.bf16.msra.mxu0 0
    %1963 = vmatpush.bf16.msra.mxu0 0
    %1964 = vmatpush.bf16.msra.mxu0 0
    %1965 = vmatpush.bf16.msra.mxu0 0
    %1966 = vmatpush.bf16.msra.mxu0 0
    %1967 = vmatpush.bf16.msra.mxu0 %v1955
    %1968 = vmatmul.bf16.gmra.mxu0 %v1958
    %v1969 = vpop.f32.mrf.mxu0
    %v1970 = vadd.f32 0.0, %v1969
    %v1971 = vpop.f32.mrf.mxu0
    %v1972 = vadd.f32 0.0, %v1971
    %1973 = vdwg.mxu0
    %1974 = vrot.lane.b32.xlu0 %v1528, 80
    %v1975 = vpop.permute.xlu0 %1974
    %1976 = vrot.lane.b32.xlu0 %v1528, 16
    %v1977 = vpop.permute.xlu0 %1976
    %v1979 = vsel %vm315, %v1975, 0
    %v1982 = vsel %vm315, %v1977, 0
    %1984 = vmatpush.bf16.xpose.msra.mxu0 0
    %1985 = vmatpush.bf16.xpose.msra.mxu0 0
    %1986 = vmatpush.bf16.xpose.msra.mxu0 0
    %1987 = vmatpush.bf16.xpose.msra.mxu0 0
    %1988 = vmatpush.bf16.xpose.msra.mxu0 0
    %1989 = vmatpush.bf16.xpose.msra.mxu0 0
    %1990 = vmatpush.bf16.xpose.msra.mxu0 0
    %1991 = vmatpush.bf16.xpose.msra.mxu0 %v1982
    %1992 = vmatmul.bf16.gmra.mxu0 %v1979
    %v1993 = vpop.f32.mrf.mxu0
    %v1994 = vadd.f32 %v169, %v1993
    %v1995 = vpop.f32.mrf.mxu0
    %v1996 = vadd.f32 %v170, %v1995
    %1997 = vdwg.mxu0
    %1998 = vrot.lane.b32.xlu0 %v1555, 80
    %v1999 = vpop.permute.xlu0 %1998
    %2000 = vrot.lane.b32.xlu0 %v1555, 16
    %v2001 = vpop.permute.xlu0 %2000
    %v2003 = vsel %vm315, %v1999, 0
    %v2006 = vsel %vm315, %v2001, 0
    %2008 = vmatpush.bf16.xpose.msra.mxu0 0
    %2009 = vmatpush.bf16.xpose.msra.mxu0 0
    %2010 = vmatpush.bf16.xpose.msra.mxu0 0
    %2011 = vmatpush.bf16.xpose.msra.mxu0 0
    %2012 = vmatpush.bf16.xpose.msra.mxu0 0
    %2013 = vmatpush.bf16.xpose.msra.mxu0 0
    %2014 = vmatpush.bf16.xpose.msra.mxu0 0
    %2015 = vmatpush.bf16.xpose.msra.mxu0 %v2006
    %2016 = vmatmul.bf16.gmra.mxu0 %v2003
    %v2017 = vpop.f32.mrf.mxu0
    %v2018 = vadd.f32 %v171, %v2017
    %v2019 = vpop.f32.mrf.mxu0
    %v2020 = vadd.f32 %v172, %v2019
    %2021 = vdwg.mxu0
    %v2022 = vsel %vm315, %v1994, -inf
    %2023 = vmax.xlane.f32.xlu0 %v2022
    %v2024 = vpop.xlane.xlu0 %2023
    %v2025 = vsel %vm315, %v1996, -inf
    %2026 = vmax.xlane.f32.xlu0 %v2025
    %v2027 = vpop.xlane.xlu0 %2026
    %v2028 = vsel %vm315, %v2018, -inf
    %2029 = vmax.xlane.f32.xlu0 %v2028
    %v2030 = vpop.xlane.xlu0 %2029
    %v2031 = vsel %vm315, %v2020, -inf
    %2032 = vmax.xlane.f32.xlu0 %v2031
    %v2033 = vpop.xlane.xlu0 %2032
    %v2034 = vsub.f32 %v1994, %v2024
    %v2035 = vsub.f32 %v1996, %v2027
    %v2036 = vsub.f32 %v2018, %v2030
    %v2037 = vsub.f32 %v2020, %v2033
    %v2038 = vmul.f32 %v2034, 1.442695
    %v2039 = vpow.pop %v2038
    %v2040 = vmul.f32 %v2035, 1.442695
    %v2041 = vpow.pop %v2040
    %v2042 = vmul.f32 %v2036, 1.442695
    %v2043 = vpow.pop %v2042
    %v2044 = vmul.f32 %v2037, 1.442695
    %v2045 = vpow.pop %v2044
    %v2046 = vsel %vm315, %v2039, 0.0
    %2047 = vadd.xlane.f32.xlu0 %v2046
    %v2048 = vpop.xlane.xlu0 %2047
    %v2049 = vsel %vm315, %v2041, 0.0
    %2050 = vadd.xlane.f32.xlu0 %v2049
    %v2051 = vpop.xlane.xlu0 %2050
    %v2052 = vsel %vm315, %v2043, 0.0
    %2053 = vadd.xlane.f32.xlu0 %v2052
    %v2054 = vpop.xlane.xlu0 %2053
    %v2055 = vsel %vm315, %v2045, 0.0
    %2056 = vadd.xlane.f32.xlu0 %v2055
    %v2057 = vpop.xlane.xlu0 %2056
    %v2058 = vrcp.pop %v2048
    %v2059 = vrcp.pop %v2051
    %v2060 = vrcp.pop %v2054
    %v2061 = vrcp.pop %v2057
    %v2062 = vmul.f32 %v2039, %v2058
    %v2063 = vmul.f32 %v2041, %v2059
    %v2064 = vmul.f32 %v2043, %v2060
    %v2065 = vmul.f32 %v2045, %v2061
    %v2066 = vpack.c.bf16 %v2062, %v2062
    %v2067 = vpack.c.bf16 %v2063, %v2063
    %v2068 = vpack.c.bf16 %v2064, %v2064
    %v2069 = vpack.c.bf16 %v2065, %v2065
    %v2072 = vunpack.c.l.b16 %v2066
    %v2073 = vunpack.c.l.b16 %v2067
    %v2074 = vpack.c.b16 %v2073, %v2072
    %2075 = vrot.lane.b32.xlu0 %v1635, 80
    %v2076 = vpop.permute.xlu0 %2075
    %v2079 = vsel %vm315, %v2074, 0
    %2081 = vmatpush.bf16.msra.mxu0 0
    %2082 = vmatpush.bf16.msra.mxu0 0
    %2083 = vmatpush.bf16.msra.mxu0 0
    %2084 = vmatpush.bf16.msra.mxu0 0
    %2085 = vmatpush.bf16.msra.mxu0 0
    %2086 = vmatpush.bf16.msra.mxu0 0
    %2087 = vmatpush.bf16.msra.mxu0 0
    %2088 = vmatpush.bf16.msra.mxu0 %v2076
    %2089 = vmatmul.bf16.gmra.mxu0 %v2079
    %v2090 = vpop.f32.mrf.mxu0
    %v2091 = vadd.f32 0.0, %v2090
    %v2092 = vpop.f32.mrf.mxu0
    %v2093 = vadd.f32 0.0, %v2092
    %2094 = vdwg.mxu0
    %v2097 = vunpack.c.l.b16 %v2068
    %v2098 = vunpack.c.l.b16 %v2069
    %v2099 = vpack.c.b16 %v2098, %v2097
    %2100 = vrot.lane.b32.xlu0 %v1663, 80
    %v2101 = vpop.permute.xlu0 %2100
    %v2104 = vsel %vm315, %v2099, 0
    %2106 = vmatpush.bf16.msra.mxu0 0
    %2107 = vmatpush.bf16.msra.mxu0 0
    %2108 = vmatpush.bf16.msra.mxu0 0
    %2109 = vmatpush.bf16.msra.mxu0 0
    %2110 = vmatpush.bf16.msra.mxu0 0
    %2111 = vmatpush.bf16.msra.mxu0 0
    %2112 = vmatpush.bf16.msra.mxu0 0
    %2113 = vmatpush.bf16.msra.mxu0 %v2101
    %2114 = vmatmul.bf16.gmra.mxu0 %v2104
    %v2115 = vpop.f32.mrf.mxu0
    %v2116 = vadd.f32 0.0, %v2115
    %v2117 = vpop.f32.mrf.mxu0
    %v2118 = vadd.f32 0.0, %v2117
    %2119 = vdwg.mxu0
    %2124 = vrot.lane.b32.xlu0 %v1799, 16
    %v2125 = vpop.permute.xlu0 %2124
    %2126 = vrot.lane.b32.xlu0 %v1801, 16
    %v2127 = vpop.permute.xlu0 %2126
    %2128 = vrot.lane.b32.xlu0 %v1824, 16
    %v2129 = vpop.permute.xlu0 %2128
    %2130 = vrot.lane.b32.xlu0 %v1826, 16
    %v2131 = vpop.permute.xlu0 %2130
    %2140 = vrot.lane.b32.xlu0 %v1945, 32
    %v2141 = vpop.permute.xlu0 %2140
    %2142 = vrot.lane.b32.xlu0 %v1947, 32
    %v2143 = vpop.permute.xlu0 %2142
    %2144 = vrot.lane.b32.xlu0 %v1970, 32
    %v2145 = vpop.permute.xlu0 %2144
    %2146 = vrot.lane.b32.xlu0 %v1972, 32
    %v2147 = vpop.permute.xlu0 %2146
    %2156 = vrot.lane.b32.xlu0 %v2091, 48
    %v2157 = vpop.permute.xlu0 %2156
    %2158 = vrot.lane.b32.xlu0 %v2093, 48
    %v2159 = vpop.permute.xlu0 %2158
    %2160 = vrot.lane.b32.xlu0 %v2116, 48
    %v2161 = vpop.permute.xlu0 %2160
    %2162 = vrot.lane.b32.xlu0 %v2118, 48
    %v2163 = vpop.permute.xlu0 %2162
    %v2168 = vsel %vm315, %v1650, %v2125
    %v2169 = vsel %vm315, %v1652, %v2127
    %v2170 = vsel %vm315, %v1678, %v2129
    %v2171 = vsel %vm315, %v1680, %v2131
    %v2172 = vsel %vm78, %v2168, %v2141
    %v2173 = vsel %vm78, %v2169, %v2143
    %v2174 = vsel %vm78, %v2170, %v2145
    %v2175 = vsel %vm78, %v2171, %v2147
    %v2176 = vsel %vm961, %v2172, %v2157
    %v2177 = vsel %vm961, %v2173, %v2159
    %v2178 = vsel %vm961, %v2174, %v2161
    %v2179 = vsel %vm961, %v2175, %v2163
    %s2180 = scalar_lea.vmem %s8, 32
    %v2181 = vld [vmem:[%s2180] sm:$0xf]
    %v2182 = vld [vmem:[%s2180 + $0x4] sm:$0xf]
    %v2183 = vld [vmem:[%s2180 + $0x8] sm:$0xf]
    %v2184 = vld [vmem:[%s2180 + $0xc] sm:$0xf]
    %v2185 = vld [vmem:[%s2180 + $0x10] sm:$0xf]
    %v2186 = vld [vmem:[%s2180 + $0x14] sm:$0xf]
    %v2187 = vld [vmem:[%s2180 + $0x18] sm:$0xf]
    %v2188 = vld [vmem:[%s2180 + $0x1c] sm:$0xf]
    %v2189 = vpack.c.bf16 %v2177, %v2176
    %v2190 = vpack.c.bf16 %v2179, %v2178
    %v2191 = vperm.slane %v1388, 2
    %v2200 = vunpack.c.l.b16 %v2181
    %v2201 = vunpack.c.l.b16 %v2182
    %v2202 = vunpack.c.l.b16 %v2183
    %v2203 = vunpack.c.l.b16 %v2184
    %v2204 = vunpack.c.l.b16 %v2185
    %v2205 = vunpack.c.l.b16 %v2186
    %v2206 = vunpack.c.l.b16 %v2187
    %v2207 = vunpack.c.l.b16 %v2188
    %v2208 = vpack.c.b16 %v2201, %v2200
    %v2209 = vpack.c.b16 %v2203, %v2202
    %v2210 = vpack.c.b16 %v2205, %v2204
    %v2211 = vpack.c.b16 %v2207, %v2206
    %v2217 = vsel %vm214, %v2189, 0
    %v2220 = vsel %vm214, %v2190, 0
    %2222 = vmatpush.bf16.msra.mxu0 0
    %2223 = vmatpush.bf16.msra.mxu0 0
    %2224 = vmatpush.bf16.msra.mxu0 0
    %2225 = vmatpush.bf16.msra.mxu0 0
    %2226 = vmatpush.bf16.msra.mxu0 %v2211
    %2227 = vmatpush.bf16.msra.mxu0 %v2210
    %2228 = vmatpush.bf16.msra.mxu0 %v2209
    %2229 = vmatpush.bf16.msra.mxu0 %v2208
    %2230 = vmatmul.bf16.gmra.mxu0 %v2217
    %v2231 = vpop.f32.mrf.mxu0
    %v2232 = vadd.f32 %v2191, %v2231
    %v2233 = vpop.f32.mrf.mxu0
    %v2234 = vadd.f32 %v2191, %v2233
    %2235 = vmatmul.bf16.gmra.mxu0 %v2220
    %v2236 = vpop.f32.mrf.mxu0
    %v2237 = vadd.f32 %v2191, %v2236
    %v2238 = vpop.f32.mrf.mxu0
    %v2239 = vadd.f32 %v2191, %v2238
    %2240 = vdwg.mxu0
    %v2241 = vadd.f32 %v1383, %v2232
    %v2242 = vadd.f32 %v1384, %v2234
    %v2243 = vadd.f32 %v1385, %v2237
    %v2244 = vadd.f32 %v1386, %v2239
    %v2245 = vsel %vm214, %v2241, 0.0
    %2246 = vadd.xlane.f32.xlu0 %v2245
    %v2247 = vpop.xlane.xlu0 %2246
    %v2248 = vsel %vm214, %v2242, 0.0
    %2249 = vadd.xlane.f32.xlu0 %v2248
    %v2250 = vpop.xlane.xlu0 %2249
    %v2251 = vsel %vm214, %v2243, 0.0
    %2252 = vadd.xlane.f32.xlu0 %v2251
    %v2253 = vpop.xlane.xlu0 %2252
    %v2254 = vsel %vm214, %v2244, 0.0
    %2255 = vadd.xlane.f32.xlu0 %v2254
    %v2256 = vpop.xlane.xlu0 %2255
    %v2257 = vmul.f32 %v2247, %v1048
    %v2258 = vmul.f32 %v2250, %v1048
    %v2259 = vmul.f32 %v2253, %v1048
    %v2260 = vmul.f32 %v2256, %v1048
    %v2261 = vsub.f32 %v2241, %v2257
    %v2262 = vsub.f32 %v2242, %v2258
    %v2263 = vsub.f32 %v2243, %v2259
    %v2264 = vsub.f32 %v2244, %v2260
    %v2265 = vmul.f32 %v2261, %v2261
    %v2266 = vmul.f32 %v2262, %v2262
    %v2267 = vmul.f32 %v2263, %v2263
    %v2268 = vmul.f32 %v2264, %v2264
    %v2269 = vsel %vm214, %v2265, 0.0
    %2270 = vadd.xlane.f32.xlu0 %v2269
    %v2271 = vpop.xlane.xlu0 %2270
    %v2272 = vsel %vm214, %v2266, 0.0
    %2273 = vadd.xlane.f32.xlu0 %v2272
    %v2274 = vpop.xlane.xlu0 %2273
    %v2275 = vsel %vm214, %v2267, 0.0
    %2276 = vadd.xlane.f32.xlu0 %v2275
    %v2277 = vpop.xlane.xlu0 %2276
    %v2278 = vsel %vm214, %v2268, 0.0
    %2279 = vadd.xlane.f32.xlu0 %v2278
    %v2280 = vpop.xlane.xlu0 %2279
    %v2281 = vmul.f32 %v2271, %v1048
    %v2282 = vmul.f32 %v2274, %v1048
    %v2283 = vmul.f32 %v2277, %v1048
    %v2284 = vmul.f32 %v2280, %v1048
    %v2285 = vadd.f32 %v2281, 1e-05
    %v2286 = vadd.f32 %v2282, 1e-05
    %v2287 = vadd.f32 %v2283, 1e-05
    %v2288 = vadd.f32 %v2284, 1e-05
    %v2289 = vrsqrt.pop %v2285
    %v2290 = vmul.f32 %v2289, %v2285
    %v2291 = vmul.f32 %v2290, %v2289
    %v2292 = vmul.f32 0.5, %v2291
    %v2293 = vsub.f32 1.5, %v2292
    %v2294 = vmul.f32 %v2289, %v2293
    %vm2295 = vweird.f32 %v2285
    %vm2296 = vweird.f32 %v2289
    %vm2297 = vmor %vm2295, %vm2296
    %v2298 = vsel %vm2297, %v2289, %v2294
    %v2299 = vrsqrt.pop %v2286
    %v2300 = vmul.f32 %v2299, %v2286
    %v2301 = vmul.f32 %v2300, %v2299
    %v2302 = vmul.f32 0.5, %v2301
    %v2303 = vsub.f32 1.5, %v2302
    %v2304 = vmul.f32 %v2299, %v2303
    %vm2305 = vweird.f32 %v2286
    %vm2306 = vweird.f32 %v2299
    %vm2307 = vmor %vm2305, %vm2306
    %v2308 = vsel %vm2307, %v2299, %v2304
    %v2309 = vrsqrt.pop %v2287
    %v2310 = vmul.f32 %v2309, %v2287
    %v2311 = vmul.f32 %v2310, %v2309
    %v2312 = vmul.f32 0.5, %v2311
    %v2313 = vsub.f32 1.5, %v2312
    %v2314 = vmul.f32 %v2309, %v2313
    %vm2315 = vweird.f32 %v2287
    %vm2316 = vweird.f32 %v2309
    %vm2317 = vmor %vm2315, %vm2316
    %v2318 = vsel %vm2317, %v2309, %v2314
    %v2319 = vrsqrt.pop %v2288
    %v2320 = vmul.f32 %v2319, %v2288
    %v2321 = vmul.f32 %v2320, %v2319
    %v2322 = vmul.f32 0.5, %v2321
    %v2323 = vsub.f32 1.5, %v2322
    %v2324 = vmul.f32 %v2319, %v2323
    %vm2325 = vweird.f32 %v2288
    %vm2326 = vweird.f32 %v2319
    %vm2327 = vmor %vm2325, %vm2326
    %v2328 = vsel %vm2327, %v2319, %v2324
    %v2329 = vmul.f32 %v2261, %v2298
    %v2330 = vmul.f32 %v2262, %v2308
    %v2331 = vmul.f32 %v2263, %v2318
    %v2332 = vmul.f32 %v2264, %v2328
    %v2333 = vperm.slane %v1388, 5
    %v2334 = vmul.f32 %v2329, %v2333
    %v2335 = vmul.f32 %v2330, %v2333
    %v2336 = vmul.f32 %v2331, %v2333
    %v2337 = vmul.f32 %v2332, %v2333
    %v2338 = vperm.slane %v1388, 6
    %v2339 = vadd.f32 %v2334, %v2338
    %v2340 = vadd.f32 %v2335, %v2338
    %v2341 = vadd.f32 %v2336, %v2338
    %v2342 = vadd.f32 %v2337, %v2338
    %s2343 = scalar_lea.vmem %s9, 32
    %v2344 = vld [vmem:[%s2343] sm:$0xf]
    %v2345 = vld [vmem:[%s2343 + $0x4] sm:$0xf]
    %v2346 = vld [vmem:[%s2343 + $0x8] sm:$0xf]
    %v2347 = vld [vmem:[%s2343 + $0xc] sm:$0xf]
    %v2348 = vld [vmem:[%s2343 + $0x10] sm:$0xf]
    %v2349 = vld [vmem:[%s2343 + $0x14] sm:$0xf]
    %v2350 = vld [vmem:[%s2343 + $0x18] sm:$0xf]
    %v2351 = vld [vmem:[%s2343 + $0x1c] sm:$0xf]
    %v2352 = vpack.c.bf16 %v2340, %v2339
    %v2353 = vpack.c.bf16 %v2342, %v2341
    %v2354 = vperm.slane %v1388, 3
    %v2363 = vunpack.c.l.b16 %v2344
    %v2364 = vunpack.c.l.b16 %v2345
    %v2365 = vunpack.c.l.b16 %v2346
    %v2366 = vunpack.c.l.b16 %v2347
    %v2367 = vunpack.c.l.b16 %v2348
    %v2368 = vunpack.c.l.b16 %v2349
    %v2369 = vunpack.c.l.b16 %v2350
    %v2370 = vunpack.c.l.b16 %v2351
    %v2371 = vpack.c.b16 %v2364, %v2363
    %v2372 = vpack.c.b16 %v2366, %v2365
    %v2373 = vpack.c.b16 %v2368, %v2367
    %v2374 = vpack.c.b16 %v2370, %v2369
    %v2380 = vsel %vm214, %v2352, 0
    %v2383 = vsel %vm214, %v2353, 0
    %2385 = vmatpush.bf16.msra.mxu0 0
    %2386 = vmatpush.bf16.msra.mxu0 0
    %2387 = vmatpush.bf16.msra.mxu0 0
    %2388 = vmatpush.bf16.msra.mxu0 0
    %2389 = vmatpush.bf16.msra.mxu0 %v2374
    %2390 = vmatpush.bf16.msra.mxu0 %v2373
    %2391 = vmatpush.bf16.msra.mxu0 %v2372
    %2392 = vmatpush.bf16.msra.mxu0 %v2371
    %2393 = vmatmul.bf16.gmra.mxu0 %v2380
    %v2394 = vpop.f32.mrf.mxu0
    %v2395 = vadd.f32 %v2354, %v2394
    %v2396 = vpop.f32.mrf.mxu0
    %v2397 = vadd.f32 %v2354, %v2396
    %2398 = vmatmul.bf16.gmra.mxu0 %v2383
    %v2399 = vpop.f32.mrf.mxu0
    %v2400 = vadd.f32 %v2354, %v2399
    %v2401 = vpop.f32.mrf.mxu0
    %v2402 = vadd.f32 %v2354, %v2401
    %2403 = vdwg.mxu0
    %v2404 = vmax.f32 %v2395, 0.0
    %v2405 = vmax.f32 %v2397, 0.0
    %v2406 = vmax.f32 %v2400, 0.0
    %v2407 = vmax.f32 %v2402, 0.0
    %s2408 = scalar_lea.vmem %s10, 64
    %v2409 = vld [vmem:[%s2408] sm:$0xf]
    %v2410 = vld [vmem:[%s2408 + $0x4] sm:$0xf]
    %v2411 = vld [vmem:[%s2408 + $0x8] sm:$0xf]
    %v2412 = vld [vmem:[%s2408 + $0xc] sm:$0xf]
    %v2413 = vld [vmem:[%s2408 + $0x10] sm:$0xf]
    %v2414 = vld [vmem:[%s2408 + $0x14] sm:$0xf]
    %v2415 = vld [vmem:[%s2408 + $0x18] sm:$0xf]
    %v2416 = vld [vmem:[%s2408 + $0x1c] sm:$0xf]
    %v2417 = vld [vmem:[%s2408 + $0x20] sm:$0xf]
    %v2418 = vld [vmem:[%s2408 + $0x24] sm:$0xf]
    %v2419 = vld [vmem:[%s2408 + $0x28] sm:$0xf]
    %v2420 = vld [vmem:[%s2408 + $0x2c] sm:$0xf]
    %v2421 = vld [vmem:[%s2408 + $0x30] sm:$0xf]
    %v2422 = vld [vmem:[%s2408 + $0x34] sm:$0xf]
    %v2423 = vld [vmem:[%s2408 + $0x38] sm:$0xf]
    %v2424 = vld [vmem:[%s2408 + $0x3c] sm:$0xf]
    %v2425 = vpack.c.bf16 %v2405, %v2404
    %v2426 = vpack.c.bf16 %v2407, %v2406
    %v2427 = vperm.slane %v1388, 4
    %v2444 = vunpack.c.l.b16 %v2409
    %v2445 = vunpack.c.l.b16 %v2410
    %v2446 = vunpack.c.l.b16 %v2411
    %v2447 = vunpack.c.l.b16 %v2412
    %v2448 = vunpack.c.l.b16 %v2413
    %v2449 = vunpack.c.l.b16 %v2414
    %v2450 = vunpack.c.l.b16 %v2415
    %v2451 = vunpack.c.l.b16 %v2416
    %v2452 = vunpack.c.l.b16 %v2417
    %v2453 = vunpack.c.l.b16 %v2418
    %v2454 = vunpack.c.l.b16 %v2419
    %v2455 = vunpack.c.l.b16 %v2420
    %v2456 = vunpack.c.l.b16 %v2421
    %v2457 = vunpack.c.l.b16 %v2422
    %v2458 = vunpack.c.l.b16 %v2423
    %v2459 = vunpack.c.l.b16 %v2424
    %v2460 = vpack.c.b16 %v2445, %v2444
    %v2461 = vpack.c.b16 %v2447, %v2446
    %v2462 = vpack.c.b16 %v2449, %v2448
    %v2463 = vpack.c.b16 %v2451, %v2450
    %v2464 = vpack.c.b16 %v2453, %v2452
    %v2465 = vpack.c.b16 %v2455, %v2454
    %v2466 = vpack.c.b16 %v2457, %v2456
    %v2467 = vpack.c.b16 %v2459, %v2458
    %2476 = vmatpush.bf16.msra.mxu0 %v2467
    %2477 = vmatpush.bf16.msra.mxu0 %v2466
    %2478 = vmatpush.bf16.msra.mxu0 %v2465
    %2479 = vmatpush.bf16.msra.mxu0 %v2464
    %2480 = vmatpush.bf16.msra.mxu0 %v2463
    %2481 = vmatpush.bf16.msra.mxu0 %v2462
    %2482 = vmatpush.bf16.msra.mxu0 %v2461
    %2483 = vmatpush.bf16.msra.mxu0 %v2460
    %2484 = vmatmul.bf16.gmra.mxu0 %v2425
    %v2485 = vpop.f32.mrf.mxu0
    %v2486 = vadd.f32 %v2427, %v2485
    %v2487 = vpop.f32.mrf.mxu0
    %2488 = vmatmul.bf16.gmra.mxu0 %v2426
    %v2489 = vpop.f32.mrf.mxu0
    %v2490 = vadd.f32 %v2427, %v2489
    %v2491 = vpop.f32.mrf.mxu0
    %2492 = vdwg.mxu0
    %v2493 = vadd.f32 %v2339, %v2486
    %v2494 = vadd.f32 %v2341, %v2490
    %v2495 = vsel %vm214, %v2493, 0.0
    %2496 = vadd.xlane.f32.xlu0 %v2495
    %v2497 = vpop.xlane.xlu0 %2496
    %v2498 = vsel %vm214, %v2494, 0.0
    %2499 = vadd.xlane.f32.xlu0 %v2498
    %v2500 = vpop.xlane.xlu0 %2499
    %v2501 = vmul.f32 %v2497, %v1048
    %v2502 = vmul.f32 %v2500, %v1048
    %v2503 = vsub.f32 %v2493, %v2501
    %v2504 = vsub.f32 %v2494, %v2502
    %v2505 = vmul.f32 %v2503, %v2503
    %v2506 = vmul.f32 %v2504, %v2504
    %v2507 = vsel %vm214, %v2505, 0.0
    %2508 = vadd.xlane.f32.xlu0 %v2507
    %v2509 = vpop.xlane.xlu0 %2508
    %v2510 = vsel %vm214, %v2506, 0.0
    %2511 = vadd.xlane.f32.xlu0 %v2510
    %v2512 = vpop.xlane.xlu0 %2511
    %v2513 = vmul.f32 %v2509, %v1048
    %v2514 = vmul.f32 %v2512, %v1048
    %v2515 = vadd.f32 %v2513, 1e-05
    %v2516 = vadd.f32 %v2514, 1e-05
    %v2517 = vrsqrt.pop %v2515
    %v2518 = vmul.f32 %v2517, %v2515
    %v2519 = vmul.f32 %v2518, %v2517
    %v2520 = vmul.f32 0.5, %v2519
    %v2521 = vsub.f32 1.5, %v2520
    %v2522 = vmul.f32 %v2517, %v2521
    %vm2523 = vweird.f32 %v2515
    %vm2524 = vweird.f32 %v2517
    %vm2525 = vmor %vm2523, %vm2524
    %v2526 = vsel %vm2525, %v2517, %v2522
    %v2527 = vrsqrt.pop %v2516
    %v2528 = vmul.f32 %v2527, %v2516
    %v2529 = vmul.f32 %v2528, %v2527
    %v2530 = vmul.f32 0.5, %v2529
    %v2531 = vsub.f32 1.5, %v2530
    %v2532 = vmul.f32 %v2527, %v2531
    %vm2533 = vweird.f32 %v2516
    %vm2534 = vweird.f32 %v2527
    %vm2535 = vmor %vm2533, %vm2534
    %v2536 = vsel %vm2535, %v2527, %v2532
    %v2537 = vmul.f32 %v2503, %v2526
    %v2538 = vmul.f32 %v2504, %v2536
    %v2539 = vperm.slane %v1388, 7
    %v2540 = vmul.f32 %v2537, %v2539
    %v2541 = vmul.f32 %v2538, %v2539
    %v2542 = vperm.slane %v1389, 0
    %v2543 = vadd.f32 %v2540, %v2542
    %v2544 = vadd.f32 %v2541, %v2542
    %v2545 = vld [vmem:[%s12] sm:$0xf]
    %v2546 = vld [vmem:[%s12 + $0x4] sm:$0xf]
    %v2547 = vld [vmem:[%s12 + $0x8] sm:$0xf]
    %v2548 = vld [vmem:[%s12 + $0xc] sm:$0xf]
    %v2549 = vld [vmem:[%s12 + $0x10] sm:$0xf]
    %v2550 = vld [vmem:[%s12 + $0x14] sm:$0xf]
    %v2551 = vld [vmem:[%s12 + $0x18] sm:$0xf]
    %v2552 = vld [vmem:[%s12 + $0x1c] sm:$0xf]
    %v2553 = vpack.c.bf16 %v2543, %v2543
    %v2554 = vpack.c.bf16 %v2544, %v2544
    %v2555 = vperm.slane %v46, 2
    %v2558 = vunpack.c.l.b16 %v2553
    %v2559 = vunpack.c.l.b16 %v2554
    %v2560 = vrot.slane %v2558, 1
    %vm2561 = vcmask 1041409
    %v2562 = vsel %vm2561, %v2559, %v2560
    %v2563 = vpack.c.b16 %v2562, %v2562
    %v2572 = vunpack.c.l.b16 %v2545
    %v2573 = vunpack.c.l.b16 %v2546
    %v2574 = vunpack.c.l.b16 %v2547
    %v2575 = vunpack.c.l.b16 %v2548
    %v2576 = vunpack.c.l.b16 %v2549
    %v2577 = vunpack.c.l.b16 %v2550
    %v2578 = vunpack.c.l.b16 %v2551
    %v2579 = vunpack.c.l.b16 %v2552
    %v2580 = vpack.c.b16 %v2573, %v2572
    %v2581 = vpack.c.b16 %v2575, %v2574
    %v2582 = vpack.c.b16 %v2577, %v2576
    %v2583 = vpack.c.b16 %v2579, %v2578
    %v2589 = vsel %vm214, %v2563, 0
    %2591 = vmatpush.bf16.msra.mxu0 0
    %2592 = vmatpush.bf16.msra.mxu0 0
    %2593 = vmatpush.bf16.msra.mxu0 0
    %2594 = vmatpush.bf16.msra.mxu0 0
    %2595 = vmatpush.bf16.msra.mxu0 %v2583
    %2596 = vmatpush.bf16.msra.mxu0 %v2582
    %2597 = vmatpush.bf16.msra.mxu0 %v2581
    %2598 = vmatpush.bf16.msra.mxu0 %v2580
    %2599 = vmatmul.bf16.gmra.mxu0 %v2589
    %v2600 = vpop.f32.mrf.mxu0
    %v2601 = vadd.f32 %v2555, %v2600
    %v2602 = vpop.f32.mrf.mxu0
    %2603 = vdwg.mxu0
    %2604 = vst [vmem:[#allocation2] sm:$0x3] %v2601
    // Predicated region
    $region54: #{ndt47_forward.1} parent=1 // pred_check
      _
    $region55: #{ndt47_forward.1} parent=1 // pred_check_branch
      %2606 = sbr.rel (0) target = $region57
    $region56: #{ndt47_forward.1} parent=1 // pred_region
      %2608 = vsyncadd [#allocation3], 0
      %s2610 = sshll.u32 [#allocation2], 4
      %s2611 = int_to_ptr.vmem [resolvable:$true] %s2610
      %s2612 = sshll.u32 %s13, 4
      %s2613 = int_to_ptr.hbm [resolvable:$true] %s2612
      %2615 = dma.vmem_to_hbm [thread:$0]  %s2611, 32, %s2613, [#allocation3]
    $region57: #{ndt47_forward.1} parent=1 // pred_fallthru
      _
    // Predicated region
    $region58: #{ndt47_forward.1} parent=1 // pred_check
      _
    $region59: #{ndt47_forward.1} parent=1 // pred_check_branch
      %2617 = sbr.rel (0) target = $region61
    $region60: #{ndt47_forward.1} parent=1 // pred_region
      %2619 = dma.done [#allocation3], 32
    $region61: #{ndt47_forward.1} parent=1 // pred_fallthru
      _
    %2620 = vsyncpa [#allocation3], 1

</llo_original>
